<compile_context>
chip_gen: v7x
topology: tpu7x:2x2x1
jax: 0.10.0
libtpu: 0.0.40
codegen_flags: <defaults>
</compile_context>

<pallas_src>
import jax
import jax.numpy as jnp
from jax.experimental import pallas as pl
from jax.experimental.pallas import tpu as pltpu


def _round_up(x, m):
    return ((x + m - 1) // m) * m


def _sap_pool_kernel(feat_ref, lens_ref, w_ref, b_ref, ws_ref, out_ref,
                     m_sc, l_sc, acc_sc):
    """Grid step (b, t): fused connector + SAP online-softmax pooling.

    feat_ref: [Bb, Tt, D_up]  bf16 padded features (batch block x time tile)
    lens_ref: [Bp, 1]         int32 valid lengths (whole array, resident)
    w_ref:    [D_up, Dp]      bf16 connector weight (cols zero-padded to 128k)
    b_ref:    [1, Dp]         f32  connector bias (zero-padded)
    ws_ref:   [1, Dp]         f32  SAP score weight row (zero-padded)
    out_ref:  [Bb, Dp]        f32  pooled utterance vectors (written at last t)
    m_sc/l_sc:[Bb, 1, 1]      f32  online-softmax running max / normalizer
    acc_sc:   [Bb, Dp]        f32  running attention-weighted sum
    """
    b = pl.program_id(0)
    t = pl.program_id(1)
    Bb, Tt, D_up = feat_ref.shape
    Dp = w_ref.shape[1]

    @pl.when(t == 0)
    def _():
        m_sc[...] = jnp.full_like(m_sc, -1e30)
        l_sc[...] = jnp.zeros_like(l_sc)
        acc_sc[...] = jnp.zeros_like(acc_sc)

    # Connector: one MXU pass over Bb*Tt rows, lane-aligned N = Dp.
    feat2d = feat_ref[...].reshape(Bb * Tt, D_up)          # zero-cost: Tt % 8 == 0
    h = jnp.dot(feat2d, w_ref[...], preferred_element_type=jnp.float32)
    h = (h + b_ref[...]).reshape(Bb, Tt, Dp)

    # SAP attention scores from the resident h (VPU mul + lane reduction).
    # NOTE: the SAP score bias is a constant shift over time and cancels in the
    # softmax, so it is not added (exactly equivalent).
    scores = jnp.sum(h * ws_ref[...].reshape(1, 1, Dp), axis=-1, keepdims=True)

    # Additive time mask (1 - mask) * -100000.0, built in-kernel from lengths.
    start = pl.multiple_of(b * Bb, Bb)
    lens = lens_ref[pl.ds(start, Bb), :].reshape(Bb, 1, 1)
    t_idx = t * Tt + jax.lax.broadcasted_iota(jnp.int32, (Bb, Tt, 1), 1)
    scores = scores + jnp.where(t_idx < lens, 0.0, -100000.0)

    # Online masked softmax over time; normalization deferred to the last tile.
    m_prev = m_sc[...]
    m_new = jnp.maximum(m_prev, jnp.max(scores, axis=1, keepdims=True))  # [Bb,1,1]
    alpha = jnp.exp(m_prev - m_new)                                      # [Bb,1,1]
    p = jnp.exp(scores - m_new)                                          # [Bb,Tt,1]
    l_sc[...] = alpha * l_sc[...] + jnp.sum(p, axis=1, keepdims=True)
    acc_sc[...] = alpha.reshape(Bb, 1) * acc_sc[...] + jnp.sum(h * p, axis=1)
    m_sc[...] = m_new

    @pl.when(t == pl.num_programs(1) - 1)
    def _():
        inv = pl.reciprocal(l_sc[...].reshape(Bb, 1), approx=True)
        out_ref[...] = acc_sc[...] * inv


def downstream_expert_forward(features_pad, lengths, params, labels,
                              *, block_b=None, block_t=None):
    """features_pad: [B, T, D_up] f32 (zero-padded), lengths: [B] int,
    labels: [B, num_slots=1] int32."""
    B, T, D_up = features_pad.shape
    D_in = params['w_conn'].shape[1]
    Dp = _round_up(D_in, 128)            # lane-dense output / MXU-aligned N

    # --- tiling: >= 512 MXU rows per step (multiple of 256 on v6e/v7x); time is
    #     tiled so features + f32 h fit comfortably in VMEM (v7x: 64 MiB).
    if block_t is None:
        block_t = min(_round_up(T, 8), 256)
    block_t = _round_up(block_t, 8)
    Tp = _round_up(T, block_t)
    if block_b is None:
        block_b = _round_up(max(1, (512 + block_t - 1) // block_t), 8)
    block_b = _round_up(block_b, 8)
    Bp = _round_up(B, block_b)

    # --- inputs: bf16 features; batch-padded rows get length 0 (sliced off later)
    feat = features_pad.astype(jnp.bfloat16)
    feat = jnp.pad(feat, ((0, Bp - B), (0, Tp - T), (0, 0)))
    lens = jnp.pad(lengths.astype(jnp.int32), ((0, Bp - B),)).reshape(Bp, 1)

    # --- parameters: zero-pad output columns to Dp (exact)
    w = jnp.pad(params['w_conn'], ((0, 0), (0, Dp - D_in))).astype(jnp.bfloat16)
    bias = jnp.pad(params['b_conn'], ((0, 0), (0, Dp - D_in))).astype(jnp.float32)
    ws = jnp.pad(params['w_sap'].T, ((0, 0), (0, Dp - D_in))).astype(jnp.float32)

    grid = (Bp // block_b, Tp // block_t)

    # --- scoped-VMEM sizing: 2x feature tile + weights + h/p temps + headroom
    est = (2 * block_b * block_t * D_up * 2          # double-buffered bf16 features
           + 2 * (D_up * Dp * 2 + 2 * Dp * 4)        # weight / bias / sap row
           + 2 * Bp * 4                              # lengths
           + 2 * block_b * Dp * 4                    # output
           + block_b * (Dp + 2) * 4                  # accumulators
           + 4 * block_b * block_t * Dp * 4          # h, p, temporaries
           + (8 << 20))                              # headroom
    vmem_limit = int(min(64 << 20, max(32 << 20, est)))

    utter = pl.pallas_call(
        _sap_pool_kernel,
        out_shape=jax.ShapeDtypeStruct((Bp, Dp), jnp.float32),
        grid_spec=pltpu.PrefetchScalarGridSpec(
            num_scalar_prefetch=0,
            grid=grid,
            in_specs=[
                pl.BlockSpec((block_b, block_t, D_up), lambda b, t: (b, t, 0)),
                pl.BlockSpec((Bp, 1), lambda b, t: (0, 0)),       # lengths (resident)
                pl.BlockSpec((D_up, Dp), lambda b, t: (0, 0)),    # connector W
                pl.BlockSpec((1, Dp), lambda b, t: (0, 0)),       # connector b
                pl.BlockSpec((1, Dp), lambda b, t: (0, 0)),       # SAP score row
            ],
            out_specs=pl.BlockSpec((block_b, Dp), lambda b, t: (b, 0)),
            scratch_shapes=[
                pltpu.VMEM((block_b, 1, 1), jnp.float32),   # running max
                pltpu.VMEM((block_b, 1, 1), jnp.float32),   # running normalizer
                pltpu.VMEM((block_b, Dp), jnp.float32),     # running pooled sum
            ]),
        compiler_params=pltpu.CompilerParams(
            dimension_semantics=("parallel", "arbitrary"),
            vmem_limit_bytes=vmem_limit),
    )(feat, lens, w, bias, ws)

    utter = utter[:B, :D_in]                              # [B, D_in]

    # Output head + CrossEntropy + argmax on tiny [B, C] tensors (XLA side).
    logits = utter @ params['w_out'] + params['b_out']    # [B, C]
    logp = jax.nn.log_softmax(logits, axis=-1)
    nll = -jnp.take_along_axis(logp, labels, axis=1)[:, 0]
    intent_loss = jnp.mean(nll)                           # nn.CrossEntropyLoss (mean)
    predicted_intent = jnp.argmax(logits, axis=1)         # subset.max(1)[1]
    return intent_loss, logits, predicted_intent


if __name__ == "__main__":
    key = jax.random.PRNGKey(0)
    upstream_dim = 64        # upstream feature dim
    input_dim = 64           # modelrc['input_dim'] (real s3prl default: 256)
    n_intents = 8            # sum(values_per_slot) with a single 'intent' slot
    B, T = 64, 16            # grid = (2 parallel batch blocks, 1 time tile), 512 rows/step

    k_feat, k_wc, k_ws, k_wo, k_len, k_lab = jax.random.split(key, 6)

    # Variable-length features -> pad_sequence(batch_first=True) equivalent
    lengths = jax.random.randint(k_len, (B,), 4, T + 1)
    feats_full = jax.random.normal(k_feat, (B, T, upstream_dim), jnp.float32)
    valid = (jnp.arange(T)[None, :] < lengths[:, None])[:, :, None]
    features_pad = jnp.where(valid, feats_full, 0.0)

    # Deterministic synthetic parameters (shapes dictated by the module's __init__)
    params = {
        'w_conn': jax.random.normal(k_wc, (upstream_dim, input_dim), jnp.float32) * 0.05,
        'b_conn': jnp.zeros((1, input_dim), jnp.float32),
        'w_sap':  jax.random.normal(k_ws, (input_dim, 1), jnp.float32) * 0.05,
        'b_sap':  jnp.zeros((1, 1), jnp.float32),
        'w_out':  jax.random.normal(k_wo, (input_dim, n_intents), jnp.float32) * 0.05,
        'b_out':  jnp.zeros((1, n_intents), jnp.float32),
    }

    # labels: torch.stack(labels) -> [B, num_slots=1]
    labels = jax.random.randint(k_lab, (B, 1), 0, n_intents).astype(jnp.int32)

    loss, logits, pred = downstream_expert_forward(features_pad, lengths, params, labels)
    jax.block_until_ready((loss, logits, pred))

    # records['acc'] equivalent: (predicted == labels).prod(1)
    acc = (pred[:, None] == labels).prod(axis=1).astype(jnp.float32)
    jax.block_until_ready(acc)

    print("KERNEL_OK")
</pallas_src>

<mosaic_0001>
module attributes {stable_mosaic.version = 11 : i64} {
  func.func @_sap_pool_kernel(%arg0: i32, %arg1: i32, %arg2: memref<32x16x64xbf16, #tpu.memory_space<vmem>>, %arg3: memref<64x1xi32, #tpu.memory_space<vmem>>, %arg4: memref<64x128xbf16, #tpu.memory_space<vmem>>, %arg5: memref<1x128xf32, #tpu.memory_space<vmem>>, %arg6: memref<1x128xf32, #tpu.memory_space<vmem>>, %arg7: memref<32x128xf32, #tpu.memory_space<vmem>>, %arg8: memref<32x1x1xf32, #tpu.memory_space<vmem>>, %arg9: memref<32x1x1xf32, #tpu.memory_space<vmem>>, %arg10: memref<32x128xf32, #tpu.memory_space<vmem>>) attributes {dimension_semantics = [#tpu.dimension_semantics<parallel>, #tpu.dimension_semantics<arbitrary>], iteration_bounds = array<i64: 2, 1>, scalar_prefetch = 0 : i64, scratch_operands = 3 : i64, tpu.core_type = #tpu.core_type<tc>, window_params = [{transform_indices = @transform_0, window_bounds = array<i64: 32, 16, 64>}, {pipeline_mode = #tpu.pipeline_mode<synchronous>, transform_indices = @transform_1, window_bounds = array<i64: 64, 1>}, {pipeline_mode = #tpu.pipeline_mode<synchronous>, transform_indices = @transform_2, window_bounds = array<i64: 64, 128>}, {pipeline_mode = #tpu.pipeline_mode<synchronous>, transform_indices = @transform_3, window_bounds = array<i64: 1, 128>}, {pipeline_mode = #tpu.pipeline_mode<synchronous>, transform_indices = @transform_4, window_bounds = array<i64: 1, 128>}, {transform_indices = @transform_5, window_bounds = array<i64: 32, 128>}]} {
    %c0_i32 = arith.constant 0 : i32
    %0 = arith.cmpi eq, %arg1, %c0_i32 : i32
    %1 = arith.extui %0 : i1 to i32
    %c0_i32_0 = arith.constant 0 : i32
    %2 = arith.cmpi ne, %1, %c0_i32_0 : i32
    scf.if %2 {
      %cst_34 = arith.constant -1.000000e+30 : f32
      %60 = vector.broadcast %cst_34 : f32 to vector<32x1x1xf32>
      %c0_35 = arith.constant 0 : index
      %c0_36 = arith.constant 0 : index
      %c0_37 = arith.constant 0 : index
      %61 = vector.load %arg8[%c0_35, %c0_36, %c0_37] : memref<32x1x1xf32, #tpu.memory_space<vmem>>, vector<32x1x1xf32>
      tpu.vector_store %arg8[%c0_35, %c0_36, %c0_37], %60 {strides = array<i32>} : memref<32x1x1xf32, #tpu.memory_space<vmem>>, vector<32x1x1xf32>,
      %cst_38 = arith.constant 0.000000e+00 : f32
      %62 = vector.broadcast %cst_38 : f32 to vector<32x1x1xf32>
      %c0_39 = arith.constant 0 : index
      %c0_40 = arith.constant 0 : index
      %c0_41 = arith.constant 0 : index
      %63 = vector.load %arg9[%c0_39, %c0_40, %c0_41] : memref<32x1x1xf32, #tpu.memory_space<vmem>>, vector<32x1x1xf32>
      tpu.vector_store %arg9[%c0_39, %c0_40, %c0_41], %62 {strides = array<i32>} : memref<32x1x1xf32, #tpu.memory_space<vmem>>, vector<32x1x1xf32>,
      %cst_42 = arith.constant 0.000000e+00 : f32
      %64 = vector.broadcast %cst_42 : f32 to vector<32x128xf32>
      %c0_43 = arith.constant 0 : index
      %c0_44 = arith.constant 0 : index
      %65 = vector.load %arg10[%c0_43, %c0_44] : memref<32x128xf32, #tpu.memory_space<vmem>>, vector<32x128xf32>
      tpu.vector_store %arg10[%c0_43, %c0_44], %64 {strides = array<i32>} : memref<32x128xf32, #tpu.memory_space<vmem>>, vector<32x128xf32>,
    } else {
    }
    %c0 = arith.constant 0 : index
    %c0_1 = arith.constant 0 : index
    %c0_2 = arith.constant 0 : index
    %3 = vector.load %arg2[%c0, %c0_1, %c0_2] : memref<32x16x64xbf16, #tpu.memory_space<vmem>>, vector<32x16x64xbf16>
    %4 = vector.shape_cast %3 : vector<32x16x64xbf16> to vector<512x64xbf16>
    %c0_3 = arith.constant 0 : index
    %c0_4 = arith.constant 0 : index
    %5 = vector.load %arg4[%c0_3, %c0_4] : memref<64x128xbf16, #tpu.memory_space<vmem>>, vector<64x128xbf16>
    %cst = arith.constant dense<0.000000e+00> : vector<512x128xf32>
    %6 = tpu.matmul %4, %5, %cst {dimension_numbers = #tpu.dot_dimension_numbers<[1], [0], [0], [1], [0, 0, 1, 1], [], []>} : vector<512x64xbf16>, vector<64x128xbf16>, vector<512x128xf32> -> vector<512x128xf32>
    %c0_5 = arith.constant 0 : index
    %c0_6 = arith.constant 0 : index
    %7 = vector.load %arg5[%c0_5, %c0_6] : memref<1x128xf32, #tpu.memory_space<vmem>>, vector<1x128xf32>
    %8 = vector.broadcast %7 : vector<1x128xf32> to vector<512x128xf32>
    %9 = arith.addf %6, %8 : vector<512x128xf32>
    %10 = vector.shape_cast %9 : vector<512x128xf32> to vector<32x16x128xf32>
    %c0_7 = arith.constant 0 : index
    %c0_8 = arith.constant 0 : index
    %11 = vector.load %arg6[%c0_7, %c0_8] : memref<1x128xf32, #tpu.memory_space<vmem>>, vector<1x128xf32>
    %12 = vector.shape_cast %11 : vector<1x128xf32> to vector<1x1x128xf32>
    %13 = vector.broadcast %12 : vector<1x1x128xf32> to vector<32x16x128xf32>
    %14 = arith.mulf %10, %13 : vector<32x16x128xf32>
    %cst_9 = arith.constant dense<0.000000e+00> : vector<32x16xf32>
    %15 = vector.multi_reduction <add>, %14, %cst_9 [2] : vector<32x16x128xf32> to vector<32x16xf32>
    %16 = vector.shape_cast %15 : vector<32x16xf32> to vector<32x16x1xf32>
    %c32_i32 = arith.constant 32 : i32
    %17 = arith.muli %arg0, %c32_i32 : i32
    %18 = tpu.assume_multiple %17, 32 : i32
    %19 = arith.index_cast %18 : i32 to index
    %c0_10 = arith.constant 0 : index
    %20 = vector.load %arg3[%19, %c0_10] : memref<64x1xi32, #tpu.memory_space<vmem>>, vector<32x1xi32>
    %21 = vector.shape_cast %20 : vector<32x1xi32> to vector<32x1x1xi32>
    %c16_i32 = arith.constant 16 : i32
    %22 = arith.muli %arg1, %c16_i32 : i32
    %23 = tpu.iota {dimensions = array<i32: 1>} : vector<32x16x1xi32>
    %24 = vector.broadcast %22 : i32 to vector<32x16x1xi32>
    %25 = arith.addi %24, %23 : vector<32x16x1xi32>
    %26 = vector.broadcast %21 : vector<32x1x1xi32> to vector<32x16x1xi32>
    %27 = arith.cmpi slt, %25, %26 : vector<32x16x1xi32>
    %cst_11 = arith.constant 0.000000e+00 : f32
    %cst_12 = arith.constant -1.000000e+05 : f32
    %28 = vector.broadcast %cst_11 : f32 to vector<32x16x1xf32>
    %29 = vector.broadcast %cst_12 : f32 to vector<32x16x1xf32>
    %30 = arith.select %27, %28, %29 : vector<32x16x1xi1>, vector<32x16x1xf32>
    %31 = arith.addf %16, %30 : vector<32x16x1xf32>
    %c0_13 = arith.constant 0 : index
    %c0_14 = arith.constant 0 : index
    %c0_15 = arith.constant 0 : index
    %32 = vector.load %arg8[%c0_13, %c0_14, %c0_15] : memref<32x1x1xf32, #tpu.memory_space<vmem>>, vector<32x1x1xf32>
    %cst_16 = arith.constant dense<0xFF800000> : vector<32x1xf32>
    %33 = vector.multi_reduction <maximumf>, %31, %cst_16 [1] : vector<32x16x1xf32> to vector<32x1xf32>
    %34 = vector.shape_cast %33 : vector<32x1xf32> to vector<32x1x1xf32>
    %35 = arith.maximumf %32, %34 : vector<32x1x1xf32>
    %36 = arith.subf %32, %35 : vector<32x1x1xf32>
    %37 = math.exp %36 : vector<32x1x1xf32>
    %38 = vector.broadcast %35 : vector<32x1x1xf32> to vector<32x16x1xf32>
    %39 = arith.subf %31, %38 : vector<32x16x1xf32>
    %40 = math.exp %39 : vector<32x16x1xf32>
    %c0_17 = arith.constant 0 : index
    %c0_18 = arith.constant 0 : index
    %c0_19 = arith.constant 0 : index
    %41 = vector.load %arg9[%c0_17, %c0_18, %c0_19] : memref<32x1x1xf32, #tpu.memory_space<vmem>>, vector<32x1x1xf32>
    %42 = arith.mulf %37, %41 : vector<32x1x1xf32>
    %cst_20 = arith.constant dense<0.000000e+00> : vector<32x1xf32>
    %43 = vector.multi_reduction <add>, %40, %cst_20 [1] : vector<32x16x1xf32> to vector<32x1xf32>
    %44 = vector.shape_cast %43 : vector<32x1xf32> to vector<32x1x1xf32>
    %45 = arith.addf %42, %44 : vector<32x1x1xf32>
    %c0_21 = arith.constant 0 : index
    %c0_22 = arith.constant 0 : index
    %c0_23 = arith.constant 0 : index
    %46 = vector.load %arg9[%c0_21, %c0_22, %c0_23] : memref<32x1x1xf32, #tpu.memory_space<vmem>>, vector<32x1x1xf32>
    tpu.vector_store %arg9[%c0_21, %c0_22, %c0_23], %45 {strides = array<i32>} : memref<32x1x1xf32, #tpu.memory_space<vmem>>, vector<32x1x1xf32>,
    %47 = vector.shape_cast %37 : vector<32x1x1xf32> to vector<32x1xf32>
    %c0_24 = arith.constant 0 : index
    %c0_25 = arith.constant 0 : index
    %48 = vector.load %arg10[%c0_24, %c0_25] : memref<32x128xf32, #tpu.memory_space<vmem>>, vector<32x128xf32>
    %49 = vector.broadcast %47 : vector<32x1xf32> to vector<32x128xf32>
    %50 = arith.mulf %49, %48 : vector<32x128xf32>
    %51 = vector.broadcast %40 : vector<32x16x1xf32> to vector<32x16x128xf32>
    %52 = arith.mulf %10, %51 : vector<32x16x128xf32>
    %cst_26 = arith.constant dense<0.000000e+00> : vector<32x128xf32>
    %53 = vector.multi_reduction <add>, %52, %cst_26 [1] : vector<32x16x128xf32> to vector<32x128xf32>
    %54 = arith.addf %50, %53 : vector<32x128xf32>
    %c0_27 = arith.constant 0 : index
    %c0_28 = arith.constant 0 : index
    %55 = vector.load %arg10[%c0_27, %c0_28] : memref<32x128xf32, #tpu.memory_space<vmem>>, vector<32x128xf32>
    tpu.vector_store %arg10[%c0_27, %c0_28], %54 {strides = array<i32>} : memref<32x128xf32, #tpu.memory_space<vmem>>, vector<32x128xf32>,
    %c0_29 = arith.constant 0 : index
    %c0_30 = arith.constant 0 : index
    %c0_31 = arith.constant 0 : index
    %56 = vector.load %arg8[%c0_29, %c0_30, %c0_31] : memref<32x1x1xf32, #tpu.memory_space<vmem>>, vector<32x1x1xf32>
    tpu.vector_store %arg8[%c0_29, %c0_30, %c0_31], %35 {strides = array<i32>} : memref<32x1x1xf32, #tpu.memory_space<vmem>>, vector<32x1x1xf32>,
    %c0_i32_32 = arith.constant 0 : i32
    %57 = arith.cmpi eq, %arg1, %c0_i32_32 : i32
    %58 = arith.extui %57 : i1 to i32
    %c0_i32_33 = arith.constant 0 : i32
    %59 = arith.cmpi ne, %58, %c0_i32_33 : i32
    scf.if %59 {
      %c0_34 = arith.constant 0 : index
      %c0_35 = arith.constant 0 : index
      %c0_36 = arith.constant 0 : index
      %60 = vector.load %arg9[%c0_34, %c0_35, %c0_36] : memref<32x1x1xf32, #tpu.memory_space<vmem>>, vector<32x1x1xf32>
      %61 = vector.shape_cast %60 : vector<32x1x1xf32> to vector<32x1xf32>
      %62 = tpu.reciprocal %61 {approx = true} : vector<32x1xf32> -> vector<32x1xf32>
      %c0_37 = arith.constant 0 : index
      %c0_38 = arith.constant 0 : index
      %63 = vector.load %arg10[%c0_37, %c0_38] : memref<32x128xf32, #tpu.memory_space<vmem>>, vector<32x128xf32>
      %64 = vector.broadcast %62 : vector<32x1xf32> to vector<32x128xf32>
      %65 = arith.mulf %63, %64 : vector<32x128xf32>
      %c0_39 = arith.constant 0 : index
      %c0_40 = arith.constant 0 : index
      %66 = vector.load %arg7[%c0_39, %c0_40] : memref<32x128xf32, #tpu.memory_space<vmem>>, vector<32x128xf32>
      tpu.vector_store %arg7[%c0_39, %c0_40], %65 {strides = array<i32>} : memref<32x128xf32, #tpu.memory_space<vmem>>, vector<32x128xf32>,
    } else {
    }
    return
  }
  func.func @transform_0(%arg0: i32, %arg1: i32) -> (i32, i32, i32) {
    %c0_i32 = arith.constant 0 : i32
    %c0_i32_0 = arith.constant 0 : i32
    return %arg0, %arg1, %c0_i32 : i32, i32, i32
  }
  func.func @transform_1(%arg0: i32, %arg1: i32) -> (i32, i32) {
    %c0_i32 = arith.constant 0 : i32
    %c0_i32_0 = arith.constant 0 : i32
    %c0_i32_1 = arith.constant 0 : i32
    return %c0_i32, %c0_i32_0 : i32, i32
  }
  func.func @transform_2(%arg0: i32, %arg1: i32) -> (i32, i32) {
    %c0_i32 = arith.constant 0 : i32
    %c0_i32_0 = arith.constant 0 : i32
    %c0_i32_1 = arith.constant 0 : i32
    return %c0_i32, %c0_i32_0 : i32, i32
  }
  func.func @transform_3(%arg0: i32, %arg1: i32) -> (i32, i32) {
    %c0_i32 = arith.constant 0 : i32
    %c0_i32_0 = arith.constant 0 : i32
    %c0_i32_1 = arith.constant 0 : i32
    return %c0_i32, %c0_i32_0 : i32, i32
  }
  func.func @transform_4(%arg0: i32, %arg1: i32) -> (i32, i32) {
    %c0_i32 = arith.constant 0 : i32
    %c0_i32_0 = arith.constant 0 : i32
    %c0_i32_1 = arith.constant 0 : i32
    return %c0_i32, %c0_i32_0 : i32, i32
  }
  func.func @transform_5(%arg0: i32, %arg1: i32) -> (i32, i32) {
    %c0_i32 = arith.constant 0 : i32
    %c0_i32_0 = arith.constant 0 : i32
    return %arg0, %c0_i32 : i32, i32
  }
}

</mosaic_0001>

<llo_original>
// kernel: tpu_custom_call.1
$region0: #{tpu_custom_call.1}
  #allocation0 [shape = 'u32[]', space=smem, size = 0x4, offset = 0x4, fixed_abs, tag = 'smem constant byte address 0x4 - core index']
  #allocation1 [shape = 'u32[144,128]{1,0:T(1,128)}', space=vmem, size = 0x12000, scoped, tag = 'internal scratch']
  #allocation2 [shape = 'f32[32,1,1]{2,1,0:T(1,128)}', space=vmem, size = 0x4000, scoped, tag = 'scratch operand']
  #allocation3 [shape = 'f32[32,1,1]{2,1,0:T(1,128)}', space=vmem, size = 0x4000, scoped, tag = 'scratch operand']
  #allocation4 [shape = 'f32[32,128]{1,0:T(8,128)}', space=vmem, size = 0x4000, scoped, tag = 'scratch operand']
  %s0 = inlined_call_operand.hbm [shape: bf16[64,16,64], index: 0, kind: input, shape index: {}]
  %s1 = inlined_call_operand.vmem [shape: s32[64,1], index: 1, kind: input, shape index: {}]
  %s2 = inlined_call_operand.vmem [shape: bf16[64,128], index: 2, kind: input, shape index: {}]
  %s3 = inlined_call_operand.vmem [shape: f32[1,128], index: 3, kind: input, shape index: {}]
  %s4 = inlined_call_operand.vmem [shape: f32[1,128], index: 4, kind: input, shape index: {}]
  %s5 = inlined_call_operand.hbm [shape: f32[64,128], index: 5, kind: output, shape index: {}]
  %s6 = sld [smem:[#allocation0]]
  $region65: #{tpu_custom_call.1} parent=0
    _
  %s8 = ssub.s32 1, %s6
  %s9 = scalar_select 0, %s8, %s6
  $region1: #{tpu_custom_call.1} parent=0
    #allocation5 [shape = 'u8[262144]{0}', space=vmem, size = 0x40000, scoped, tag = 'input window, operand 0']
    #allocation6 [shape = 's32[2]{0}', space=sflag, size = 0x8, scoped, tag = 'scoped memory for tpu_custom_call.1']
    #allocation7 [shape = 's32[2]{0}', space=sflag, size = 0x8, scoped, tag = 'scoped memory for tpu_custom_call.1']
    #allocation8 [shape = 'u8[32768]{0}', space=vmem, size = 0x8000, scoped, tag = 'output window, operand 0']
    %10 = vsyncpa [#allocation6], 0
    %s11 = scalar_lea.sflag [#allocation6], 1
    %12 = vsyncpa %s11, 0
    %13 = vsyncpa [#allocation7], 0
    %s14 = scalar_lea.sflag [#allocation7], 1
    %15 = vsyncpa %s14, 0
    loop: start=0, step=1, limit=4
    $region2: #{tpu_custom_call.1} parent=1 // loop_pre_header
      _
    $region3: #{tpu_custom_call.1} parent=1 // loop_header
      %s17 = sphi 0, %s21
      %p18 = scmp.ge.s32.totalorder %s17, 4
      %s24 = sphi 0, %s36
      %s25 = sphi 0, %s32
      %s26 = sphi 0, %s24
      %s27 = sphi 0, %s25
      %s28 = sphi 0, %s26
      %s29 = sphi 0, %s27
      %s41 = sphi 0, %s43
      %s44 = sphi 0, %s41
      %s45 = sphi 0, %s44
      %s61 = sphi 0, %s45
      %s65 = sphi 0, %s65
      %s67 = sphi 0, %s65
      %s68 = sphi 0, %s67
      %s82 = sphi 0, %s68
      %s86 = sphi 0, %s86
      %s88 = sphi 0, %s86
      %s89 = sphi 0, %s88
      %s103 = sphi 0, %s89
      %s107 = sphi 0, %s107
      %s109 = sphi 0, %s107
      %s110 = sphi 0, %s109
      %s124 = sphi 0, %s110
      %s128 = sphi 0, %s128
      %s130 = sphi 0, %s128
      %s131 = sphi 0, %s130
      %s145 = sphi 0, %s131
      %s151 = sphi 0, %s153
      %s154 = sphi 0, %s151
      %s155 = sphi 0, %s154
      %s171 = sphi 0, %s155
    $region4: #{tpu_custom_call.1} parent=1 // loop_header_branch
      %20 = sbr.rel (%p18) target = $region8
    $region5: #{tpu_custom_call.1} parent=1 // loop_body
      %s22 = ssub.s32 %s17, 1
      %s23 = ssub.s32 %s17, 2
      %s30 = sadd.s32 1, %s25
      %p31 = scmp.ge.s32.totalorder %s30, 1
      %s32 = scalar_select %p31, 0, %s30
      %s33 = sadd.s32 1, %s24
      %s34 = scalar_select %p31, %s33, %s24
      %p35 = scmp.ge.s32.totalorder %s34, 2
      %s36 = scalar_select %p35, 0, %s34
      %s37 = ssub.s32 %s24, %s36
      %s38 = ssub.s32 %s25, %s32
      %s39 = sor.u32 %s37, %s38
      %p40 = scmp.eq.s32.totalorder %s39, 0
      %s42 = sadd.s32 %s41, 1
      %s43 = scalar_select %p40, %s41, %s42
      %p46 = pneg %p40
      %p47 = scmp.eq.s32.totalorder %s17, 1
      %p48 = por %p46, %p47
      %p49 = scmp.ne.s32.totalorder %s41, %s44
      %p50 = scmp.eq.s32.totalorder %s17, 0
      %p51 = por %p49, %p50
      %p52 = scmp.ne.s32.totalorder %s41, %s44
      %p53 = scmp.eq.s32.totalorder %s22, 1
      %p54 = por %p52, %p53
      %p55 = scmp.ne.s32.totalorder %s44, %s45
      %p56 = scmp.eq.s32.totalorder %s22, 0
      %p57 = por %p55, %p56
      %p58 = scmp.ne.s32.totalorder %s44, %s45
      %p59 = scmp.eq.s32.totalorder %s23, 1
      %p60 = por %p58, %p59
      %p62 = scmp.ne.s32.totalorder %s45, %s61
      %p63 = scmp.eq.s32.totalorder %s23, 0
      %p64 = por %p62, %p63
      %s66 = sadd.s32 %s65, 1
      %p69 = scmp.eq.s32.totalorder %s17, 1
      %p70 = scmp.ne.s32.totalorder %s65, %s67
      %p71 = scmp.eq.s32.totalorder %s17, 0
      %p72 = por %p70, %p71
      %p73 = scmp.ne.s32.totalorder %s65, %s67
      %p74 = scmp.eq.s32.totalorder %s22, 1
      %p75 = por %p73, %p74
      %p76 = scmp.ne.s32.totalorder %s67, %s68
      %p77 = scmp.eq.s32.totalorder %s22, 0
      %p78 = por %p76, %p77
      %p79 = scmp.ne.s32.totalorder %s67, %s68
      %p80 = scmp.eq.s32.totalorder %s23, 1
      %p81 = por %p79, %p80
      %p83 = scmp.ne.s32.totalorder %s68, %s82
      %p84 = scmp.eq.s32.totalorder %s23, 0
      %p85 = por %p83, %p84
      %s87 = sadd.s32 %s86, 1
      %p90 = scmp.eq.s32.totalorder %s17, 1
      %p91 = scmp.ne.s32.totalorder %s86, %s88
      %p92 = scmp.eq.s32.totalorder %s17, 0
      %p93 = por %p91, %p92
      %p94 = scmp.ne.s32.totalorder %s86, %s88
      %p95 = scmp.eq.s32.totalorder %s22, 1
      %p96 = por %p94, %p95
      %p97 = scmp.ne.s32.totalorder %s88, %s89
      %p98 = scmp.eq.s32.totalorder %s22, 0
      %p99 = por %p97, %p98
      %p100 = scmp.ne.s32.totalorder %s88, %s89
      %p101 = scmp.eq.s32.totalorder %s23, 1
      %p102 = por %p100, %p101
      %p104 = scmp.ne.s32.totalorder %s89, %s103
      %p105 = scmp.eq.s32.totalorder %s23, 0
      %p106 = por %p104, %p105
      %s108 = sadd.s32 %s107, 1
      %p111 = scmp.eq.s32.totalorder %s17, 1
      %p112 = scmp.ne.s32.totalorder %s107, %s109
      %p113 = scmp.eq.s32.totalorder %s17, 0
      %p114 = por %p112, %p113
      %p115 = scmp.ne.s32.totalorder %s107, %s109
      %p116 = scmp.eq.s32.totalorder %s22, 1
      %p117 = por %p115, %p116
      %p118 = scmp.ne.s32.totalorder %s109, %s110
      %p119 = scmp.eq.s32.totalorder %s22, 0
      %p120 = por %p118, %p119
      %p121 = scmp.ne.s32.totalorder %s109, %s110
      %p122 = scmp.eq.s32.totalorder %s23, 1
      %p123 = por %p121, %p122
      %p125 = scmp.ne.s32.totalorder %s110, %s124
      %p126 = scmp.eq.s32.totalorder %s23, 0
      %p127 = por %p125, %p126
      %s129 = sadd.s32 %s128, 1
      %p132 = scmp.eq.s32.totalorder %s17, 1
      %p133 = scmp.ne.s32.totalorder %s128, %s130
      %p134 = scmp.eq.s32.totalorder %s17, 0
      %p135 = por %p133, %p134
      %p136 = scmp.ne.s32.totalorder %s128, %s130
      %p137 = scmp.eq.s32.totalorder %s22, 1
      %p138 = por %p136, %p137
      %p139 = scmp.ne.s32.totalorder %s130, %s131
      %p140 = scmp.eq.s32.totalorder %s22, 0
      %p141 = por %p139, %p140
      %p142 = scmp.ne.s32.totalorder %s130, %s131
      %p143 = scmp.eq.s32.totalorder %s23, 1
      %p144 = por %p142, %p143
      %p146 = scmp.ne.s32.totalorder %s131, %s145
      %p147 = scmp.eq.s32.totalorder %s23, 0
      %p148 = por %p146, %p147
      %s149 = ssub.s32 %s24, %s36
      %p150 = scmp.eq.s32.totalorder %s149, 0
      %s152 = sadd.s32 %s151, 1
      %s153 = scalar_select %p150, %s151, %s152
      %p156 = pneg %p150
      %p157 = scmp.eq.s32.totalorder %s17, 1
      %p158 = por %p156, %p157
      %p159 = scmp.ne.s32.totalorder %s151, %s154
      %p160 = scmp.eq.s32.totalorder %s17, 0
      %p161 = por %p159, %p160
      %p162 = scmp.ne.s32.totalorder %s151, %s154
      %p163 = scmp.eq.s32.totalorder %s22, 1
      %p164 = por %p162, %p163
      %p165 = scmp.ne.s32.totalorder %s154, %s155
      %p166 = scmp.eq.s32.totalorder %s22, 0
      %p167 = por %p165, %p166
      %p168 = scmp.ne.s32.totalorder %s154, %s155
      %p169 = scmp.eq.s32.totalorder %s23, 1
      %p170 = por %p168, %p169
      %p172 = scmp.ne.s32.totalorder %s155, %s171
      %p173 = scmp.eq.s32.totalorder %s23, 0
      %p174 = por %p172, %p173
      %p175 = scmp.le.s32.totalorder 1, %s17
      %p176 = scmp.lt.s32.totalorder %s17, 3
      %p177 = pnand %p175, %p176
      %p178 = pneg %p177
      // Predicated region
      $region9: #{tpu_custom_call.1} parent=5 // pred_check
        _
      $region10: #{tpu_custom_call.1} parent=5 // pred_check_branch
        %180 = sbr.rel (%p177) target = $region12
      $region11: #{tpu_custom_call.1} parent=5 // pred_region
        %s181 = ssub.s32 %s17, 1
        // Predicated region
        $region13: #{tpu_custom_call.1} parent=11 // pred_check
          %p182 = pneg %p78
        $region14: #{tpu_custom_call.1} parent=11 // pred_check_branch
          %184 = sbr.rel (%p182) target = $region16
        $region15: #{tpu_custom_call.1} parent=11 // pred_region
          _
        $region16: #{tpu_custom_call.1} parent=11 // pred_fallthru
          _
        // Predicated region
        $region17: #{tpu_custom_call.1} parent=11 // pred_check
          %p185 = pneg %p99
        $region18: #{tpu_custom_call.1} parent=11 // pred_check_branch
          %187 = sbr.rel (%p185) target = $region20
        $region19: #{tpu_custom_call.1} parent=11 // pred_region
          _
        $region20: #{tpu_custom_call.1} parent=11 // pred_fallthru
          _
        // Predicated region
        $region21: #{tpu_custom_call.1} parent=11 // pred_check
          %p188 = pneg %p120
        $region22: #{tpu_custom_call.1} parent=11 // pred_check_branch
          %190 = sbr.rel (%p188) target = $region24
        $region23: #{tpu_custom_call.1} parent=11 // pred_region
          _
        $region24: #{tpu_custom_call.1} parent=11 // pred_fallthru
          _
        // Predicated region
        $region25: #{tpu_custom_call.1} parent=11 // pred_check
          %p191 = pneg %p141
        $region26: #{tpu_custom_call.1} parent=11 // pred_check_branch
          %193 = sbr.rel (%p191) target = $region28
        $region27: #{tpu_custom_call.1} parent=11 // pred_region
          _
        $region28: #{tpu_custom_call.1} parent=11 // pred_fallthru
          _
      $region12: #{tpu_custom_call.1} parent=5 // pred_fallthru
        _
      %p194 = scmp.lt.s32.totalorder %s17, 2
      // Predicated region
      $region29: #{tpu_custom_call.1} parent=5 // pred_check
        %p195 = pneg %p194
      $region30: #{tpu_custom_call.1} parent=5 // pred_check_branch
        %197 = sbr.rel (%p195) target = $region32
      $region31: #{tpu_custom_call.1} parent=5 // pred_region
        // Predicated region
        $region33: #{tpu_custom_call.1} parent=31 // pred_check
          %p198 = pneg %p51
        $region34: #{tpu_custom_call.1} parent=31 // pred_check_branch
          %200 = sbr.rel (%p198) target = $region36
        $region35: #{tpu_custom_call.1} parent=31 // pred_region
          %s201 = sand.u32 %s41, 1
          %s202 = scalar_lea.sflag [#allocation6], %s201
          %s203 = sand.u32 %s41, 1
          %s204 = smul.addr %s203, 256
          %s205 = scalar_lea.vmem [#allocation5], %s204
          %s206 = smul.u32 32, %s24
          %s207 = smul.u32 2, %s25
          %s209 = ssub.s32 4096, 4096
          %210 = vsyncadd %s202, %s209
          %s211 = smul.addr %s206, 2
          %s212 = sadd.s32 %s207, %s211
          %s213 = smul.addr %s212, 64
          %s214 = scalar_lea.hbm %s0, %s213
          %s215 = sshll.u32 %s205, 4
          %s216 = int_to_ptr.vmem [resolvable:$true] %s215
          %221 = dma.hbm_to_vmem [thread:$0]  %s214, 4096, %s216, %s202, 64, 64, 4
        $region36: #{tpu_custom_call.1} parent=31 // pred_fallthru
          _
      $region32: #{tpu_custom_call.1} parent=5 // pred_fallthru
        _
      %p222 = scmp.le.s32.totalorder 1, %s17
      %p223 = scmp.lt.s32.totalorder %s17, 3
      %p224 = pnand %p222, %p223
      %p225 = pneg %p224
      // Predicated region
      $region37: #{tpu_custom_call.1} parent=5 // pred_check
        _
      $region38: #{tpu_custom_call.1} parent=5 // pred_check_branch
        %227 = sbr.rel (%p224) target = $region40
      $region39: #{tpu_custom_call.1} parent=5 // pred_region
        %s228 = ssub.s32 %s17, 1
        %s229 = sand.u32 %s44, 1
        %s230 = scalar_lea.sflag [#allocation6], %s229
        %s231 = sand.u32 %s44, 1
        %s232 = smul.addr %s231, 256
        %s233 = scalar_lea.vmem [#allocation5], %s232
        // Predicated region
        $region41: #{tpu_custom_call.1} parent=39 // pred_check
          %p234 = pneg %p57
        $region42: #{tpu_custom_call.1} parent=39 // pred_check_branch
          %236 = sbr.rel (%p234) target = $region44
        $region43: #{tpu_custom_call.1} parent=39 // pred_region
          %237 = dma.done %s230, 4096
        $region44: #{tpu_custom_call.1} parent=39 // pred_fallthru
          _
        %s238 = sand.u32 %s44, 1
        %s239 = scalar_lea.sflag [#allocation6], %s238
        %s240 = sand.u32 %s44, 1
        %s241 = smul.addr %s240, 256
        %s242 = scalar_lea.vmem [#allocation5], %s241
        %p243 = pneg %p57
        %p244 = pneg %p54
        %p245 = pneg %p78
        %p246 = pneg %p75
        %p247 = pneg %p99
        %p248 = pneg %p96
        %p249 = pneg %p120
        %p250 = pneg %p117
        %p251 = pneg %p141
        %p252 = pneg %p138
        %p253 = pneg %p167
        %p254 = pneg %p164
        %s255 = sand.u32 %s154, 1
        %s256 = scalar_lea.sflag [#allocation7], %s255
        %s257 = sand.u32 %s154, 1
        %s258 = smul.addr %s257, 32
        %s259 = scalar_lea.vmem [#allocation8], %s258
        %s260 = smul.u32 32, %s26
        %s261 = smul.u32 2, %s27
        %s262 = smul.u32 4, %s26
        %p264 = scmp.eq.s32.totalorder %s27, 0
        // Predicated region
        $region45: #{tpu_custom_call.1} parent=39 // pred_check
          %p265 = pneg %p264
        $region46: #{tpu_custom_call.1} parent=39 // pred_check_branch
          %267 = sbr.rel (%p265) target = $region48
        $region47: #{tpu_custom_call.1} parent=39 // pred_region
          %vm268 = vcmask 0
          %269 = vst.msk [vmem:[#allocation2] sm:$0x1] %vm268, -1e+30
          %270 = vst.msk [vmem:[#allocation2 + $0x1] sm:$0x1] %vm268, -1e+30
          %271 = vst.msk [vmem:[#allocation2 + $0x2] sm:$0x1] %vm268, -1e+30
          %272 = vst.msk [vmem:[#allocation2 + $0x3] sm:$0x1] %vm268, -1e+30
          %273 = vst.msk [vmem:[#allocation2 + $0x4] sm:$0x1] %vm268, -1e+30
          %274 = vst.msk [vmem:[#allocation2 + $0x5] sm:$0x1] %vm268, -1e+30
          %275 = vst.msk [vmem:[#allocation2 + $0x6] sm:$0x1] %vm268, -1e+30
          %276 = vst.msk [vmem:[#allocation2 + $0x7] sm:$0x1] %vm268, -1e+30
          %277 = vst.msk [vmem:[#allocation2 + $0x8] sm:$0x1] %vm268, -1e+30
          %278 = vst.msk [vmem:[#allocation2 + $0x9] sm:$0x1] %vm268, -1e+30
          %279 = vst.msk [vmem:[#allocation2 + $0xa] sm:$0x1] %vm268, -1e+30
          %280 = vst.msk [vmem:[#allocation2 + $0xb] sm:$0x1] %vm268, -1e+30
          %281 = vst.msk [vmem:[#allocation2 + $0xc] sm:$0x1] %vm268, -1e+30
          %282 = vst.msk [vmem:[#allocation2 + $0xd] sm:$0x1] %vm268, -1e+30
          %283 = vst.msk [vmem:[#allocation2 + $0xe] sm:$0x1] %vm268, -1e+30
          %284 = vst.msk [vmem:[#allocation2 + $0xf] sm:$0x1] %vm268, -1e+30
          %285 = vst.msk [vmem:[#allocation2 + $0x10] sm:$0x1] %vm268, -1e+30
          %286 = vst.msk [vmem:[#allocation2 + $0x11] sm:$0x1] %vm268, -1e+30
          %287 = vst.msk [vmem:[#allocation2 + $0x12] sm:$0x1] %vm268, -1e+30
          %288 = vst.msk [vmem:[#allocation2 + $0x13] sm:$0x1] %vm268, -1e+30
          %289 = vst.msk [vmem:[#allocation2 + $0x14] sm:$0x1] %vm268, -1e+30
          %290 = vst.msk [vmem:[#allocation2 + $0x15] sm:$0x1] %vm268, -1e+30
          %291 = vst.msk [vmem:[#allocation2 + $0x16] sm:$0x1] %vm268, -1e+30
          %292 = vst.msk [vmem:[#allocation2 + $0x17] sm:$0x1] %vm268, -1e+30
          %293 = vst.msk [vmem:[#allocation2 + $0x18] sm:$0x1] %vm268, -1e+30
          %294 = vst.msk [vmem:[#allocation2 + $0x19] sm:$0x1] %vm268, -1e+30
          %295 = vst.msk [vmem:[#allocation2 + $0x1a] sm:$0x1] %vm268, -1e+30
          %296 = vst.msk [vmem:[#allocation2 + $0x1b] sm:$0x1] %vm268, -1e+30
          %297 = vst.msk [vmem:[#allocation2 + $0x1c] sm:$0x1] %vm268, -1e+30
          %298 = vst.msk [vmem:[#allocation2 + $0x1d] sm:$0x1] %vm268, -1e+30
          %299 = vst.msk [vmem:[#allocation2 + $0x1e] sm:$0x1] %vm268, -1e+30
          %300 = vst.msk [vmem:[#allocation2 + $0x1f] sm:$0x1] %vm268, -1e+30
          %301 = vst.msk [vmem:[#allocation3] sm:$0x1] %vm268, 0.0
          %302 = vst.msk [vmem:[#allocation3 + $0x1] sm:$0x1] %vm268, 0.0
          %303 = vst.msk [vmem:[#allocation3 + $0x2] sm:$0x1] %vm268, 0.0
          %304 = vst.msk [vmem:[#allocation3 + $0x3] sm:$0x1] %vm268, 0.0
          %305 = vst.msk [vmem:[#allocation3 + $0x4] sm:$0x1] %vm268, 0.0
          %306 = vst.msk [vmem:[#allocation3 + $0x5] sm:$0x1] %vm268, 0.0
          %307 = vst.msk [vmem:[#allocation3 + $0x6] sm:$0x1] %vm268, 0.0
          %308 = vst.msk [vmem:[#allocation3 + $0x7] sm:$0x1] %vm268, 0.0
          %309 = vst.msk [vmem:[#allocation3 + $0x8] sm:$0x1] %vm268, 0.0
          %310 = vst.msk [vmem:[#allocation3 + $0x9] sm:$0x1] %vm268, 0.0
          %311 = vst.msk [vmem:[#allocation3 + $0xa] sm:$0x1] %vm268, 0.0
          %312 = vst.msk [vmem:[#allocation3 + $0xb] sm:$0x1] %vm268, 0.0
          %313 = vst.msk [vmem:[#allocation3 + $0xc] sm:$0x1] %vm268, 0.0
          %314 = vst.msk [vmem:[#allocation3 + $0xd] sm:$0x1] %vm268, 0.0
          %315 = vst.msk [vmem:[#allocation3 + $0xe] sm:$0x1] %vm268, 0.0
          %316 = vst.msk [vmem:[#allocation3 + $0xf] sm:$0x1] %vm268, 0.0
          %317 = vst.msk [vmem:[#allocation3 + $0x10] sm:$0x1] %vm268, 0.0
          %318 = vst.msk [vmem:[#allocation3 + $0x11] sm:$0x1] %vm268, 0.0
          %319 = vst.msk [vmem:[#allocation3 + $0x12] sm:$0x1] %vm268, 0.0
          %320 = vst.msk [vmem:[#allocation3 + $0x13] sm:$0x1] %vm268, 0.0
          %321 = vst.msk [vmem:[#allocation3 + $0x14] sm:$0x1] %vm268, 0.0
          %322 = vst.msk [vmem:[#allocation3 + $0x15] sm:$0x1] %vm268, 0.0
          %323 = vst.msk [vmem:[#allocation3 + $0x16] sm:$0x1] %vm268, 0.0
          %324 = vst.msk [vmem:[#allocation3 + $0x17] sm:$0x1] %vm268, 0.0
          %325 = vst.msk [vmem:[#allocation3 + $0x18] sm:$0x1] %vm268, 0.0
          %326 = vst.msk [vmem:[#allocation3 + $0x19] sm:$0x1] %vm268, 0.0
          %327 = vst.msk [vmem:[#allocation3 + $0x1a] sm:$0x1] %vm268, 0.0
          %328 = vst.msk [vmem:[#allocation3 + $0x1b] sm:$0x1] %vm268, 0.0
          %329 = vst.msk [vmem:[#allocation3 + $0x1c] sm:$0x1] %vm268, 0.0
          %330 = vst.msk [vmem:[#allocation3 + $0x1d] sm:$0x1] %vm268, 0.0
          %331 = vst.msk [vmem:[#allocation3 + $0x1e] sm:$0x1] %vm268, 0.0
          %332 = vst.msk [vmem:[#allocation3 + $0x1f] sm:$0x1] %vm268, 0.0
          %333 = vst [vmem:[#allocation4] sm:$0xff] 0.0
          %334 = vst [vmem:[#allocation4 + $0x8] sm:$0xff] 0.0
          %335 = vst [vmem:[#allocation4 + $0x10] sm:$0xff] 0.0
          %336 = vst [vmem:[#allocation4 + $0x18] sm:$0xff] 0.0
        $region48: #{tpu_custom_call.1} parent=39 // pred_fallthru
          _
        %v337 = vld [vmem:[%s233] sm:$0xf]
        %v338 = vld [vmem:[%s233 + $0x4] sm:$0xf]
        %v339 = vld [vmem:[%s233 + $0x8] sm:$0xf]
        %v340 = vld [vmem:[%s233 + $0xc] sm:$0xf]
        %v341 = vld [vmem:[%s233 + $0x10] sm:$0xf]
        %v342 = vld [vmem:[%s233 + $0x14] sm:$0xf]
        %v343 = vld [vmem:[%s233 + $0x18] sm:$0xf]
        %v344 = vld [vmem:[%s233 + $0x1c] sm:$0xf]
        %v345 = vld [vmem:[%s233 + $0x20] sm:$0xf]
        %v346 = vld [vmem:[%s233 + $0x24] sm:$0xf]
        %v347 = vld [vmem:[%s233 + $0x28] sm:$0xf]
        %v348 = vld [vmem:[%s233 + $0x2c] sm:$0xf]
        %v349 = vld [vmem:[%s233 + $0x30] sm:$0xf]
        %v350 = vld [vmem:[%s233 + $0x34] sm:$0xf]
        %v351 = vld [vmem:[%s233 + $0x38] sm:$0xf]
        %v352 = vld [vmem:[%s233 + $0x3c] sm:$0xf]
        %v353 = vld [vmem:[%s233 + $0x40] sm:$0xf]
        %v354 = vld [vmem:[%s233 + $0x44] sm:$0xf]
        %v355 = vld [vmem:[%s233 + $0x48] sm:$0xf]
        %v356 = vld [vmem:[%s233 + $0x4c] sm:$0xf]
        %v357 = vld [vmem:[%s233 + $0x50] sm:$0xf]
        %v358 = vld [vmem:[%s233 + $0x54] sm:$0xf]
        %v359 = vld [vmem:[%s233 + $0x58] sm:$0xf]
        %v360 = vld [vmem:[%s233 + $0x5c] sm:$0xf]
        %v361 = vld [vmem:[%s233 + $0x60] sm:$0xf]
        %v362 = vld [vmem:[%s233 + $0x64] sm:$0xf]
        %v363 = vld [vmem:[%s233 + $0x68] sm:$0xf]
        %v364 = vld [vmem:[%s233 + $0x6c] sm:$0xf]
        %v365 = vld [vmem:[%s233 + $0x70] sm:$0xf]
        %v366 = vld [vmem:[%s233 + $0x74] sm:$0xf]
        %v367 = vld [vmem:[%s233 + $0x78] sm:$0xf]
        %v368 = vld [vmem:[%s233 + $0x7c] sm:$0xf]
        %v369 = vld [vmem:[%s233 + $0x80] sm:$0xf]
        %v370 = vld [vmem:[%s233 + $0x84] sm:$0xf]
        %v371 = vld [vmem:[%s233 + $0x88] sm:$0xf]
        %v372 = vld [vmem:[%s233 + $0x8c] sm:$0xf]
        %v373 = vld [vmem:[%s233 + $0x90] sm:$0xf]
        %v374 = vld [vmem:[%s233 + $0x94] sm:$0xf]
        %v375 = vld [vmem:[%s233 + $0x98] sm:$0xf]
        %v376 = vld [vmem:[%s233 + $0x9c] sm:$0xf]
        %v377 = vld [vmem:[%s233 + $0xa0] sm:$0xf]
        %v378 = vld [vmem:[%s233 + $0xa4] sm:$0xf]
        %v379 = vld [vmem:[%s233 + $0xa8] sm:$0xf]
        %v380 = vld [vmem:[%s233 + $0xac] sm:$0xf]
        %v381 = vld [vmem:[%s233 + $0xb0] sm:$0xf]
        %v382 = vld [vmem:[%s233 + $0xb4] sm:$0xf]
        %v383 = vld [vmem:[%s233 + $0xb8] sm:$0xf]
        %v384 = vld [vmem:[%s233 + $0xbc] sm:$0xf]
        %v385 = vld [vmem:[%s233 + $0xc0] sm:$0xf]
        %v386 = vld [vmem:[%s233 + $0xc4] sm:$0xf]
        %v387 = vld [vmem:[%s233 + $0xc8] sm:$0xf]
        %v388 = vld [vmem:[%s233 + $0xcc] sm:$0xf]
        %v389 = vld [vmem:[%s233 + $0xd0] sm:$0xf]
        %v390 = vld [vmem:[%s233 + $0xd4] sm:$0xf]
        %v391 = vld [vmem:[%s233 + $0xd8] sm:$0xf]
        %v392 = vld [vmem:[%s233 + $0xdc] sm:$0xf]
        %v393 = vld [vmem:[%s233 + $0xe0] sm:$0xf]
        %v394 = vld [vmem:[%s233 + $0xe4] sm:$0xf]
        %v395 = vld [vmem:[%s233 + $0xe8] sm:$0xf]
        %v396 = vld [vmem:[%s233 + $0xec] sm:$0xf]
        %v397 = vld [vmem:[%s233 + $0xf0] sm:$0xf]
        %v398 = vld [vmem:[%s233 + $0xf4] sm:$0xf]
        %v399 = vld [vmem:[%s233 + $0xf8] sm:$0xf]
        %v400 = vld [vmem:[%s233 + $0xfc] sm:$0xf]
        %v401 = vld [vmem:[%s2] sm:$0xf]
        %v402 = vld [vmem:[%s2 + $0x4] sm:$0xf]
        %v403 = vld [vmem:[%s2 + $0x8] sm:$0xf]
        %v404 = vld [vmem:[%s2 + $0xc] sm:$0xf]
        %v405 = vld [vmem:[%s2 + $0x10] sm:$0xf]
        %v406 = vld [vmem:[%s2 + $0x14] sm:$0xf]
        %v407 = vld [vmem:[%s2 + $0x18] sm:$0xf]
        %v408 = vld [vmem:[%s2 + $0x1c] sm:$0xf]
        %v409 = vld [vmem:[%s3] sm:$0x1]
        %v411 = vlaneseq
        %v412 = vshrl.u32 %v411, 7
        %v413 = vsub.s32 0, %v412
        %v414 = vrot.slane %v409, %v413
        %v480 = vunpack.c.l.b16 %v337
        %v481 = vunpack.c.l.b16 %v338
        %v482 = vunpack.c.l.b16 %v339
        %v483 = vunpack.c.l.b16 %v340
        %v484 = vunpack.c.l.b16 %v341
        %v485 = vunpack.c.l.b16 %v342
        %v486 = vunpack.c.l.b16 %v343
        %v487 = vunpack.c.l.b16 %v344
        %v488 = vunpack.c.l.b16 %v345
        %v489 = vunpack.c.l.b16 %v346
        %v490 = vunpack.c.l.b16 %v347
        %v491 = vunpack.c.l.b16 %v348
        %v492 = vunpack.c.l.b16 %v349
        %v493 = vunpack.c.l.b16 %v350
        %v494 = vunpack.c.l.b16 %v351
        %v495 = vunpack.c.l.b16 %v352
        %v496 = vunpack.c.l.b16 %v353
        %v497 = vunpack.c.l.b16 %v354
        %v498 = vunpack.c.l.b16 %v355
        %v499 = vunpack.c.l.b16 %v356
        %v500 = vunpack.c.l.b16 %v357
        %v501 = vunpack.c.l.b16 %v358
        %v502 = vunpack.c.l.b16 %v359
        %v503 = vunpack.c.l.b16 %v360
        %v504 = vunpack.c.l.b16 %v361
        %v505 = vunpack.c.l.b16 %v362
        %v506 = vunpack.c.l.b16 %v363
        %v507 = vunpack.c.l.b16 %v364
        %v508 = vunpack.c.l.b16 %v365
        %v509 = vunpack.c.l.b16 %v366
        %v510 = vunpack.c.l.b16 %v367
        %v511 = vunpack.c.l.b16 %v368
        %v512 = vunpack.c.l.b16 %v369
        %v513 = vunpack.c.l.b16 %v370
        %v514 = vunpack.c.l.b16 %v371
        %v515 = vunpack.c.l.b16 %v372
        %v516 = vunpack.c.l.b16 %v373
        %v517 = vunpack.c.l.b16 %v374
        %v518 = vunpack.c.l.b16 %v375
        %v519 = vunpack.c.l.b16 %v376
        %v520 = vunpack.c.l.b16 %v377
        %v521 = vunpack.c.l.b16 %v378
        %v522 = vunpack.c.l.b16 %v379
        %v523 = vunpack.c.l.b16 %v380
        %v524 = vunpack.c.l.b16 %v381
        %v525 = vunpack.c.l.b16 %v382
        %v526 = vunpack.c.l.b16 %v383
        %v527 = vunpack.c.l.b16 %v384
        %v528 = vunpack.c.l.b16 %v385
        %v529 = vunpack.c.l.b16 %v386
        %v530 = vunpack.c.l.b16 %v387
        %v531 = vunpack.c.l.b16 %v388
        %v532 = vunpack.c.l.b16 %v389
        %v533 = vunpack.c.l.b16 %v390
        %v534 = vunpack.c.l.b16 %v391
        %v535 = vunpack.c.l.b16 %v392
        %v536 = vunpack.c.l.b16 %v393
        %v537 = vunpack.c.l.b16 %v394
        %v538 = vunpack.c.l.b16 %v395
        %v539 = vunpack.c.l.b16 %v396
        %v540 = vunpack.c.l.b16 %v397
        %v541 = vunpack.c.l.b16 %v398
        %v542 = vunpack.c.l.b16 %v399
        %v543 = vunpack.c.l.b16 %v400
        %v544 = vpack.c.b16 %v481, %v480
        %v545 = vpack.c.b16 %v483, %v482
        %v546 = vpack.c.b16 %v485, %v484
        %v547 = vpack.c.b16 %v487, %v486
        %v548 = vpack.c.b16 %v489, %v488
        %v549 = vpack.c.b16 %v491, %v490
        %v550 = vpack.c.b16 %v493, %v492
        %v551 = vpack.c.b16 %v495, %v494
        %v552 = vpack.c.b16 %v497, %v496
        %v553 = vpack.c.b16 %v499, %v498
        %v554 = vpack.c.b16 %v501, %v500
        %v555 = vpack.c.b16 %v503, %v502
        %v556 = vpack.c.b16 %v505, %v504
        %v557 = vpack.c.b16 %v507, %v506
        %v558 = vpack.c.b16 %v509, %v508
        %v559 = vpack.c.b16 %v511, %v510
        %v560 = vpack.c.b16 %v513, %v512
        %v561 = vpack.c.b16 %v515, %v514
        %v562 = vpack.c.b16 %v517, %v516
        %v563 = vpack.c.b16 %v519, %v518
        %v564 = vpack.c.b16 %v521, %v520
        %v565 = vpack.c.b16 %v523, %v522
        %v566 = vpack.c.b16 %v525, %v524
        %v567 = vpack.c.b16 %v527, %v526
        %v568 = vpack.c.b16 %v529, %v528
        %v569 = vpack.c.b16 %v531, %v530
        %v570 = vpack.c.b16 %v533, %v532
        %v571 = vpack.c.b16 %v535, %v534
        %v572 = vpack.c.b16 %v537, %v536
        %v573 = vpack.c.b16 %v539, %v538
        %v574 = vpack.c.b16 %v541, %v540
        %v575 = vpack.c.b16 %v543, %v542
        %v584 = vunpack.c.l.b16 %v401
        %v585 = vunpack.c.l.b16 %v402
        %v586 = vunpack.c.l.b16 %v403
        %v587 = vunpack.c.l.b16 %v404
        %v588 = vunpack.c.l.b16 %v405
        %v589 = vunpack.c.l.b16 %v406
        %v590 = vunpack.c.l.b16 %v407
        %v591 = vunpack.c.l.b16 %v408
        %v592 = vpack.c.b16 %v585, %v584
        %v593 = vpack.c.b16 %v587, %v586
        %v594 = vpack.c.b16 %v589, %v588
        %v595 = vpack.c.b16 %v591, %v590
        %vm600 = vcmask 523264
        %v602 = vsel %vm600, %v544, 0
        %v605 = vsel %vm600, %v545, 0
        %v608 = vsel %vm600, %v546, 0
        %v611 = vsel %vm600, %v547, 0
        %v614 = vsel %vm600, %v548, 0
        %v617 = vsel %vm600, %v549, 0
        %v620 = vsel %vm600, %v550, 0
        %v623 = vsel %vm600, %v551, 0
        %v626 = vsel %vm600, %v552, 0
        %v629 = vsel %vm600, %v553, 0
        %v632 = vsel %vm600, %v554, 0
        %v635 = vsel %vm600, %v555, 0
        %v638 = vsel %vm600, %v556, 0
        %v641 = vsel %vm600, %v557, 0
        %v644 = vsel %vm600, %v558, 0
        %v647 = vsel %vm600, %v559, 0
        %v650 = vsel %vm600, %v560, 0
        %v653 = vsel %vm600, %v561, 0
        %v656 = vsel %vm600, %v562, 0
        %v659 = vsel %vm600, %v563, 0
        %v662 = vsel %vm600, %v564, 0
        %v665 = vsel %vm600, %v565, 0
        %v668 = vsel %vm600, %v566, 0
        %v671 = vsel %vm600, %v567, 0
        %v674 = vsel %vm600, %v568, 0
        %v677 = vsel %vm600, %v569, 0
        %v680 = vsel %vm600, %v570, 0
        %v683 = vsel %vm600, %v571, 0
        %v686 = vsel %vm600, %v572, 0
        %v689 = vsel %vm600, %v573, 0
        %v692 = vsel %vm600, %v574, 0
        %v695 = vsel %vm600, %v575, 0
        %697 = vmatprep.subr.bf16.mxu0 0
        %698 = vmatpush1.bf16.msra.mxu0 %v592
        %699 = vmatprep.subr.bf16.mxu0 0
        %700 = vmatpush1.bf16.msra.mxu0 %v593
        %701 = vmatprep.subr.bf16.mxu0 0
        %702 = vmatpush1.bf16.msra.mxu0 %v594
        %703 = vmatprep.subr.bf16.mxu0 0
        %704 = vmatpush1.bf16.msra.mxu0 %v595
        %705 = vmatprep.subr.bf16.mxu0 0
        %706 = vmatpush1.bf16.msra.mxu0 0
        %707 = vmatprep.subr.bf16.mxu0 0
        %708 = vmatpush1.bf16.msra.mxu0 0
        %709 = vmatprep.subr.bf16.mxu0 0
        %710 = vmatpush1.bf16.msra.mxu0 0
        %711 = vmatprep.subr.bf16.mxu0 0
        %712 = vmatpush1.bf16.msra.mxu0 0
        %713 = vmatprep.subr.bf16.mxu0 0
        %714 = vmatpush1.bf16.msra.mxu0 0
        %715 = vmatprep.subr.bf16.mxu0 0
        %716 = vmatpush1.bf16.msra.mxu0 0
        %717 = vmatprep.subr.bf16.mxu0 0
        %718 = vmatpush1.bf16.msra.mxu0 0
        %719 = vmatprep.subr.bf16.mxu0 0
        %720 = vmatpush1.bf16.msra.mxu0 0
        %721 = vmatprep.subr.bf16.mxu0 0
        %722 = vmatpush1.bf16.msra.mxu0 0
        %723 = vmatprep.subr.bf16.mxu0 0
        %724 = vmatpush1.bf16.msra.mxu0 0
        %725 = vmatprep.subr.bf16.mxu0 0
        %726 = vmatpush1.bf16.msra.mxu0 0
        %727 = vmatprep.subr.bf16.mxu0 0
        %728 = vmatpush1.bf16.msra.mxu0 0
        %729 = vmatprep.mubr.bf16.mxu0 0
        %730 = vmatmul.mubr.bf16.gmra.mrb[0].mxu0 %v602
        %v731 = vpop.f32.mrb[0].mxu0
        %v732 = vadd.f32 %v414, %v731
        %v733 = vpop.f32.mrb[0].mxu0
        %v734 = vpop.f32.mrb[0].mxu0
        %v735 = vadd.f32 %v414, %v734
        %v736 = vpop.f32.mrb[0].mxu0
        %737 = vmatprep.mubr.bf16.mxu0 0
        %738 = vmatmul.mubr.bf16.gmra.mrb[0].mxu0 %v605
        %v739 = vpop.f32.mrb[0].mxu0
        %v740 = vadd.f32 %v414, %v739
        %v741 = vpop.f32.mrb[0].mxu0
        %v742 = vpop.f32.mrb[0].mxu0
        %v743 = vadd.f32 %v414, %v742
        %v744 = vpop.f32.mrb[0].mxu0
        %745 = vmatprep.mubr.bf16.mxu0 0
        %746 = vmatmul.mubr.bf16.gmra.mrb[0].mxu0 %v608
        %v747 = vpop.f32.mrb[0].mxu0
        %v748 = vadd.f32 %v414, %v747
        %v749 = vpop.f32.mrb[0].mxu0
        %v750 = vpop.f32.mrb[0].mxu0
        %v751 = vadd.f32 %v414, %v750
        %v752 = vpop.f32.mrb[0].mxu0
        %753 = vmatprep.mubr.bf16.mxu0 0
        %754 = vmatmul.mubr.bf16.gmra.mrb[0].mxu0 %v611
        %v755 = vpop.f32.mrb[0].mxu0
        %v756 = vadd.f32 %v414, %v755
        %v757 = vpop.f32.mrb[0].mxu0
        %v758 = vpop.f32.mrb[0].mxu0
        %v759 = vadd.f32 %v414, %v758
        %v760 = vpop.f32.mrb[0].mxu0
        %761 = vmatprep.mubr.bf16.mxu0 0
        %762 = vmatmul.mubr.bf16.gmra.mrb[0].mxu0 %v614
        %v763 = vpop.f32.mrb[0].mxu0
        %v764 = vadd.f32 %v414, %v763
        %v765 = vpop.f32.mrb[0].mxu0
        %v766 = vpop.f32.mrb[0].mxu0
        %v767 = vadd.f32 %v414, %v766
        %v768 = vpop.f32.mrb[0].mxu0
        %769 = vmatprep.mubr.bf16.mxu0 0
        %770 = vmatmul.mubr.bf16.gmra.mrb[0].mxu0 %v617
        %v771 = vpop.f32.mrb[0].mxu0
        %v772 = vadd.f32 %v414, %v771
        %v773 = vpop.f32.mrb[0].mxu0
        %v774 = vpop.f32.mrb[0].mxu0
        %v775 = vadd.f32 %v414, %v774
        %v776 = vpop.f32.mrb[0].mxu0
        %777 = vmatprep.mubr.bf16.mxu0 0
        %778 = vmatmul.mubr.bf16.gmra.mrb[0].mxu0 %v620
        %v779 = vpop.f32.mrb[0].mxu0
        %v780 = vadd.f32 %v414, %v779
        %v781 = vpop.f32.mrb[0].mxu0
        %v782 = vpop.f32.mrb[0].mxu0
        %v783 = vadd.f32 %v414, %v782
        %v784 = vpop.f32.mrb[0].mxu0
        %785 = vmatprep.mubr.bf16.mxu0 0
        %786 = vmatmul.mubr.bf16.gmra.mrb[0].mxu0 %v623
        %v787 = vpop.f32.mrb[0].mxu0
        %v788 = vadd.f32 %v414, %v787
        %v789 = vpop.f32.mrb[0].mxu0
        %v790 = vpop.f32.mrb[0].mxu0
        %v791 = vadd.f32 %v414, %v790
        %v792 = vpop.f32.mrb[0].mxu0
        %793 = vmatprep.mubr.bf16.mxu0 0
        %794 = vmatmul.mubr.bf16.gmra.mrb[0].mxu0 %v626
        %v795 = vpop.f32.mrb[0].mxu0
        %v796 = vadd.f32 %v414, %v795
        %v797 = vpop.f32.mrb[0].mxu0
        %v798 = vpop.f32.mrb[0].mxu0
        %v799 = vadd.f32 %v414, %v798
        %v800 = vpop.f32.mrb[0].mxu0
        %801 = vmatprep.mubr.bf16.mxu0 0
        %802 = vmatmul.mubr.bf16.gmra.mrb[0].mxu0 %v629
        %v803 = vpop.f32.mrb[0].mxu0
        %v804 = vadd.f32 %v414, %v803
        %v805 = vpop.f32.mrb[0].mxu0
        %v806 = vpop.f32.mrb[0].mxu0
        %v807 = vadd.f32 %v414, %v806
        %v808 = vpop.f32.mrb[0].mxu0
        %809 = vmatprep.mubr.bf16.mxu0 0
        %810 = vmatmul.mubr.bf16.gmra.mrb[0].mxu0 %v632
        %v811 = vpop.f32.mrb[0].mxu0
        %v812 = vadd.f32 %v414, %v811
        %v813 = vpop.f32.mrb[0].mxu0
        %v814 = vpop.f32.mrb[0].mxu0
        %v815 = vadd.f32 %v414, %v814
        %v816 = vpop.f32.mrb[0].mxu0
        %817 = vmatprep.mubr.bf16.mxu0 0
        %818 = vmatmul.mubr.bf16.gmra.mrb[0].mxu0 %v635
        %v819 = vpop.f32.mrb[0].mxu0
        %v820 = vadd.f32 %v414, %v819
        %v821 = vpop.f32.mrb[0].mxu0
        %v822 = vpop.f32.mrb[0].mxu0
        %v823 = vadd.f32 %v414, %v822
        %v824 = vpop.f32.mrb[0].mxu0
        %825 = vmatprep.mubr.bf16.mxu0 0
        %826 = vmatmul.mubr.bf16.gmra.mrb[0].mxu0 %v638
        %v827 = vpop.f32.mrb[0].mxu0
        %v828 = vadd.f32 %v414, %v827
        %v829 = vpop.f32.mrb[0].mxu0
        %v830 = vpop.f32.mrb[0].mxu0
        %v831 = vadd.f32 %v414, %v830
        %v832 = vpop.f32.mrb[0].mxu0
        %833 = vmatprep.mubr.bf16.mxu0 0
        %834 = vmatmul.mubr.bf16.gmra.mrb[0].mxu0 %v641
        %v835 = vpop.f32.mrb[0].mxu0
        %v836 = vadd.f32 %v414, %v835
        %v837 = vpop.f32.mrb[0].mxu0
        %v838 = vpop.f32.mrb[0].mxu0
        %v839 = vadd.f32 %v414, %v838
        %v840 = vpop.f32.mrb[0].mxu0
        %841 = vmatprep.mubr.bf16.mxu0 0
        %842 = vmatmul.mubr.bf16.gmra.mrb[0].mxu0 %v644
        %v843 = vpop.f32.mrb[0].mxu0
        %v844 = vadd.f32 %v414, %v843
        %v845 = vpop.f32.mrb[0].mxu0
        %v846 = vpop.f32.mrb[0].mxu0
        %v847 = vadd.f32 %v414, %v846
        %v848 = vpop.f32.mrb[0].mxu0
        %849 = vmatprep.mubr.bf16.mxu0 0
        %850 = vmatmul.mubr.bf16.gmra.mrb[0].mxu0 %v647
        %v851 = vpop.f32.mrb[0].mxu0
        %v852 = vadd.f32 %v414, %v851
        %v853 = vpop.f32.mrb[0].mxu0
        %v854 = vpop.f32.mrb[0].mxu0
        %v855 = vadd.f32 %v414, %v854
        %v856 = vpop.f32.mrb[0].mxu0
        %857 = vmatprep.mubr.bf16.mxu0 0
        %858 = vmatmul.mubr.bf16.gmra.mrb[0].mxu0 %v650
        %v859 = vpop.f32.mrb[0].mxu0
        %v860 = vadd.f32 %v414, %v859
        %v861 = vpop.f32.mrb[0].mxu0
        %v862 = vpop.f32.mrb[0].mxu0
        %v863 = vadd.f32 %v414, %v862
        %v864 = vpop.f32.mrb[0].mxu0
        %865 = vmatprep.mubr.bf16.mxu0 0
        %866 = vmatmul.mubr.bf16.gmra.mrb[0].mxu0 %v653
        %v867 = vpop.f32.mrb[0].mxu0
        %v868 = vadd.f32 %v414, %v867
        %v869 = vpop.f32.mrb[0].mxu0
        %v870 = vpop.f32.mrb[0].mxu0
        %v871 = vadd.f32 %v414, %v870
        %v872 = vpop.f32.mrb[0].mxu0
        %873 = vmatprep.mubr.bf16.mxu0 0
        %874 = vmatmul.mubr.bf16.gmra.mrb[0].mxu0 %v656
        %v875 = vpop.f32.mrb[0].mxu0
        %v876 = vadd.f32 %v414, %v875
        %v877 = vpop.f32.mrb[0].mxu0
        %v878 = vpop.f32.mrb[0].mxu0
        %v879 = vadd.f32 %v414, %v878
        %v880 = vpop.f32.mrb[0].mxu0
        %881 = vmatprep.mubr.bf16.mxu0 0
        %882 = vmatmul.mubr.bf16.gmra.mrb[0].mxu0 %v659
        %v883 = vpop.f32.mrb[0].mxu0
        %v884 = vadd.f32 %v414, %v883
        %v885 = vpop.f32.mrb[0].mxu0
        %v886 = vpop.f32.mrb[0].mxu0
        %v887 = vadd.f32 %v414, %v886
        %v888 = vpop.f32.mrb[0].mxu0
        %889 = vmatprep.mubr.bf16.mxu0 0
        %890 = vmatmul.mubr.bf16.gmra.mrb[0].mxu0 %v662
        %v891 = vpop.f32.mrb[0].mxu0
        %v892 = vadd.f32 %v414, %v891
        %v893 = vpop.f32.mrb[0].mxu0
        %v894 = vpop.f32.mrb[0].mxu0
        %v895 = vadd.f32 %v414, %v894
        %v896 = vpop.f32.mrb[0].mxu0
        %897 = vmatprep.mubr.bf16.mxu0 0
        %898 = vmatmul.mubr.bf16.gmra.mrb[0].mxu0 %v665
        %v899 = vpop.f32.mrb[0].mxu0
        %v900 = vadd.f32 %v414, %v899
        %v901 = vpop.f32.mrb[0].mxu0
        %v902 = vpop.f32.mrb[0].mxu0
        %v903 = vadd.f32 %v414, %v902
        %v904 = vpop.f32.mrb[0].mxu0
        %905 = vmatprep.mubr.bf16.mxu0 0
        %906 = vmatmul.mubr.bf16.gmra.mrb[0].mxu0 %v668
        %v907 = vpop.f32.mrb[0].mxu0
        %v908 = vadd.f32 %v414, %v907
        %v909 = vpop.f32.mrb[0].mxu0
        %v910 = vpop.f32.mrb[0].mxu0
        %v911 = vadd.f32 %v414, %v910
        %v912 = vpop.f32.mrb[0].mxu0
        %913 = vmatprep.mubr.bf16.mxu0 0
        %914 = vmatmul.mubr.bf16.gmra.mrb[0].mxu0 %v671
        %v915 = vpop.f32.mrb[0].mxu0
        %v916 = vadd.f32 %v414, %v915
        %v917 = vpop.f32.mrb[0].mxu0
        %v918 = vpop.f32.mrb[0].mxu0
        %v919 = vadd.f32 %v414, %v918
        %v920 = vpop.f32.mrb[0].mxu0
        %921 = vmatprep.mubr.bf16.mxu0 0
        %922 = vmatmul.mubr.bf16.gmra.mrb[0].mxu0 %v674
        %v923 = vpop.f32.mrb[0].mxu0
        %v924 = vadd.f32 %v414, %v923
        %v925 = vpop.f32.mrb[0].mxu0
        %v926 = vpop.f32.mrb[0].mxu0
        %v927 = vadd.f32 %v414, %v926
        %v928 = vpop.f32.mrb[0].mxu0
        %929 = vmatprep.mubr.bf16.mxu0 0
        %930 = vmatmul.mubr.bf16.gmra.mrb[0].mxu0 %v677
        %v931 = vpop.f32.mrb[0].mxu0
        %v932 = vadd.f32 %v414, %v931
        %v933 = vpop.f32.mrb[0].mxu0
        %v934 = vpop.f32.mrb[0].mxu0
        %v935 = vadd.f32 %v414, %v934
        %v936 = vpop.f32.mrb[0].mxu0
        %937 = vmatprep.mubr.bf16.mxu0 0
        %938 = vmatmul.mubr.bf16.gmra.mrb[0].mxu0 %v680
        %v939 = vpop.f32.mrb[0].mxu0
        %v940 = vadd.f32 %v414, %v939
        %v941 = vpop.f32.mrb[0].mxu0
        %v942 = vpop.f32.mrb[0].mxu0
        %v943 = vadd.f32 %v414, %v942
        %v944 = vpop.f32.mrb[0].mxu0
        %945 = vmatprep.mubr.bf16.mxu0 0
        %946 = vmatmul.mubr.bf16.gmra.mrb[0].mxu0 %v683
        %v947 = vpop.f32.mrb[0].mxu0
        %v948 = vadd.f32 %v414, %v947
        %v949 = vpop.f32.mrb[0].mxu0
        %v950 = vpop.f32.mrb[0].mxu0
        %v951 = vadd.f32 %v414, %v950
        %v952 = vpop.f32.mrb[0].mxu0
        %953 = vmatprep.mubr.bf16.mxu0 0
        %954 = vmatmul.mubr.bf16.gmra.mrb[0].mxu0 %v686
        %v955 = vpop.f32.mrb[0].mxu0
        %v956 = vadd.f32 %v414, %v955
        %v957 = vpop.f32.mrb[0].mxu0
        %v958 = vpop.f32.mrb[0].mxu0
        %v959 = vadd.f32 %v414, %v958
        %v960 = vpop.f32.mrb[0].mxu0
        %961 = vmatprep.mubr.bf16.mxu0 0
        %962 = vmatmul.mubr.bf16.gmra.mrb[0].mxu0 %v689
        %v963 = vpop.f32.mrb[0].mxu0
        %v964 = vadd.f32 %v414, %v963
        %v965 = vpop.f32.mrb[0].mxu0
        %v966 = vpop.f32.mrb[0].mxu0
        %v967 = vadd.f32 %v414, %v966
        %v968 = vpop.f32.mrb[0].mxu0
        %969 = vmatprep.mubr.bf16.mxu0 0
        %970 = vmatmul.mubr.bf16.gmra.mrb[0].mxu0 %v692
        %v971 = vpop.f32.mrb[0].mxu0
        %v972 = vadd.f32 %v414, %v971
        %v973 = vpop.f32.mrb[0].mxu0
        %v974 = vpop.f32.mrb[0].mxu0
        %v975 = vadd.f32 %v414, %v974
        %v976 = vpop.f32.mrb[0].mxu0
        %977 = vmatprep.mubr.bf16.mxu0 0
        %978 = vmatmul.mubr.bf16.gmra.mrb[0].mxu0 %v695
        %v979 = vpop.f32.mrb[0].mxu0
        %v980 = vadd.f32 %v414, %v979
        %v981 = vpop.f32.mrb[0].mxu0
        %v982 = vpop.f32.mrb[0].mxu0
        %v983 = vadd.f32 %v414, %v982
        %v984 = vpop.f32.mrb[0].mxu0
        %985 = vdwg.mxu0
        %v986 = vld [vmem:[%s4] sm:$0x1]
        %v988 = vlaneseq
        %v989 = vshrl.u32 %v988, 7
        %v990 = vsub.s32 0, %v989
        %v991 = vrot.slane %v986, %v990
        %v993 = vmul.f32 %v732, %v991
        %v994 = vmul.f32 %v735, %v991
        %v995 = vmul.f32 %v740, %v991
        %v996 = vmul.f32 %v743, %v991
        %v997 = vmul.f32 %v748, %v991
        %v998 = vmul.f32 %v751, %v991
        %v999 = vmul.f32 %v756, %v991
        %v1000 = vmul.f32 %v759, %v991
        %v1001 = vmul.f32 %v764, %v991
        %v1002 = vmul.f32 %v767, %v991
        %v1003 = vmul.f32 %v772, %v991
        %v1004 = vmul.f32 %v775, %v991
        %v1005 = vmul.f32 %v780, %v991
        %v1006 = vmul.f32 %v783, %v991
        %v1007 = vmul.f32 %v788, %v991
        %v1008 = vmul.f32 %v791, %v991
        %v1009 = vmul.f32 %v796, %v991
        %v1010 = vmul.f32 %v799, %v991
        %v1011 = vmul.f32 %v804, %v991
        %v1012 = vmul.f32 %v807, %v991
        %v1013 = vmul.f32 %v812, %v991
        %v1014 = vmul.f32 %v815, %v991
        %v1015 = vmul.f32 %v820, %v991
        %v1016 = vmul.f32 %v823, %v991
        %v1017 = vmul.f32 %v828, %v991
        %v1018 = vmul.f32 %v831, %v991
        %v1019 = vmul.f32 %v836, %v991
        %v1020 = vmul.f32 %v839, %v991
        %v1021 = vmul.f32 %v844, %v991
        %v1022 = vmul.f32 %v847, %v991
        %v1023 = vmul.f32 %v852, %v991
        %v1024 = vmul.f32 %v855, %v991
        %v1025 = vmul.f32 %v860, %v991
        %v1026 = vmul.f32 %v863, %v991
        %v1027 = vmul.f32 %v868, %v991
        %v1028 = vmul.f32 %v871, %v991
        %v1029 = vmul.f32 %v876, %v991
        %v1030 = vmul.f32 %v879, %v991
        %v1031 = vmul.f32 %v884, %v991
        %v1032 = vmul.f32 %v887, %v991
        %v1033 = vmul.f32 %v892, %v991
        %v1034 = vmul.f32 %v895, %v991
        %v1035 = vmul.f32 %v900, %v991
        %v1036 = vmul.f32 %v903, %v991
        %v1037 = vmul.f32 %v908, %v991
        %v1038 = vmul.f32 %v911, %v991
        %v1039 = vmul.f32 %v916, %v991
        %v1040 = vmul.f32 %v919, %v991
        %v1041 = vmul.f32 %v924, %v991
        %v1042 = vmul.f32 %v927, %v991
        %v1043 = vmul.f32 %v932, %v991
        %v1044 = vmul.f32 %v935, %v991
        %v1045 = vmul.f32 %v940, %v991
        %v1046 = vmul.f32 %v943, %v991
        %v1047 = vmul.f32 %v948, %v991
        %v1048 = vmul.f32 %v951, %v991
        %v1049 = vmul.f32 %v956, %v991
        %v1050 = vmul.f32 %v959, %v991
        %v1051 = vmul.f32 %v964, %v991
        %v1052 = vmul.f32 %v967, %v991
        %v1053 = vmul.f32 %v972, %v991
        %v1054 = vmul.f32 %v975, %v991
        %v1055 = vmul.f32 %v980, %v991
        %v1056 = vmul.f32 %v983, %v991
        %1057 = vadd.xlane.f32.xlu0 %v993
        %v1058 = vpop.xlane.xlu0 %1057
        %1059 = vadd.xlane.f32.xlu0 %v994
        %v1060 = vpop.xlane.xlu0 %1059
        %1061 = vadd.xlane.f32.xlu0 %v995
        %v1062 = vpop.xlane.xlu0 %1061
        %1063 = vadd.xlane.f32.xlu0 %v996
        %v1064 = vpop.xlane.xlu0 %1063
        %1065 = vadd.xlane.f32.xlu0 %v997
        %v1066 = vpop.xlane.xlu0 %1065
        %1067 = vadd.xlane.f32.xlu0 %v998
        %v1068 = vpop.xlane.xlu0 %1067
        %1069 = vadd.xlane.f32.xlu0 %v999
        %v1070 = vpop.xlane.xlu0 %1069
        %1071 = vadd.xlane.f32.xlu0 %v1000
        %v1072 = vpop.xlane.xlu0 %1071
        %1073 = vadd.xlane.f32.xlu0 %v1001
        %v1074 = vpop.xlane.xlu0 %1073
        %1075 = vadd.xlane.f32.xlu0 %v1002
        %v1076 = vpop.xlane.xlu0 %1075
        %1077 = vadd.xlane.f32.xlu0 %v1003
        %v1078 = vpop.xlane.xlu0 %1077
        %1079 = vadd.xlane.f32.xlu0 %v1004
        %v1080 = vpop.xlane.xlu0 %1079
        %1081 = vadd.xlane.f32.xlu0 %v1005
        %v1082 = vpop.xlane.xlu0 %1081
        %1083 = vadd.xlane.f32.xlu0 %v1006
        %v1084 = vpop.xlane.xlu0 %1083
        %1085 = vadd.xlane.f32.xlu0 %v1007
        %v1086 = vpop.xlane.xlu0 %1085
        %1087 = vadd.xlane.f32.xlu0 %v1008
        %v1088 = vpop.xlane.xlu0 %1087
        %1089 = vadd.xlane.f32.xlu0 %v1009
        %v1090 = vpop.xlane.xlu0 %1089
        %1091 = vadd.xlane.f32.xlu0 %v1010
        %v1092 = vpop.xlane.xlu0 %1091
        %1093 = vadd.xlane.f32.xlu0 %v1011
        %v1094 = vpop.xlane.xlu0 %1093
        %1095 = vadd.xlane.f32.xlu0 %v1012
        %v1096 = vpop.xlane.xlu0 %1095
        %1097 = vadd.xlane.f32.xlu0 %v1013
        %v1098 = vpop.xlane.xlu0 %1097
        %1099 = vadd.xlane.f32.xlu0 %v1014
        %v1100 = vpop.xlane.xlu0 %1099
        %1101 = vadd.xlane.f32.xlu0 %v1015
        %v1102 = vpop.xlane.xlu0 %1101
        %1103 = vadd.xlane.f32.xlu0 %v1016
        %v1104 = vpop.xlane.xlu0 %1103
        %1105 = vadd.xlane.f32.xlu0 %v1017
        %v1106 = vpop.xlane.xlu0 %1105
        %1107 = vadd.xlane.f32.xlu0 %v1018
        %v1108 = vpop.xlane.xlu0 %1107
        %1109 = vadd.xlane.f32.xlu0 %v1019
        %v1110 = vpop.xlane.xlu0 %1109
        %1111 = vadd.xlane.f32.xlu0 %v1020
        %v1112 = vpop.xlane.xlu0 %1111
        %1113 = vadd.xlane.f32.xlu0 %v1021
        %v1114 = vpop.xlane.xlu0 %1113
        %1115 = vadd.xlane.f32.xlu0 %v1022
        %v1116 = vpop.xlane.xlu0 %1115
        %1117 = vadd.xlane.f32.xlu0 %v1023
        %v1118 = vpop.xlane.xlu0 %1117
        %1119 = vadd.xlane.f32.xlu0 %v1024
        %v1120 = vpop.xlane.xlu0 %1119
        %1121 = vadd.xlane.f32.xlu0 %v1025
        %v1122 = vpop.xlane.xlu0 %1121
        %1123 = vadd.xlane.f32.xlu0 %v1026
        %v1124 = vpop.xlane.xlu0 %1123
        %1125 = vadd.xlane.f32.xlu0 %v1027
        %v1126 = vpop.xlane.xlu0 %1125
        %1127 = vadd.xlane.f32.xlu0 %v1028
        %v1128 = vpop.xlane.xlu0 %1127
        %1129 = vadd.xlane.f32.xlu0 %v1029
        %v1130 = vpop.xlane.xlu0 %1129
        %1131 = vadd.xlane.f32.xlu0 %v1030
        %v1132 = vpop.xlane.xlu0 %1131
        %1133 = vadd.xlane.f32.xlu0 %v1031
        %v1134 = vpop.xlane.xlu0 %1133
        %1135 = vadd.xlane.f32.xlu0 %v1032
        %v1136 = vpop.xlane.xlu0 %1135
        %1137 = vadd.xlane.f32.xlu0 %v1033
        %v1138 = vpop.xlane.xlu0 %1137
        %1139 = vadd.xlane.f32.xlu0 %v1034
        %v1140 = vpop.xlane.xlu0 %1139
        %1141 = vadd.xlane.f32.xlu0 %v1035
        %v1142 = vpop.xlane.xlu0 %1141
        %1143 = vadd.xlane.f32.xlu0 %v1036
        %v1144 = vpop.xlane.xlu0 %1143
        %1145 = vadd.xlane.f32.xlu0 %v1037
        %v1146 = vpop.xlane.xlu0 %1145
        %1147 = vadd.xlane.f32.xlu0 %v1038
        %v1148 = vpop.xlane.xlu0 %1147
        %1149 = vadd.xlane.f32.xlu0 %v1039
        %v1150 = vpop.xlane.xlu0 %1149
        %1151 = vadd.xlane.f32.xlu0 %v1040
        %v1152 = vpop.xlane.xlu0 %1151
        %1153 = vadd.xlane.f32.xlu0 %v1041
        %v1154 = vpop.xlane.xlu0 %1153
        %1155 = vadd.xlane.f32.xlu0 %v1042
        %v1156 = vpop.xlane.xlu0 %1155
        %1157 = vadd.xlane.f32.xlu0 %v1043
        %v1158 = vpop.xlane.xlu0 %1157
        %1159 = vadd.xlane.f32.xlu0 %v1044
        %v1160 = vpop.xlane.xlu0 %1159
        %1161 = vadd.xlane.f32.xlu0 %v1045
        %v1162 = vpop.xlane.xlu0 %1161
        %1163 = vadd.xlane.f32.xlu0 %v1046
        %v1164 = vpop.xlane.xlu0 %1163
        %1165 = vadd.xlane.f32.xlu0 %v1047
        %v1166 = vpop.xlane.xlu0 %1165
        %1167 = vadd.xlane.f32.xlu0 %v1048
        %v1168 = vpop.xlane.xlu0 %1167
        %1169 = vadd.xlane.f32.xlu0 %v1049
        %v1170 = vpop.xlane.xlu0 %1169
        %1171 = vadd.xlane.f32.xlu0 %v1050
        %v1172 = vpop.xlane.xlu0 %1171
        %1173 = vadd.xlane.f32.xlu0 %v1051
        %v1174 = vpop.xlane.xlu0 %1173
        %1175 = vadd.xlane.f32.xlu0 %v1052
        %v1176 = vpop.xlane.xlu0 %1175
        %1177 = vadd.xlane.f32.xlu0 %v1053
        %v1178 = vpop.xlane.xlu0 %1177
        %1179 = vadd.xlane.f32.xlu0 %v1054
        %v1180 = vpop.xlane.xlu0 %1179
        %1181 = vadd.xlane.f32.xlu0 %v1055
        %v1182 = vpop.xlane.xlu0 %1181
        %1183 = vadd.xlane.f32.xlu0 %v1056
        %v1184 = vpop.xlane.xlu0 %1183
        %s1185 = smul.u32 %s26, 32
        %s1186 = scalar_lea.vmem %s1, %s1185
        %v1187 = vld [vmem:[%s1186] sm:$0xff]
        %v1188 = vld [vmem:[%s1186 + $0x8] sm:$0xff]
        %v1189 = vld [vmem:[%s1186 + $0x10] sm:$0xff]
        %v1190 = vld [vmem:[%s1186 + $0x18] sm:$0xff]
        %v1191 = vcombine.high %v1187, %v1187
        %v1193 = vunpack.c.l.s4 1966171168
        %v1194 = vunpack.c.0.s8 %v1193
        %v1195 = vlaneseq
        %v1196 = vshrl.u32 %v1195, 7
        %v1197 = vsub.s32 %v1194, %v1196
        %v1198 = vrot.slane %v1187, %v1197
        %v1200 = vunpack.c.l.s4 1966171168
        %v1201 = vunpack.c.0.s8 %v1200
        %v1202 = vlaneseq
        %v1203 = vshrl.u32 %v1202, 7
        %v1204 = vsub.s32 %v1201, %v1203
        %v1205 = vrot.slane %v1191, %v1204
        %v1206 = vcombine.high %v1198, %v1198
        %v1207 = vcombine.high %v1205, %v1205
        %v1209 = vunpack.c.l.s4 1966171168
        %v1210 = vunpack.c.0.s8 %v1209
        %v1211 = vlaneseq
        %v1212 = vshrl.u32 %v1211, 7
        %v1213 = vsub.s32 %v1210, %v1212
        %v1214 = vrot.slane %v1198, %v1213
        %v1216 = vunpack.c.l.s4 1966171168
        %v1217 = vunpack.c.0.s8 %v1216
        %v1218 = vlaneseq
        %v1219 = vshrl.u32 %v1218, 7
        %v1220 = vsub.s32 %v1217, %v1219
        %v1221 = vrot.slane %v1205, %v1220
        %v1223 = vunpack.c.l.s4 1966171168
        %v1224 = vunpack.c.0.s8 %v1223
        %v1225 = vlaneseq
        %v1226 = vshrl.u32 %v1225, 7
        %v1227 = vsub.s32 %v1224, %v1226
        %v1228 = vrot.slane %v1206, %v1227
        %v1230 = vunpack.c.l.s4 1966171168
        %v1231 = vunpack.c.0.s8 %v1230
        %v1232 = vlaneseq
        %v1233 = vshrl.u32 %v1232, 7
        %v1234 = vsub.s32 %v1231, %v1233
        %v1235 = vrot.slane %v1207, %v1234
        %v1236 = vcombine.high %v1214, %v1214
        %v1237 = vcombine.high %v1221, %v1221
        %v1238 = vcombine.high %v1228, %v1228
        %v1239 = vcombine.high %v1235, %v1235
        %v1240 = vcombine.high %v1188, %v1188
        %v1242 = vunpack.c.l.s4 1966171168
        %v1243 = vunpack.c.0.s8 %v1242
        %v1244 = vlaneseq
        %v1245 = vshrl.u32 %v1244, 7
        %v1246 = vsub.s32 %v1243, %v1245
        %v1247 = vrot.slane %v1188, %v1246
        %v1249 = vunpack.c.l.s4 1966171168
        %v1250 = vunpack.c.0.s8 %v1249
        %v1251 = vlaneseq
        %v1252 = vshrl.u32 %v1251, 7
        %v1253 = vsub.s32 %v1250, %v1252
        %v1254 = vrot.slane %v1240, %v1253
        %v1255 = vcombine.high %v1247, %v1247
        %v1256 = vcombine.high %v1254, %v1254
        %v1258 = vunpack.c.l.s4 1966171168
        %v1259 = vunpack.c.0.s8 %v1258
        %v1260 = vlaneseq
        %v1261 = vshrl.u32 %v1260, 7
        %v1262 = vsub.s32 %v1259, %v1261
        %v1263 = vrot.slane %v1247, %v1262
        %v1265 = vunpack.c.l.s4 1966171168
        %v1266 = vunpack.c.0.s8 %v1265
        %v1267 = vlaneseq
        %v1268 = vshrl.u32 %v1267, 7
        %v1269 = vsub.s32 %v1266, %v1268
        %v1270 = vrot.slane %v1254, %v1269
        %v1272 = vunpack.c.l.s4 1966171168
        %v1273 = vunpack.c.0.s8 %v1272
        %v1274 = vlaneseq
        %v1275 = vshrl.u32 %v1274, 7
        %v1276 = vsub.s32 %v1273, %v1275
        %v1277 = vrot.slane %v1255, %v1276
        %v1279 = vunpack.c.l.s4 1966171168
        %v1280 = vunpack.c.0.s8 %v1279
        %v1281 = vlaneseq
        %v1282 = vshrl.u32 %v1281, 7
        %v1283 = vsub.s32 %v1280, %v1282
        %v1284 = vrot.slane %v1256, %v1283
        %v1285 = vcombine.high %v1263, %v1263
        %v1286 = vcombine.high %v1270, %v1270
        %v1287 = vcombine.high %v1277, %v1277
        %v1288 = vcombine.high %v1284, %v1284
        %v1289 = vcombine.high %v1189, %v1189
        %v1291 = vunpack.c.l.s4 1966171168
        %v1292 = vunpack.c.0.s8 %v1291
        %v1293 = vlaneseq
        %v1294 = vshrl.u32 %v1293, 7
        %v1295 = vsub.s32 %v1292, %v1294
        %v1296 = vrot.slane %v1189, %v1295
        %v1298 = vunpack.c.l.s4 1966171168
        %v1299 = vunpack.c.0.s8 %v1298
        %v1300 = vlaneseq
        %v1301 = vshrl.u32 %v1300, 7
        %v1302 = vsub.s32 %v1299, %v1301
        %v1303 = vrot.slane %v1289, %v1302
        %v1304 = vcombine.high %v1296, %v1296
        %v1305 = vcombine.high %v1303, %v1303
        %v1307 = vunpack.c.l.s4 1966171168
        %v1308 = vunpack.c.0.s8 %v1307
        %v1309 = vlaneseq
        %v1310 = vshrl.u32 %v1309, 7
        %v1311 = vsub.s32 %v1308, %v1310
        %v1312 = vrot.slane %v1296, %v1311
        %v1314 = vunpack.c.l.s4 1966171168
        %v1315 = vunpack.c.0.s8 %v1314
        %v1316 = vlaneseq
        %v1317 = vshrl.u32 %v1316, 7
        %v1318 = vsub.s32 %v1315, %v1317
        %v1319 = vrot.slane %v1303, %v1318
        %v1321 = vunpack.c.l.s4 1966171168
        %v1322 = vunpack.c.0.s8 %v1321
        %v1323 = vlaneseq
        %v1324 = vshrl.u32 %v1323, 7
        %v1325 = vsub.s32 %v1322, %v1324
        %v1326 = vrot.slane %v1304, %v1325
        %v1328 = vunpack.c.l.s4 1966171168
        %v1329 = vunpack.c.0.s8 %v1328
        %v1330 = vlaneseq
        %v1331 = vshrl.u32 %v1330, 7
        %v1332 = vsub.s32 %v1329, %v1331
        %v1333 = vrot.slane %v1305, %v1332
        %v1334 = vcombine.high %v1312, %v1312
        %v1335 = vcombine.high %v1319, %v1319
        %v1336 = vcombine.high %v1326, %v1326
        %v1337 = vcombine.high %v1333, %v1333
        %v1338 = vcombine.high %v1190, %v1190
        %v1340 = vunpack.c.l.s4 1966171168
        %v1341 = vunpack.c.0.s8 %v1340
        %v1342 = vlaneseq
        %v1343 = vshrl.u32 %v1342, 7
        %v1344 = vsub.s32 %v1341, %v1343
        %v1345 = vrot.slane %v1190, %v1344
        %v1347 = vunpack.c.l.s4 1966171168
        %v1348 = vunpack.c.0.s8 %v1347
        %v1349 = vlaneseq
        %v1350 = vshrl.u32 %v1349, 7
        %v1351 = vsub.s32 %v1348, %v1350
        %v1352 = vrot.slane %v1338, %v1351
        %v1353 = vcombine.high %v1345, %v1345
        %v1354 = vcombine.high %v1352, %v1352
        %v1356 = vunpack.c.l.s4 1966171168
        %v1357 = vunpack.c.0.s8 %v1356
        %v1358 = vlaneseq
        %v1359 = vshrl.u32 %v1358, 7
        %v1360 = vsub.s32 %v1357, %v1359
        %v1361 = vrot.slane %v1345, %v1360
        %v1363 = vunpack.c.l.s4 1966171168
        %v1364 = vunpack.c.0.s8 %v1363
        %v1365 = vlaneseq
        %v1366 = vshrl.u32 %v1365, 7
        %v1367 = vsub.s32 %v1364, %v1366
        %v1368 = vrot.slane %v1352, %v1367
        %v1370 = vunpack.c.l.s4 1966171168
        %v1371 = vunpack.c.0.s8 %v1370
        %v1372 = vlaneseq
        %v1373 = vshrl.u32 %v1372, 7
        %v1374 = vsub.s32 %v1371, %v1373
        %v1375 = vrot.slane %v1353, %v1374
        %v1377 = vunpack.c.l.s4 1966171168
        %v1378 = vunpack.c.0.s8 %v1377
        %v1379 = vlaneseq
        %v1380 = vshrl.u32 %v1379, 7
        %v1381 = vsub.s32 %v1378, %v1380
        %v1382 = vrot.slane %v1354, %v1381
        %v1383 = vcombine.high %v1361, %v1361
        %v1384 = vcombine.high %v1368, %v1368
        %v1385 = vcombine.high %v1375, %v1375
        %v1386 = vcombine.high %v1382, %v1382
        %s1387 = smul.u32 %s27, 16
        %v1388 = vlaneseq
        %v1389 = vshrl.u32 %v1388, 7
        %v1390 = vadd.s32 %v1389, 8
        %v1391 = vstv %s1387
        %v1392 = vadd.s32 %v1391, %v1389
        %v1393 = vadd.s32 %v1391, %v1390
        %v1394 = vlaneseq
        %v1395 = vshrl.u32 %v1394, 7
        %v1396 = vsub.s32 0, %v1395
        %v1397 = vrot.slane %v1214, %v1396
        %v1398 = vlaneseq
        %v1399 = vshrl.u32 %v1398, 7
        %v1400 = vsub.s32 0, %v1399
        %v1401 = vrot.slane %v1228, %v1400
        %v1402 = vlaneseq
        %v1403 = vshrl.u32 %v1402, 7
        %v1404 = vsub.s32 0, %v1403
        %v1405 = vrot.slane %v1236, %v1404
        %v1406 = vlaneseq
        %v1407 = vshrl.u32 %v1406, 7
        %v1408 = vsub.s32 0, %v1407
        %v1409 = vrot.slane %v1238, %v1408
        %v1410 = vlaneseq
        %v1411 = vshrl.u32 %v1410, 7
        %v1412 = vsub.s32 0, %v1411
        %v1413 = vrot.slane %v1221, %v1412
        %v1414 = vlaneseq
        %v1415 = vshrl.u32 %v1414, 7
        %v1416 = vsub.s32 0, %v1415
        %v1417 = vrot.slane %v1235, %v1416
        %v1418 = vlaneseq
        %v1419 = vshrl.u32 %v1418, 7
        %v1420 = vsub.s32 0, %v1419
        %v1421 = vrot.slane %v1237, %v1420
        %v1422 = vlaneseq
        %v1423 = vshrl.u32 %v1422, 7
        %v1424 = vsub.s32 0, %v1423
        %v1425 = vrot.slane %v1239, %v1424
        %v1426 = vlaneseq
        %v1427 = vshrl.u32 %v1426, 7
        %v1428 = vsub.s32 0, %v1427
        %v1429 = vrot.slane %v1263, %v1428
        %v1430 = vlaneseq
        %v1431 = vshrl.u32 %v1430, 7
        %v1432 = vsub.s32 0, %v1431
        %v1433 = vrot.slane %v1277, %v1432
        %v1434 = vlaneseq
        %v1435 = vshrl.u32 %v1434, 7
        %v1436 = vsub.s32 0, %v1435
        %v1437 = vrot.slane %v1285, %v1436
        %v1438 = vlaneseq
        %v1439 = vshrl.u32 %v1438, 7
        %v1440 = vsub.s32 0, %v1439
        %v1441 = vrot.slane %v1287, %v1440
        %v1442 = vlaneseq
        %v1443 = vshrl.u32 %v1442, 7
        %v1444 = vsub.s32 0, %v1443
        %v1445 = vrot.slane %v1270, %v1444
        %v1446 = vlaneseq
        %v1447 = vshrl.u32 %v1446, 7
        %v1448 = vsub.s32 0, %v1447
        %v1449 = vrot.slane %v1284, %v1448
        %v1450 = vlaneseq
        %v1451 = vshrl.u32 %v1450, 7
        %v1452 = vsub.s32 0, %v1451
        %v1453 = vrot.slane %v1286, %v1452
        %v1454 = vlaneseq
        %v1455 = vshrl.u32 %v1454, 7
        %v1456 = vsub.s32 0, %v1455
        %v1457 = vrot.slane %v1288, %v1456
        %v1458 = vlaneseq
        %v1459 = vshrl.u32 %v1458, 7
        %v1460 = vsub.s32 0, %v1459
        %v1461 = vrot.slane %v1312, %v1460
        %v1462 = vlaneseq
        %v1463 = vshrl.u32 %v1462, 7
        %v1464 = vsub.s32 0, %v1463
        %v1465 = vrot.slane %v1326, %v1464
        %v1466 = vlaneseq
        %v1467 = vshrl.u32 %v1466, 7
        %v1468 = vsub.s32 0, %v1467
        %v1469 = vrot.slane %v1334, %v1468
        %v1470 = vlaneseq
        %v1471 = vshrl.u32 %v1470, 7
        %v1472 = vsub.s32 0, %v1471
        %v1473 = vrot.slane %v1336, %v1472
        %v1474 = vlaneseq
        %v1475 = vshrl.u32 %v1474, 7
        %v1476 = vsub.s32 0, %v1475
        %v1477 = vrot.slane %v1319, %v1476
        %v1478 = vlaneseq
        %v1479 = vshrl.u32 %v1478, 7
        %v1480 = vsub.s32 0, %v1479
        %v1481 = vrot.slane %v1333, %v1480
        %v1482 = vlaneseq
        %v1483 = vshrl.u32 %v1482, 7
        %v1484 = vsub.s32 0, %v1483
        %v1485 = vrot.slane %v1335, %v1484
        %v1486 = vlaneseq
        %v1487 = vshrl.u32 %v1486, 7
        %v1488 = vsub.s32 0, %v1487
        %v1489 = vrot.slane %v1337, %v1488
        %v1490 = vlaneseq
        %v1491 = vshrl.u32 %v1490, 7
        %v1492 = vsub.s32 0, %v1491
        %v1493 = vrot.slane %v1361, %v1492
        %v1494 = vlaneseq
        %v1495 = vshrl.u32 %v1494, 7
        %v1496 = vsub.s32 0, %v1495
        %v1497 = vrot.slane %v1375, %v1496
        %v1498 = vlaneseq
        %v1499 = vshrl.u32 %v1498, 7
        %v1500 = vsub.s32 0, %v1499
        %v1501 = vrot.slane %v1383, %v1500
        %v1502 = vlaneseq
        %v1503 = vshrl.u32 %v1502, 7
        %v1504 = vsub.s32 0, %v1503
        %v1505 = vrot.slane %v1385, %v1504
        %v1506 = vlaneseq
        %v1507 = vshrl.u32 %v1506, 7
        %v1508 = vsub.s32 0, %v1507
        %v1509 = vrot.slane %v1368, %v1508
        %v1510 = vlaneseq
        %v1511 = vshrl.u32 %v1510, 7
        %v1512 = vsub.s32 0, %v1511
        %v1513 = vrot.slane %v1382, %v1512
        %v1514 = vlaneseq
        %v1515 = vshrl.u32 %v1514, 7
        %v1516 = vsub.s32 0, %v1515
        %v1517 = vrot.slane %v1384, %v1516
        %v1518 = vlaneseq
        %v1519 = vshrl.u32 %v1518, 7
        %v1520 = vsub.s32 0, %v1519
        %v1521 = vrot.slane %v1386, %v1520
        %vm1522 = vcmp.lt.s32.totalorder %v1392, %v1397
        %vm1523 = vcmp.lt.s32.totalorder %v1393, %v1397
        %vm1524 = vcmp.lt.s32.totalorder %v1392, %v1401
        %vm1525 = vcmp.lt.s32.totalorder %v1393, %v1401
        %vm1526 = vcmp.lt.s32.totalorder %v1392, %v1405
        %vm1527 = vcmp.lt.s32.totalorder %v1393, %v1405
        %vm1528 = vcmp.lt.s32.totalorder %v1392, %v1409
        %vm1529 = vcmp.lt.s32.totalorder %v1393, %v1409
        %vm1530 = vcmp.lt.s32.totalorder %v1392, %v1413
        %vm1531 = vcmp.lt.s32.totalorder %v1393, %v1413
        %vm1532 = vcmp.lt.s32.totalorder %v1392, %v1417
        %vm1533 = vcmp.lt.s32.totalorder %v1393, %v1417
        %vm1534 = vcmp.lt.s32.totalorder %v1392, %v1421
        %vm1535 = vcmp.lt.s32.totalorder %v1393, %v1421
        %vm1536 = vcmp.lt.s32.totalorder %v1392, %v1425
        %vm1537 = vcmp.lt.s32.totalorder %v1393, %v1425
        %vm1538 = vcmp.lt.s32.totalorder %v1392, %v1429
        %vm1539 = vcmp.lt.s32.totalorder %v1393, %v1429
        %vm1540 = vcmp.lt.s32.totalorder %v1392, %v1433
        %vm1541 = vcmp.lt.s32.totalorder %v1393, %v1433
        %vm1542 = vcmp.lt.s32.totalorder %v1392, %v1437
        %vm1543 = vcmp.lt.s32.totalorder %v1393, %v1437
        %vm1544 = vcmp.lt.s32.totalorder %v1392, %v1441
        %vm1545 = vcmp.lt.s32.totalorder %v1393, %v1441
        %vm1546 = vcmp.lt.s32.totalorder %v1392, %v1445
        %vm1547 = vcmp.lt.s32.totalorder %v1393, %v1445
        %vm1548 = vcmp.lt.s32.totalorder %v1392, %v1449
        %vm1549 = vcmp.lt.s32.totalorder %v1393, %v1449
        %vm1550 = vcmp.lt.s32.totalorder %v1392, %v1453
        %vm1551 = vcmp.lt.s32.totalorder %v1393, %v1453
        %vm1552 = vcmp.lt.s32.totalorder %v1392, %v1457
        %vm1553 = vcmp.lt.s32.totalorder %v1393, %v1457
        %vm1554 = vcmp.lt.s32.totalorder %v1392, %v1461
        %vm1555 = vcmp.lt.s32.totalorder %v1393, %v1461
        %vm1556 = vcmp.lt.s32.totalorder %v1392, %v1465
        %vm1557 = vcmp.lt.s32.totalorder %v1393, %v1465
        %vm1558 = vcmp.lt.s32.totalorder %v1392, %v1469
        %vm1559 = vcmp.lt.s32.totalorder %v1393, %v1469
        %vm1560 = vcmp.lt.s32.totalorder %v1392, %v1473
        %vm1561 = vcmp.lt.s32.totalorder %v1393, %v1473
        %vm1562 = vcmp.lt.s32.totalorder %v1392, %v1477
        %vm1563 = vcmp.lt.s32.totalorder %v1393, %v1477
        %vm1564 = vcmp.lt.s32.totalorder %v1392, %v1481
        %vm1565 = vcmp.lt.s32.totalorder %v1393, %v1481
        %vm1566 = vcmp.lt.s32.totalorder %v1392, %v1485
        %vm1567 = vcmp.lt.s32.totalorder %v1393, %v1485
        %vm1568 = vcmp.lt.s32.totalorder %v1392, %v1489
        %vm1569 = vcmp.lt.s32.totalorder %v1393, %v1489
        %vm1570 = vcmp.lt.s32.totalorder %v1392, %v1493
        %vm1571 = vcmp.lt.s32.totalorder %v1393, %v1493
        %vm1572 = vcmp.lt.s32.totalorder %v1392, %v1497
        %vm1573 = vcmp.lt.s32.totalorder %v1393, %v1497
        %vm1574 = vcmp.lt.s32.totalorder %v1392, %v1501
        %vm1575 = vcmp.lt.s32.totalorder %v1393, %v1501
        %vm1576 = vcmp.lt.s32.totalorder %v1392, %v1505
        %vm1577 = vcmp.lt.s32.totalorder %v1393, %v1505
        %vm1578 = vcmp.lt.s32.totalorder %v1392, %v1509
        %vm1579 = vcmp.lt.s32.totalorder %v1393, %v1509
        %vm1580 = vcmp.lt.s32.totalorder %v1392, %v1513
        %vm1581 = vcmp.lt.s32.totalorder %v1393, %v1513
        %vm1582 = vcmp.lt.s32.totalorder %v1392, %v1517
        %vm1583 = vcmp.lt.s32.totalorder %v1393, %v1517
        %vm1584 = vcmp.lt.s32.totalorder %v1392, %v1521
        %vm1585 = vcmp.lt.s32.totalorder %v1393, %v1521
        %v1586 = vsel %vm1522, 0.0, -100000.0
        %v1587 = vsel %vm1523, 0.0, -100000.0
        %v1588 = vsel %vm1524, 0.0, -100000.0
        %v1589 = vsel %vm1525, 0.0, -100000.0
        %v1590 = vsel %vm1526, 0.0, -100000.0
        %v1591 = vsel %vm1527, 0.0, -100000.0
        %v1592 = vsel %vm1528, 0.0, -100000.0
        %v1593 = vsel %vm1529, 0.0, -100000.0
        %v1594 = vsel %vm1530, 0.0, -100000.0
        %v1595 = vsel %vm1531, 0.0, -100000.0
        %v1596 = vsel %vm1532, 0.0, -100000.0
        %v1597 = vsel %vm1533, 0.0, -100000.0
        %v1598 = vsel %vm1534, 0.0, -100000.0
        %v1599 = vsel %vm1535, 0.0, -100000.0
        %v1600 = vsel %vm1536, 0.0, -100000.0
        %v1601 = vsel %vm1537, 0.0, -100000.0
        %v1602 = vsel %vm1538, 0.0, -100000.0
        %v1603 = vsel %vm1539, 0.0, -100000.0
        %v1604 = vsel %vm1540, 0.0, -100000.0
        %v1605 = vsel %vm1541, 0.0, -100000.0
        %v1606 = vsel %vm1542, 0.0, -100000.0
        %v1607 = vsel %vm1543, 0.0, -100000.0
        %v1608 = vsel %vm1544, 0.0, -100000.0
        %v1609 = vsel %vm1545, 0.0, -100000.0
        %v1610 = vsel %vm1546, 0.0, -100000.0
        %v1611 = vsel %vm1547, 0.0, -100000.0
        %v1612 = vsel %vm1548, 0.0, -100000.0
        %v1613 = vsel %vm1549, 0.0, -100000.0
        %v1614 = vsel %vm1550, 0.0, -100000.0
        %v1615 = vsel %vm1551, 0.0, -100000.0
        %v1616 = vsel %vm1552, 0.0, -100000.0
        %v1617 = vsel %vm1553, 0.0, -100000.0
        %v1618 = vsel %vm1554, 0.0, -100000.0
        %v1619 = vsel %vm1555, 0.0, -100000.0
        %v1620 = vsel %vm1556, 0.0, -100000.0
        %v1621 = vsel %vm1557, 0.0, -100000.0
        %v1622 = vsel %vm1558, 0.0, -100000.0
        %v1623 = vsel %vm1559, 0.0, -100000.0
        %v1624 = vsel %vm1560, 0.0, -100000.0
        %v1625 = vsel %vm1561, 0.0, -100000.0
        %v1626 = vsel %vm1562, 0.0, -100000.0
        %v1627 = vsel %vm1563, 0.0, -100000.0
        %v1628 = vsel %vm1564, 0.0, -100000.0
        %v1629 = vsel %vm1565, 0.0, -100000.0
        %v1630 = vsel %vm1566, 0.0, -100000.0
        %v1631 = vsel %vm1567, 0.0, -100000.0
        %v1632 = vsel %vm1568, 0.0, -100000.0
        %v1633 = vsel %vm1569, 0.0, -100000.0
        %v1634 = vsel %vm1570, 0.0, -100000.0
        %v1635 = vsel %vm1571, 0.0, -100000.0
        %v1636 = vsel %vm1572, 0.0, -100000.0
        %v1637 = vsel %vm1573, 0.0, -100000.0
        %v1638 = vsel %vm1574, 0.0, -100000.0
        %v1639 = vsel %vm1575, 0.0, -100000.0
        %v1640 = vsel %vm1576, 0.0, -100000.0
        %v1641 = vsel %vm1577, 0.0, -100000.0
        %v1642 = vsel %vm1578, 0.0, -100000.0
        %v1643 = vsel %vm1579, 0.0, -100000.0
        %v1644 = vsel %vm1580, 0.0, -100000.0
        %v1645 = vsel %vm1581, 0.0, -100000.0
        %v1646 = vsel %vm1582, 0.0, -100000.0
        %v1647 = vsel %vm1583, 0.0, -100000.0
        %v1648 = vsel %vm1584, 0.0, -100000.0
        %v1649 = vsel %vm1585, 0.0, -100000.0
        %v1650 = vadd.f32 %v1058, %v1586
        %v1651 = vadd.f32 %v1060, %v1587
        %v1652 = vadd.f32 %v1062, %v1588
        %v1653 = vadd.f32 %v1064, %v1589
        %v1654 = vadd.f32 %v1066, %v1590
        %v1655 = vadd.f32 %v1068, %v1591
        %v1656 = vadd.f32 %v1070, %v1592
        %v1657 = vadd.f32 %v1072, %v1593
        %v1658 = vadd.f32 %v1074, %v1594
        %v1659 = vadd.f32 %v1076, %v1595
        %v1660 = vadd.f32 %v1078, %v1596
        %v1661 = vadd.f32 %v1080, %v1597
        %v1662 = vadd.f32 %v1082, %v1598
        %v1663 = vadd.f32 %v1084, %v1599
        %v1664 = vadd.f32 %v1086, %v1600
        %v1665 = vadd.f32 %v1088, %v1601
        %v1666 = vadd.f32 %v1090, %v1602
        %v1667 = vadd.f32 %v1092, %v1603
        %v1668 = vadd.f32 %v1094, %v1604
        %v1669 = vadd.f32 %v1096, %v1605
        %v1670 = vadd.f32 %v1098, %v1606
        %v1671 = vadd.f32 %v1100, %v1607
        %v1672 = vadd.f32 %v1102, %v1608
        %v1673 = vadd.f32 %v1104, %v1609
        %v1674 = vadd.f32 %v1106, %v1610
        %v1675 = vadd.f32 %v1108, %v1611
        %v1676 = vadd.f32 %v1110, %v1612
        %v1677 = vadd.f32 %v1112, %v1613
        %v1678 = vadd.f32 %v1114, %v1614
        %v1679 = vadd.f32 %v1116, %v1615
        %v1680 = vadd.f32 %v1118, %v1616
        %v1681 = vadd.f32 %v1120, %v1617
        %v1682 = vadd.f32 %v1122, %v1618
        %v1683 = vadd.f32 %v1124, %v1619
        %v1684 = vadd.f32 %v1126, %v1620
        %v1685 = vadd.f32 %v1128, %v1621
        %v1686 = vadd.f32 %v1130, %v1622
        %v1687 = vadd.f32 %v1132, %v1623
        %v1688 = vadd.f32 %v1134, %v1624
        %v1689 = vadd.f32 %v1136, %v1625
        %v1690 = vadd.f32 %v1138, %v1626
        %v1691 = vadd.f32 %v1140, %v1627
        %v1692 = vadd.f32 %v1142, %v1628
        %v1693 = vadd.f32 %v1144, %v1629
        %v1694 = vadd.f32 %v1146, %v1630
        %v1695 = vadd.f32 %v1148, %v1631
        %v1696 = vadd.f32 %v1150, %v1632
        %v1697 = vadd.f32 %v1152, %v1633
        %v1698 = vadd.f32 %v1154, %v1634
        %v1699 = vadd.f32 %v1156, %v1635
        %v1700 = vadd.f32 %v1158, %v1636
        %v1701 = vadd.f32 %v1160, %v1637
        %v1702 = vadd.f32 %v1162, %v1638
        %v1703 = vadd.f32 %v1164, %v1639
        %v1704 = vadd.f32 %v1166, %v1640
        %v1705 = vadd.f32 %v1168, %v1641
        %v1706 = vadd.f32 %v1170, %v1642
        %v1707 = vadd.f32 %v1172, %v1643
        %v1708 = vadd.f32 %v1174, %v1644
        %v1709 = vadd.f32 %v1176, %v1645
        %v1710 = vadd.f32 %v1178, %v1646
        %v1711 = vadd.f32 %v1180, %v1647
        %v1712 = vadd.f32 %v1182, %v1648
        %v1713 = vadd.f32 %v1184, %v1649
        %v1714 = vld [vmem:[#allocation2] sm:$0x1]
        %v1715 = vld [vmem:[#allocation2 + $0x1] sm:$0x1]
        %v1716 = vld [vmem:[#allocation2 + $0x2] sm:$0x1]
        %v1717 = vld [vmem:[#allocation2 + $0x3] sm:$0x1]
        %v1718 = vld [vmem:[#allocation2 + $0x4] sm:$0x1]
        %v1719 = vld [vmem:[#allocation2 + $0x5] sm:$0x1]
        %v1720 = vld [vmem:[#allocation2 + $0x6] sm:$0x1]
        %v1721 = vld [vmem:[#allocation2 + $0x7] sm:$0x1]
        %v1722 = vld [vmem:[#allocation2 + $0x8] sm:$0x1]
        %v1723 = vld [vmem:[#allocation2 + $0x9] sm:$0x1]
        %v1724 = vld [vmem:[#allocation2 + $0xa] sm:$0x1]
        %v1725 = vld [vmem:[#allocation2 + $0xb] sm:$0x1]
        %v1726 = vld [vmem:[#allocation2 + $0xc] sm:$0x1]
        %v1727 = vld [vmem:[#allocation2 + $0xd] sm:$0x1]
        %v1728 = vld [vmem:[#allocation2 + $0xe] sm:$0x1]
        %v1729 = vld [vmem:[#allocation2 + $0xf] sm:$0x1]
        %v1730 = vld [vmem:[#allocation2 + $0x10] sm:$0x1]
        %v1731 = vld [vmem:[#allocation2 + $0x11] sm:$0x1]
        %v1732 = vld [vmem:[#allocation2 + $0x12] sm:$0x1]
        %v1733 = vld [vmem:[#allocation2 + $0x13] sm:$0x1]
        %v1734 = vld [vmem:[#allocation2 + $0x14] sm:$0x1]
        %v1735 = vld [vmem:[#allocation2 + $0x15] sm:$0x1]
        %v1736 = vld [vmem:[#allocation2 + $0x16] sm:$0x1]
        %v1737 = vld [vmem:[#allocation2 + $0x17] sm:$0x1]
        %v1738 = vld [vmem:[#allocation2 + $0x18] sm:$0x1]
        %v1739 = vld [vmem:[#allocation2 + $0x19] sm:$0x1]
        %v1740 = vld [vmem:[#allocation2 + $0x1a] sm:$0x1]
        %v1741 = vld [vmem:[#allocation2 + $0x1b] sm:$0x1]
        %v1742 = vld [vmem:[#allocation2 + $0x1c] sm:$0x1]
        %v1743 = vld [vmem:[#allocation2 + $0x1d] sm:$0x1]
        %v1744 = vld [vmem:[#allocation2 + $0x1e] sm:$0x1]
        %v1745 = vld [vmem:[#allocation2 + $0x1f] sm:$0x1]
        %vm1746 = vcmask 7168
        %v1747 = vsel %vm1746, %v1650, -inf
        %v1748 = vsel %vm1746, %v1651, -inf
        %v1749 = vmax.f32 %v1747, %v1748
        %v1750 = vrot.slane %v1749, 4
        %v1751 = vmax.f32 %v1749, %v1750
        %v1752 = vrot.slane %v1751, 2
        %v1753 = vmax.f32 %v1751, %v1752
        %v1754 = vrot.slane %v1753, 1
        %v1755 = vmax.f32 %v1753, %v1754
        %v1756 = vsel %vm1746, %v1652, -inf
        %v1757 = vsel %vm1746, %v1653, -inf
        %v1758 = vmax.f32 %v1756, %v1757
        %v1759 = vrot.slane %v1758, 4
        %v1760 = vmax.f32 %v1758, %v1759
        %v1761 = vrot.slane %v1760, 2
        %v1762 = vmax.f32 %v1760, %v1761
        %v1763 = vrot.slane %v1762, 1
        %v1764 = vmax.f32 %v1762, %v1763
        %v1765 = vsel %vm1746, %v1654, -inf
        %v1766 = vsel %vm1746, %v1655, -inf
        %v1767 = vmax.f32 %v1765, %v1766
        %v1768 = vrot.slane %v1767, 4
        %v1769 = vmax.f32 %v1767, %v1768
        %v1770 = vrot.slane %v1769, 2
        %v1771 = vmax.f32 %v1769, %v1770
        %v1772 = vrot.slane %v1771, 1
        %v1773 = vmax.f32 %v1771, %v1772
        %v1774 = vsel %vm1746, %v1656, -inf
        %v1775 = vsel %vm1746, %v1657, -inf
        %v1776 = vmax.f32 %v1774, %v1775
        %v1777 = vrot.slane %v1776, 4
        %v1778 = vmax.f32 %v1776, %v1777
        %v1779 = vrot.slane %v1778, 2
        %v1780 = vmax.f32 %v1778, %v1779
        %v1781 = vrot.slane %v1780, 1
        %v1782 = vmax.f32 %v1780, %v1781
        %v1783 = vsel %vm1746, %v1658, -inf
        %v1784 = vsel %vm1746, %v1659, -inf
        %v1785 = vmax.f32 %v1783, %v1784
        %v1786 = vrot.slane %v1785, 4
        %v1787 = vmax.f32 %v1785, %v1786
        %v1788 = vrot.slane %v1787, 2
        %v1789 = vmax.f32 %v1787, %v1788
        %v1790 = vrot.slane %v1789, 1
        %v1791 = vmax.f32 %v1789, %v1790
        %v1792 = vsel %vm1746, %v1660, -inf
        %v1793 = vsel %vm1746, %v1661, -inf
        %v1794 = vmax.f32 %v1792, %v1793
        %v1795 = vrot.slane %v1794, 4
        %v1796 = vmax.f32 %v1794, %v1795
        %v1797 = vrot.slane %v1796, 2
        %v1798 = vmax.f32 %v1796, %v1797
        %v1799 = vrot.slane %v1798, 1
        %v1800 = vmax.f32 %v1798, %v1799
        %v1801 = vsel %vm1746, %v1662, -inf
        %v1802 = vsel %vm1746, %v1663, -inf
        %v1803 = vmax.f32 %v1801, %v1802
        %v1804 = vrot.slane %v1803, 4
        %v1805 = vmax.f32 %v1803, %v1804
        %v1806 = vrot.slane %v1805, 2
        %v1807 = vmax.f32 %v1805, %v1806
        %v1808 = vrot.slane %v1807, 1
        %v1809 = vmax.f32 %v1807, %v1808
        %v1810 = vsel %vm1746, %v1664, -inf
        %v1811 = vsel %vm1746, %v1665, -inf
        %v1812 = vmax.f32 %v1810, %v1811
        %v1813 = vrot.slane %v1812, 4
        %v1814 = vmax.f32 %v1812, %v1813
        %v1815 = vrot.slane %v1814, 2
        %v1816 = vmax.f32 %v1814, %v1815
        %v1817 = vrot.slane %v1816, 1
        %v1818 = vmax.f32 %v1816, %v1817
        %v1819 = vsel %vm1746, %v1666, -inf
        %v1820 = vsel %vm1746, %v1667, -inf
        %v1821 = vmax.f32 %v1819, %v1820
        %v1822 = vrot.slane %v1821, 4
        %v1823 = vmax.f32 %v1821, %v1822
        %v1824 = vrot.slane %v1823, 2
        %v1825 = vmax.f32 %v1823, %v1824
        %v1826 = vrot.slane %v1825, 1
        %v1827 = vmax.f32 %v1825, %v1826
        %v1828 = vsel %vm1746, %v1668, -inf
        %v1829 = vsel %vm1746, %v1669, -inf
        %v1830 = vmax.f32 %v1828, %v1829
        %v1831 = vrot.slane %v1830, 4
        %v1832 = vmax.f32 %v1830, %v1831
        %v1833 = vrot.slane %v1832, 2
        %v1834 = vmax.f32 %v1832, %v1833
        %v1835 = vrot.slane %v1834, 1
        %v1836 = vmax.f32 %v1834, %v1835
        %v1837 = vsel %vm1746, %v1670, -inf
        %v1838 = vsel %vm1746, %v1671, -inf
        %v1839 = vmax.f32 %v1837, %v1838
        %v1840 = vrot.slane %v1839, 4
        %v1841 = vmax.f32 %v1839, %v1840
        %v1842 = vrot.slane %v1841, 2
        %v1843 = vmax.f32 %v1841, %v1842
        %v1844 = vrot.slane %v1843, 1
        %v1845 = vmax.f32 %v1843, %v1844
        %v1846 = vsel %vm1746, %v1672, -inf
        %v1847 = vsel %vm1746, %v1673, -inf
        %v1848 = vmax.f32 %v1846, %v1847
        %v1849 = vrot.slane %v1848, 4
        %v1850 = vmax.f32 %v1848, %v1849
        %v1851 = vrot.slane %v1850, 2
        %v1852 = vmax.f32 %v1850, %v1851
        %v1853 = vrot.slane %v1852, 1
        %v1854 = vmax.f32 %v1852, %v1853
        %v1855 = vsel %vm1746, %v1674, -inf
        %v1856 = vsel %vm1746, %v1675, -inf
        %v1857 = vmax.f32 %v1855, %v1856
        %v1858 = vrot.slane %v1857, 4
        %v1859 = vmax.f32 %v1857, %v1858
        %v1860 = vrot.slane %v1859, 2
        %v1861 = vmax.f32 %v1859, %v1860
        %v1862 = vrot.slane %v1861, 1
        %v1863 = vmax.f32 %v1861, %v1862
        %v1864 = vsel %vm1746, %v1676, -inf
        %v1865 = vsel %vm1746, %v1677, -inf
        %v1866 = vmax.f32 %v1864, %v1865
        %v1867 = vrot.slane %v1866, 4
        %v1868 = vmax.f32 %v1866, %v1867
        %v1869 = vrot.slane %v1868, 2
        %v1870 = vmax.f32 %v1868, %v1869
        %v1871 = vrot.slane %v1870, 1
        %v1872 = vmax.f32 %v1870, %v1871
        %v1873 = vsel %vm1746, %v1678, -inf
        %v1874 = vsel %vm1746, %v1679, -inf
        %v1875 = vmax.f32 %v1873, %v1874
        %v1876 = vrot.slane %v1875, 4
        %v1877 = vmax.f32 %v1875, %v1876
        %v1878 = vrot.slane %v1877, 2
        %v1879 = vmax.f32 %v1877, %v1878
        %v1880 = vrot.slane %v1879, 1
        %v1881 = vmax.f32 %v1879, %v1880
        %v1882 = vsel %vm1746, %v1680, -inf
        %v1883 = vsel %vm1746, %v1681, -inf
        %v1884 = vmax.f32 %v1882, %v1883
        %v1885 = vrot.slane %v1884, 4
        %v1886 = vmax.f32 %v1884, %v1885
        %v1887 = vrot.slane %v1886, 2
        %v1888 = vmax.f32 %v1886, %v1887
        %v1889 = vrot.slane %v1888, 1
        %v1890 = vmax.f32 %v1888, %v1889
        %v1891 = vsel %vm1746, %v1682, -inf
        %v1892 = vsel %vm1746, %v1683, -inf
        %v1893 = vmax.f32 %v1891, %v1892
        %v1894 = vrot.slane %v1893, 4
        %v1895 = vmax.f32 %v1893, %v1894
        %v1896 = vrot.slane %v1895, 2
        %v1897 = vmax.f32 %v1895, %v1896
        %v1898 = vrot.slane %v1897, 1
        %v1899 = vmax.f32 %v1897, %v1898
        %v1900 = vsel %vm1746, %v1684, -inf
        %v1901 = vsel %vm1746, %v1685, -inf
        %v1902 = vmax.f32 %v1900, %v1901
        %v1903 = vrot.slane %v1902, 4
        %v1904 = vmax.f32 %v1902, %v1903
        %v1905 = vrot.slane %v1904, 2
        %v1906 = vmax.f32 %v1904, %v1905
        %v1907 = vrot.slane %v1906, 1
        %v1908 = vmax.f32 %v1906, %v1907
        %v1909 = vsel %vm1746, %v1686, -inf
        %v1910 = vsel %vm1746, %v1687, -inf
        %v1911 = vmax.f32 %v1909, %v1910
        %v1912 = vrot.slane %v1911, 4
        %v1913 = vmax.f32 %v1911, %v1912
        %v1914 = vrot.slane %v1913, 2
        %v1915 = vmax.f32 %v1913, %v1914
        %v1916 = vrot.slane %v1915, 1
        %v1917 = vmax.f32 %v1915, %v1916
        %v1918 = vsel %vm1746, %v1688, -inf
        %v1919 = vsel %vm1746, %v1689, -inf
        %v1920 = vmax.f32 %v1918, %v1919
        %v1921 = vrot.slane %v1920, 4
        %v1922 = vmax.f32 %v1920, %v1921
        %v1923 = vrot.slane %v1922, 2
        %v1924 = vmax.f32 %v1922, %v1923
        %v1925 = vrot.slane %v1924, 1
        %v1926 = vmax.f32 %v1924, %v1925
        %v1927 = vsel %vm1746, %v1690, -inf
        %v1928 = vsel %vm1746, %v1691, -inf
        %v1929 = vmax.f32 %v1927, %v1928
        %v1930 = vrot.slane %v1929, 4
        %v1931 = vmax.f32 %v1929, %v1930
        %v1932 = vrot.slane %v1931, 2
        %v1933 = vmax.f32 %v1931, %v1932
        %v1934 = vrot.slane %v1933, 1
        %v1935 = vmax.f32 %v1933, %v1934
        %v1936 = vsel %vm1746, %v1692, -inf
        %v1937 = vsel %vm1746, %v1693, -inf
        %v1938 = vmax.f32 %v1936, %v1937
        %v1939 = vrot.slane %v1938, 4
        %v1940 = vmax.f32 %v1938, %v1939
        %v1941 = vrot.slane %v1940, 2
        %v1942 = vmax.f32 %v1940, %v1941
        %v1943 = vrot.slane %v1942, 1
        %v1944 = vmax.f32 %v1942, %v1943
        %v1945 = vsel %vm1746, %v1694, -inf
        %v1946 = vsel %vm1746, %v1695, -inf
        %v1947 = vmax.f32 %v1945, %v1946
        %v1948 = vrot.slane %v1947, 4
        %v1949 = vmax.f32 %v1947, %v1948
        %v1950 = vrot.slane %v1949, 2
        %v1951 = vmax.f32 %v1949, %v1950
        %v1952 = vrot.slane %v1951, 1
        %v1953 = vmax.f32 %v1951, %v1952
        %v1954 = vsel %vm1746, %v1696, -inf
        %v1955 = vsel %vm1746, %v1697, -inf
        %v1956 = vmax.f32 %v1954, %v1955
        %v1957 = vrot.slane %v1956, 4
        %v1958 = vmax.f32 %v1956, %v1957
        %v1959 = vrot.slane %v1958, 2
        %v1960 = vmax.f32 %v1958, %v1959
        %v1961 = vrot.slane %v1960, 1
        %v1962 = vmax.f32 %v1960, %v1961
        %v1963 = vsel %vm1746, %v1698, -inf
        %v1964 = vsel %vm1746, %v1699, -inf
        %v1965 = vmax.f32 %v1963, %v1964
        %v1966 = vrot.slane %v1965, 4
        %v1967 = vmax.f32 %v1965, %v1966
        %v1968 = vrot.slane %v1967, 2
        %v1969 = vmax.f32 %v1967, %v1968
        %v1970 = vrot.slane %v1969, 1
        %v1971 = vmax.f32 %v1969, %v1970
        %v1972 = vsel %vm1746, %v1700, -inf
        %v1973 = vsel %vm1746, %v1701, -inf
        %v1974 = vmax.f32 %v1972, %v1973
        %v1975 = vrot.slane %v1974, 4
        %v1976 = vmax.f32 %v1974, %v1975
        %v1977 = vrot.slane %v1976, 2
        %v1978 = vmax.f32 %v1976, %v1977
        %v1979 = vrot.slane %v1978, 1
        %v1980 = vmax.f32 %v1978, %v1979
        %v1981 = vsel %vm1746, %v1702, -inf
        %v1982 = vsel %vm1746, %v1703, -inf
        %v1983 = vmax.f32 %v1981, %v1982
        %v1984 = vrot.slane %v1983, 4
        %v1985 = vmax.f32 %v1983, %v1984
        %v1986 = vrot.slane %v1985, 2
        %v1987 = vmax.f32 %v1985, %v1986
        %v1988 = vrot.slane %v1987, 1
        %v1989 = vmax.f32 %v1987, %v1988
        %v1990 = vsel %vm1746, %v1704, -inf
        %v1991 = vsel %vm1746, %v1705, -inf
        %v1992 = vmax.f32 %v1990, %v1991
        %v1993 = vrot.slane %v1992, 4
        %v1994 = vmax.f32 %v1992, %v1993
        %v1995 = vrot.slane %v1994, 2
        %v1996 = vmax.f32 %v1994, %v1995
        %v1997 = vrot.slane %v1996, 1
        %v1998 = vmax.f32 %v1996, %v1997
        %v1999 = vsel %vm1746, %v1706, -inf
        %v2000 = vsel %vm1746, %v1707, -inf
        %v2001 = vmax.f32 %v1999, %v2000
        %v2002 = vrot.slane %v2001, 4
        %v2003 = vmax.f32 %v2001, %v2002
        %v2004 = vrot.slane %v2003, 2
        %v2005 = vmax.f32 %v2003, %v2004
        %v2006 = vrot.slane %v2005, 1
        %v2007 = vmax.f32 %v2005, %v2006
        %v2008 = vsel %vm1746, %v1708, -inf
        %v2009 = vsel %vm1746, %v1709, -inf
        %v2010 = vmax.f32 %v2008, %v2009
        %v2011 = vrot.slane %v2010, 4
        %v2012 = vmax.f32 %v2010, %v2011
        %v2013 = vrot.slane %v2012, 2
        %v2014 = vmax.f32 %v2012, %v2013
        %v2015 = vrot.slane %v2014, 1
        %v2016 = vmax.f32 %v2014, %v2015
        %v2017 = vsel %vm1746, %v1710, -inf
        %v2018 = vsel %vm1746, %v1711, -inf
        %v2019 = vmax.f32 %v2017, %v2018
        %v2020 = vrot.slane %v2019, 4
        %v2021 = vmax.f32 %v2019, %v2020
        %v2022 = vrot.slane %v2021, 2
        %v2023 = vmax.f32 %v2021, %v2022
        %v2024 = vrot.slane %v2023, 1
        %v2025 = vmax.f32 %v2023, %v2024
        %v2026 = vsel %vm1746, %v1712, -inf
        %v2027 = vsel %vm1746, %v1713, -inf
        %v2028 = vmax.f32 %v2026, %v2027
        %v2029 = vrot.slane %v2028, 4
        %v2030 = vmax.f32 %v2028, %v2029
        %v2031 = vrot.slane %v2030, 2
        %v2032 = vmax.f32 %v2030, %v2031
        %v2033 = vrot.slane %v2032, 1
        %v2034 = vmax.f32 %v2032, %v2033
        %v2035 = vmax.f32 %v1714, %v1755
        %v2036 = vmax.f32 %v1715, %v1764
        %v2037 = vmax.f32 %v1716, %v1773
        %v2038 = vmax.f32 %v1717, %v1782
        %v2039 = vmax.f32 %v1718, %v1791
        %v2040 = vmax.f32 %v1719, %v1800
        %v2041 = vmax.f32 %v1720, %v1809
        %v2042 = vmax.f32 %v1721, %v1818
        %v2043 = vmax.f32 %v1722, %v1827
        %v2044 = vmax.f32 %v1723, %v1836
        %v2045 = vmax.f32 %v1724, %v1845
        %v2046 = vmax.f32 %v1725, %v1854
        %v2047 = vmax.f32 %v1726, %v1863
        %v2048 = vmax.f32 %v1727, %v1872
        %v2049 = vmax.f32 %v1728, %v1881
        %v2050 = vmax.f32 %v1729, %v1890
        %v2051 = vmax.f32 %v1730, %v1899
        %v2052 = vmax.f32 %v1731, %v1908
        %v2053 = vmax.f32 %v1732, %v1917
        %v2054 = vmax.f32 %v1733, %v1926
        %v2055 = vmax.f32 %v1734, %v1935
        %v2056 = vmax.f32 %v1735, %v1944
        %v2057 = vmax.f32 %v1736, %v1953
        %v2058 = vmax.f32 %v1737, %v1962
        %v2059 = vmax.f32 %v1738, %v1971
        %v2060 = vmax.f32 %v1739, %v1980
        %v2061 = vmax.f32 %v1740, %v1989
        %v2062 = vmax.f32 %v1741, %v1998
        %v2063 = vmax.f32 %v1742, %v2007
        %v2064 = vmax.f32 %v1743, %v2016
        %v2065 = vmax.f32 %v1744, %v2025
        %v2066 = vmax.f32 %v1745, %v2034
        %v2067 = vsub.f32 %v1714, %v2035
        %v2068 = vsub.f32 %v1715, %v2036
        %v2069 = vsub.f32 %v1716, %v2037
        %v2070 = vsub.f32 %v1717, %v2038
        %v2071 = vsub.f32 %v1718, %v2039
        %v2072 = vsub.f32 %v1719, %v2040
        %v2073 = vsub.f32 %v1720, %v2041
        %v2074 = vsub.f32 %v1721, %v2042
        %v2075 = vsub.f32 %v1722, %v2043
        %v2076 = vsub.f32 %v1723, %v2044
        %v2077 = vsub.f32 %v1724, %v2045
        %v2078 = vsub.f32 %v1725, %v2046
        %v2079 = vsub.f32 %v1726, %v2047
        %v2080 = vsub.f32 %v1727, %v2048
        %v2081 = vsub.f32 %v1728, %v2049
        %v2082 = vsub.f32 %v1729, %v2050
        %v2083 = vsub.f32 %v1730, %v2051
        %v2084 = vsub.f32 %v1731, %v2052
        %v2085 = vsub.f32 %v1732, %v2053
        %v2086 = vsub.f32 %v1733, %v2054
        %v2087 = vsub.f32 %v1734, %v2055
        %v2088 = vsub.f32 %v1735, %v2056
        %v2089 = vsub.f32 %v1736, %v2057
        %v2090 = vsub.f32 %v1737, %v2058
        %v2091 = vsub.f32 %v1738, %v2059
        %v2092 = vsub.f32 %v1739, %v2060
        %v2093 = vsub.f32 %v1740, %v2061
        %v2094 = vsub.f32 %v1741, %v2062
        %v2095 = vsub.f32 %v1742, %v2063
        %v2096 = vsub.f32 %v1743, %v2064
        %v2097 = vsub.f32 %v1744, %v2065
        %v2098 = vsub.f32 %v1745, %v2066
        %v2099 = vmul.f32 %v2067, 1.442695
        %v2100 = vpow.pop %v2099
        %v2101 = vmul.f32 %v2068, 1.442695
        %v2102 = vpow.pop %v2101
        %v2103 = vmul.f32 %v2069, 1.442695
        %v2104 = vpow.pop %v2103
        %v2105 = vmul.f32 %v2070, 1.442695
        %v2106 = vpow.pop %v2105
        %v2107 = vmul.f32 %v2071, 1.442695
        %v2108 = vpow.pop %v2107
        %v2109 = vmul.f32 %v2072, 1.442695
        %v2110 = vpow.pop %v2109
        %v2111 = vmul.f32 %v2073, 1.442695
        %v2112 = vpow.pop %v2111
        %v2113 = vmul.f32 %v2074, 1.442695
        %v2114 = vpow.pop %v2113
        %v2115 = vmul.f32 %v2075, 1.442695
        %v2116 = vpow.pop %v2115
        %v2117 = vmul.f32 %v2076, 1.442695
        %v2118 = vpow.pop %v2117
        %v2119 = vmul.f32 %v2077, 1.442695
        %v2120 = vpow.pop %v2119
        %v2121 = vmul.f32 %v2078, 1.442695
        %v2122 = vpow.pop %v2121
        %v2123 = vmul.f32 %v2079, 1.442695
        %v2124 = vpow.pop %v2123
        %v2125 = vmul.f32 %v2080, 1.442695
        %v2126 = vpow.pop %v2125
        %v2127 = vmul.f32 %v2081, 1.442695
        %v2128 = vpow.pop %v2127
        %v2129 = vmul.f32 %v2082, 1.442695
        %v2130 = vpow.pop %v2129
        %v2131 = vmul.f32 %v2083, 1.442695
        %v2132 = vpow.pop %v2131
        %v2133 = vmul.f32 %v2084, 1.442695
        %v2134 = vpow.pop %v2133
        %v2135 = vmul.f32 %v2085, 1.442695
        %v2136 = vpow.pop %v2135
        %v2137 = vmul.f32 %v2086, 1.442695
        %v2138 = vpow.pop %v2137
        %v2139 = vmul.f32 %v2087, 1.442695
        %v2140 = vpow.pop %v2139
        %v2141 = vmul.f32 %v2088, 1.442695
        %v2142 = vpow.pop %v2141
        %v2143 = vmul.f32 %v2089, 1.442695
        %v2144 = vpow.pop %v2143
        %v2145 = vmul.f32 %v2090, 1.442695
        %v2146 = vpow.pop %v2145
        %v2147 = vmul.f32 %v2091, 1.442695
        %v2148 = vpow.pop %v2147
        %v2149 = vmul.f32 %v2092, 1.442695
        %v2150 = vpow.pop %v2149
        %v2151 = vmul.f32 %v2093, 1.442695
        %v2152 = vpow.pop %v2151
        %v2153 = vmul.f32 %v2094, 1.442695
        %v2154 = vpow.pop %v2153
        %v2155 = vmul.f32 %v2095, 1.442695
        %v2156 = vpow.pop %v2155
        %v2157 = vmul.f32 %v2096, 1.442695
        %v2158 = vpow.pop %v2157
        %v2159 = vmul.f32 %v2097, 1.442695
        %v2160 = vpow.pop %v2159
        %v2161 = vmul.f32 %v2098, 1.442695
        %v2162 = vpow.pop %v2161
        %v2195 = vlaneseq
        %v2196 = vshrl.u32 %v2195, 7
        %v2197 = vsub.s32 0, %v2196
        %v2198 = vrot.slane %v2035, %v2197
        %v2199 = vlaneseq
        %v2200 = vshrl.u32 %v2199, 7
        %v2201 = vsub.s32 0, %v2200
        %v2202 = vrot.slane %v2036, %v2201
        %v2203 = vlaneseq
        %v2204 = vshrl.u32 %v2203, 7
        %v2205 = vsub.s32 0, %v2204
        %v2206 = vrot.slane %v2037, %v2205
        %v2207 = vlaneseq
        %v2208 = vshrl.u32 %v2207, 7
        %v2209 = vsub.s32 0, %v2208
        %v2210 = vrot.slane %v2038, %v2209
        %v2211 = vlaneseq
        %v2212 = vshrl.u32 %v2211, 7
        %v2213 = vsub.s32 0, %v2212
        %v2214 = vrot.slane %v2039, %v2213
        %v2215 = vlaneseq
        %v2216 = vshrl.u32 %v2215, 7
        %v2217 = vsub.s32 0, %v2216
        %v2218 = vrot.slane %v2040, %v2217
        %v2219 = vlaneseq
        %v2220 = vshrl.u32 %v2219, 7
        %v2221 = vsub.s32 0, %v2220
        %v2222 = vrot.slane %v2041, %v2221
        %v2223 = vlaneseq
        %v2224 = vshrl.u32 %v2223, 7
        %v2225 = vsub.s32 0, %v2224
        %v2226 = vrot.slane %v2042, %v2225
        %v2227 = vlaneseq
        %v2228 = vshrl.u32 %v2227, 7
        %v2229 = vsub.s32 0, %v2228
        %v2230 = vrot.slane %v2043, %v2229
        %v2231 = vlaneseq
        %v2232 = vshrl.u32 %v2231, 7
        %v2233 = vsub.s32 0, %v2232
        %v2234 = vrot.slane %v2044, %v2233
        %v2235 = vlaneseq
        %v2236 = vshrl.u32 %v2235, 7
        %v2237 = vsub.s32 0, %v2236
        %v2238 = vrot.slane %v2045, %v2237
        %v2239 = vlaneseq
        %v2240 = vshrl.u32 %v2239, 7
        %v2241 = vsub.s32 0, %v2240
        %v2242 = vrot.slane %v2046, %v2241
        %v2243 = vlaneseq
        %v2244 = vshrl.u32 %v2243, 7
        %v2245 = vsub.s32 0, %v2244
        %v2246 = vrot.slane %v2047, %v2245
        %v2247 = vlaneseq
        %v2248 = vshrl.u32 %v2247, 7
        %v2249 = vsub.s32 0, %v2248
        %v2250 = vrot.slane %v2048, %v2249
        %v2251 = vlaneseq
        %v2252 = vshrl.u32 %v2251, 7
        %v2253 = vsub.s32 0, %v2252
        %v2254 = vrot.slane %v2049, %v2253
        %v2255 = vlaneseq
        %v2256 = vshrl.u32 %v2255, 7
        %v2257 = vsub.s32 0, %v2256
        %v2258 = vrot.slane %v2050, %v2257
        %v2259 = vlaneseq
        %v2260 = vshrl.u32 %v2259, 7
        %v2261 = vsub.s32 0, %v2260
        %v2262 = vrot.slane %v2051, %v2261
        %v2263 = vlaneseq
        %v2264 = vshrl.u32 %v2263, 7
        %v2265 = vsub.s32 0, %v2264
        %v2266 = vrot.slane %v2052, %v2265
        %v2267 = vlaneseq
        %v2268 = vshrl.u32 %v2267, 7
        %v2269 = vsub.s32 0, %v2268
        %v2270 = vrot.slane %v2053, %v2269
        %v2271 = vlaneseq
        %v2272 = vshrl.u32 %v2271, 7
        %v2273 = vsub.s32 0, %v2272
        %v2274 = vrot.slane %v2054, %v2273
        %v2275 = vlaneseq
        %v2276 = vshrl.u32 %v2275, 7
        %v2277 = vsub.s32 0, %v2276
        %v2278 = vrot.slane %v2055, %v2277
        %v2279 = vlaneseq
        %v2280 = vshrl.u32 %v2279, 7
        %v2281 = vsub.s32 0, %v2280
        %v2282 = vrot.slane %v2056, %v2281
        %v2283 = vlaneseq
        %v2284 = vshrl.u32 %v2283, 7
        %v2285 = vsub.s32 0, %v2284
        %v2286 = vrot.slane %v2057, %v2285
        %v2287 = vlaneseq
        %v2288 = vshrl.u32 %v2287, 7
        %v2289 = vsub.s32 0, %v2288
        %v2290 = vrot.slane %v2058, %v2289
        %v2291 = vlaneseq
        %v2292 = vshrl.u32 %v2291, 7
        %v2293 = vsub.s32 0, %v2292
        %v2294 = vrot.slane %v2059, %v2293
        %v2295 = vlaneseq
        %v2296 = vshrl.u32 %v2295, 7
        %v2297 = vsub.s32 0, %v2296
        %v2298 = vrot.slane %v2060, %v2297
        %v2299 = vlaneseq
        %v2300 = vshrl.u32 %v2299, 7
        %v2301 = vsub.s32 0, %v2300
        %v2302 = vrot.slane %v2061, %v2301
        %v2303 = vlaneseq
        %v2304 = vshrl.u32 %v2303, 7
        %v2305 = vsub.s32 0, %v2304
        %v2306 = vrot.slane %v2062, %v2305
        %v2307 = vlaneseq
        %v2308 = vshrl.u32 %v2307, 7
        %v2309 = vsub.s32 0, %v2308
        %v2310 = vrot.slane %v2063, %v2309
        %v2311 = vlaneseq
        %v2312 = vshrl.u32 %v2311, 7
        %v2313 = vsub.s32 0, %v2312
        %v2314 = vrot.slane %v2064, %v2313
        %v2315 = vlaneseq
        %v2316 = vshrl.u32 %v2315, 7
        %v2317 = vsub.s32 0, %v2316
        %v2318 = vrot.slane %v2065, %v2317
        %v2319 = vlaneseq
        %v2320 = vshrl.u32 %v2319, 7
        %v2321 = vsub.s32 0, %v2320
        %v2322 = vrot.slane %v2066, %v2321
        %v2355 = vsub.f32 %v1650, %v2198
        %v2356 = vsub.f32 %v1651, %v2198
        %v2357 = vsub.f32 %v1652, %v2202
        %v2358 = vsub.f32 %v1653, %v2202
        %v2359 = vsub.f32 %v1654, %v2206
        %v2360 = vsub.f32 %v1655, %v2206
        %v2361 = vsub.f32 %v1656, %v2210
        %v2362 = vsub.f32 %v1657, %v2210
        %v2363 = vsub.f32 %v1658, %v2214
        %v2364 = vsub.f32 %v1659, %v2214
        %v2365 = vsub.f32 %v1660, %v2218
        %v2366 = vsub.f32 %v1661, %v2218
        %v2367 = vsub.f32 %v1662, %v2222
        %v2368 = vsub.f32 %v1663, %v2222
        %v2369 = vsub.f32 %v1664, %v2226
        %v2370 = vsub.f32 %v1665, %v2226
        %v2371 = vsub.f32 %v1666, %v2230
        %v2372 = vsub.f32 %v1667, %v2230
        %v2373 = vsub.f32 %v1668, %v2234
        %v2374 = vsub.f32 %v1669, %v2234
        %v2375 = vsub.f32 %v1670, %v2238
        %v2376 = vsub.f32 %v1671, %v2238
        %v2377 = vsub.f32 %v1672, %v2242
        %v2378 = vsub.f32 %v1673, %v2242
        %v2379 = vsub.f32 %v1674, %v2246
        %v2380 = vsub.f32 %v1675, %v2246
        %v2381 = vsub.f32 %v1676, %v2250
        %v2382 = vsub.f32 %v1677, %v2250
        %v2383 = vsub.f32 %v1678, %v2254
        %v2384 = vsub.f32 %v1679, %v2254
        %v2385 = vsub.f32 %v1680, %v2258
        %v2386 = vsub.f32 %v1681, %v2258
        %v2387 = vsub.f32 %v1682, %v2262
        %v2388 = vsub.f32 %v1683, %v2262
        %v2389 = vsub.f32 %v1684, %v2266
        %v2390 = vsub.f32 %v1685, %v2266
        %v2391 = vsub.f32 %v1686, %v2270
        %v2392 = vsub.f32 %v1687, %v2270
        %v2393 = vsub.f32 %v1688, %v2274
        %v2394 = vsub.f32 %v1689, %v2274
        %v2395 = vsub.f32 %v1690, %v2278
        %v2396 = vsub.f32 %v1691, %v2278
        %v2397 = vsub.f32 %v1692, %v2282
        %v2398 = vsub.f32 %v1693, %v2282
        %v2399 = vsub.f32 %v1694, %v2286
        %v2400 = vsub.f32 %v1695, %v2286
        %v2401 = vsub.f32 %v1696, %v2290
        %v2402 = vsub.f32 %v1697, %v2290
        %v2403 = vsub.f32 %v1698, %v2294
        %v2404 = vsub.f32 %v1699, %v2294
        %v2405 = vsub.f32 %v1700, %v2298
        %v2406 = vsub.f32 %v1701, %v2298
        %v2407 = vsub.f32 %v1702, %v2302
        %v2408 = vsub.f32 %v1703, %v2302
        %v2409 = vsub.f32 %v1704, %v2306
        %v2410 = vsub.f32 %v1705, %v2306
        %v2411 = vsub.f32 %v1706, %v2310
        %v2412 = vsub.f32 %v1707, %v2310
        %v2413 = vsub.f32 %v1708, %v2314
        %v2414 = vsub.f32 %v1709, %v2314
        %v2415 = vsub.f32 %v1710, %v2318
        %v2416 = vsub.f32 %v1711, %v2318
        %v2417 = vsub.f32 %v1712, %v2322
        %v2418 = vsub.f32 %v1713, %v2322
        %v2419 = vmul.f32 %v2355, 1.442695
        %v2420 = vpow.pop %v2419
        %v2421 = vmul.f32 %v2356, 1.442695
        %v2422 = vpow.pop %v2421
        %v2423 = vmul.f32 %v2357, 1.442695
        %v2424 = vpow.pop %v2423
        %v2425 = vmul.f32 %v2358, 1.442695
        %v2426 = vpow.pop %v2425
        %v2427 = vmul.f32 %v2359, 1.442695
        %v2428 = vpow.pop %v2427
        %v2429 = vmul.f32 %v2360, 1.442695
        %v2430 = vpow.pop %v2429
        %v2431 = vmul.f32 %v2361, 1.442695
        %v2432 = vpow.pop %v2431
        %v2433 = vmul.f32 %v2362, 1.442695
        %v2434 = vpow.pop %v2433
        %v2435 = vmul.f32 %v2363, 1.442695
        %v2436 = vpow.pop %v2435
        %v2437 = vmul.f32 %v2364, 1.442695
        %v2438 = vpow.pop %v2437
        %v2439 = vmul.f32 %v2365, 1.442695
        %v2440 = vpow.pop %v2439
        %v2441 = vmul.f32 %v2366, 1.442695
        %v2442 = vpow.pop %v2441
        %v2443 = vmul.f32 %v2367, 1.442695
        %v2444 = vpow.pop %v2443
        %v2445 = vmul.f32 %v2368, 1.442695
        %v2446 = vpow.pop %v2445
        %v2447 = vmul.f32 %v2369, 1.442695
        %v2448 = vpow.pop %v2447
        %v2449 = vmul.f32 %v2370, 1.442695
        %v2450 = vpow.pop %v2449
        %v2451 = vmul.f32 %v2371, 1.442695
        %v2452 = vpow.pop %v2451
        %v2453 = vmul.f32 %v2372, 1.442695
        %v2454 = vpow.pop %v2453
        %v2455 = vmul.f32 %v2373, 1.442695
        %v2456 = vpow.pop %v2455
        %v2457 = vmul.f32 %v2374, 1.442695
        %v2458 = vpow.pop %v2457
        %v2459 = vmul.f32 %v2375, 1.442695
        %v2460 = vpow.pop %v2459
        %v2461 = vmul.f32 %v2376, 1.442695
        %v2462 = vpow.pop %v2461
        %v2463 = vmul.f32 %v2377, 1.442695
        %v2464 = vpow.pop %v2463
        %v2465 = vmul.f32 %v2378, 1.442695
        %v2466 = vpow.pop %v2465
        %v2467 = vmul.f32 %v2379, 1.442695
        %v2468 = vpow.pop %v2467
        %v2469 = vmul.f32 %v2380, 1.442695
        %v2470 = vpow.pop %v2469
        %v2471 = vmul.f32 %v2381, 1.442695
        %v2472 = vpow.pop %v2471
        %v2473 = vmul.f32 %v2382, 1.442695
        %v2474 = vpow.pop %v2473
        %v2475 = vmul.f32 %v2383, 1.442695
        %v2476 = vpow.pop %v2475
        %v2477 = vmul.f32 %v2384, 1.442695
        %v2478 = vpow.pop %v2477
        %v2479 = vmul.f32 %v2385, 1.442695
        %v2480 = vpow.pop %v2479
        %v2481 = vmul.f32 %v2386, 1.442695
        %v2482 = vpow.pop %v2481
        %v2483 = vmul.f32 %v2387, 1.442695
        %v2484 = vpow.pop %v2483
        %v2485 = vmul.f32 %v2388, 1.442695
        %v2486 = vpow.pop %v2485
        %v2487 = vmul.f32 %v2389, 1.442695
        %v2488 = vpow.pop %v2487
        %v2489 = vmul.f32 %v2390, 1.442695
        %v2490 = vpow.pop %v2489
        %v2491 = vmul.f32 %v2391, 1.442695
        %v2492 = vpow.pop %v2491
        %v2493 = vmul.f32 %v2392, 1.442695
        %v2494 = vpow.pop %v2493
        %v2495 = vmul.f32 %v2393, 1.442695
        %v2496 = vpow.pop %v2495
        %v2497 = vmul.f32 %v2394, 1.442695
        %v2498 = vpow.pop %v2497
        %v2499 = vmul.f32 %v2395, 1.442695
        %v2500 = vpow.pop %v2499
        %v2501 = vmul.f32 %v2396, 1.442695
        %v2502 = vpow.pop %v2501
        %v2503 = vmul.f32 %v2397, 1.442695
        %v2504 = vpow.pop %v2503
        %v2505 = vmul.f32 %v2398, 1.442695
        %v2506 = vpow.pop %v2505
        %v2507 = vmul.f32 %v2399, 1.442695
        %v2508 = vpow.pop %v2507
        %v2509 = vmul.f32 %v2400, 1.442695
        %v2510 = vpow.pop %v2509
        %v2511 = vmul.f32 %v2401, 1.442695
        %v2512 = vpow.pop %v2511
        %v2513 = vmul.f32 %v2402, 1.442695
        %v2514 = vpow.pop %v2513
        %v2515 = vmul.f32 %v2403, 1.442695
        %v2516 = vpow.pop %v2515
        %v2517 = vmul.f32 %v2404, 1.442695
        %v2518 = vpow.pop %v2517
        %v2519 = vmul.f32 %v2405, 1.442695
        %v2520 = vpow.pop %v2519
        %v2521 = vmul.f32 %v2406, 1.442695
        %v2522 = vpow.pop %v2521
        %v2523 = vmul.f32 %v2407, 1.442695
        %v2524 = vpow.pop %v2523
        %v2525 = vmul.f32 %v2408, 1.442695
        %v2526 = vpow.pop %v2525
        %v2527 = vmul.f32 %v2409, 1.442695
        %v2528 = vpow.pop %v2527
        %v2529 = vmul.f32 %v2410, 1.442695
        %v2530 = vpow.pop %v2529
        %v2531 = vmul.f32 %v2411, 1.442695
        %v2532 = vpow.pop %v2531
        %v2533 = vmul.f32 %v2412, 1.442695
        %v2534 = vpow.pop %v2533
        %v2535 = vmul.f32 %v2413, 1.442695
        %v2536 = vpow.pop %v2535
        %v2537 = vmul.f32 %v2414, 1.442695
        %v2538 = vpow.pop %v2537
        %v2539 = vmul.f32 %v2415, 1.442695
        %v2540 = vpow.pop %v2539
        %v2541 = vmul.f32 %v2416, 1.442695
        %v2542 = vpow.pop %v2541
        %v2543 = vmul.f32 %v2417, 1.442695
        %v2544 = vpow.pop %v2543
        %v2545 = vmul.f32 %v2418, 1.442695
        %v2546 = vpow.pop %v2545
        %v2547 = vld [vmem:[#allocation3] sm:$0x1]
        %v2548 = vld [vmem:[#allocation3 + $0x1] sm:$0x1]
        %v2549 = vld [vmem:[#allocation3 + $0x2] sm:$0x1]
        %v2550 = vld [vmem:[#allocation3 + $0x3] sm:$0x1]
        %v2551 = vld [vmem:[#allocation3 + $0x4] sm:$0x1]
        %v2552 = vld [vmem:[#allocation3 + $0x5] sm:$0x1]
        %v2553 = vld [vmem:[#allocation3 + $0x6] sm:$0x1]
        %v2554 = vld [vmem:[#allocation3 + $0x7] sm:$0x1]
        %v2555 = vld [vmem:[#allocation3 + $0x8] sm:$0x1]
        %v2556 = vld [vmem:[#allocation3 + $0x9] sm:$0x1]
        %v2557 = vld [vmem:[#allocation3 + $0xa] sm:$0x1]
        %v2558 = vld [vmem:[#allocation3 + $0xb] sm:$0x1]
        %v2559 = vld [vmem:[#allocation3 + $0xc] sm:$0x1]
        %v2560 = vld [vmem:[#allocation3 + $0xd] sm:$0x1]
        %v2561 = vld [vmem:[#allocation3 + $0xe] sm:$0x1]
        %v2562 = vld [vmem:[#allocation3 + $0xf] sm:$0x1]
        %v2563 = vld [vmem:[#allocation3 + $0x10] sm:$0x1]
        %v2564 = vld [vmem:[#allocation3 + $0x11] sm:$0x1]
        %v2565 = vld [vmem:[#allocation3 + $0x12] sm:$0x1]
        %v2566 = vld [vmem:[#allocation3 + $0x13] sm:$0x1]
        %v2567 = vld [vmem:[#allocation3 + $0x14] sm:$0x1]
        %v2568 = vld [vmem:[#allocation3 + $0x15] sm:$0x1]
        %v2569 = vld [vmem:[#allocation3 + $0x16] sm:$0x1]
        %v2570 = vld [vmem:[#allocation3 + $0x17] sm:$0x1]
        %v2571 = vld [vmem:[#allocation3 + $0x18] sm:$0x1]
        %v2572 = vld [vmem:[#allocation3 + $0x19] sm:$0x1]
        %v2573 = vld [vmem:[#allocation3 + $0x1a] sm:$0x1]
        %v2574 = vld [vmem:[#allocation3 + $0x1b] sm:$0x1]
        %v2575 = vld [vmem:[#allocation3 + $0x1c] sm:$0x1]
        %v2576 = vld [vmem:[#allocation3 + $0x1d] sm:$0x1]
        %v2577 = vld [vmem:[#allocation3 + $0x1e] sm:$0x1]
        %v2578 = vld [vmem:[#allocation3 + $0x1f] sm:$0x1]
        %v2579 = vmul.f32 %v2100, %v2547
        %v2580 = vmul.f32 %v2102, %v2548
        %v2581 = vmul.f32 %v2104, %v2549
        %v2582 = vmul.f32 %v2106, %v2550
        %v2583 = vmul.f32 %v2108, %v2551
        %v2584 = vmul.f32 %v2110, %v2552
        %v2585 = vmul.f32 %v2112, %v2553
        %v2586 = vmul.f32 %v2114, %v2554
        %v2587 = vmul.f32 %v2116, %v2555
        %v2588 = vmul.f32 %v2118, %v2556
        %v2589 = vmul.f32 %v2120, %v2557
        %v2590 = vmul.f32 %v2122, %v2558
        %v2591 = vmul.f32 %v2124, %v2559
        %v2592 = vmul.f32 %v2126, %v2560
        %v2593 = vmul.f32 %v2128, %v2561
        %v2594 = vmul.f32 %v2130, %v2562
        %v2595 = vmul.f32 %v2132, %v2563
        %v2596 = vmul.f32 %v2134, %v2564
        %v2597 = vmul.f32 %v2136, %v2565
        %v2598 = vmul.f32 %v2138, %v2566
        %v2599 = vmul.f32 %v2140, %v2567
        %v2600 = vmul.f32 %v2142, %v2568
        %v2601 = vmul.f32 %v2144, %v2569
        %v2602 = vmul.f32 %v2146, %v2570
        %v2603 = vmul.f32 %v2148, %v2571
        %v2604 = vmul.f32 %v2150, %v2572
        %v2605 = vmul.f32 %v2152, %v2573
        %v2606 = vmul.f32 %v2154, %v2574
        %v2607 = vmul.f32 %v2156, %v2575
        %v2608 = vmul.f32 %v2158, %v2576
        %v2609 = vmul.f32 %v2160, %v2577
        %v2610 = vmul.f32 %v2162, %v2578
        %v2611 = vsel %vm1746, %v2420, 0.0
        %v2612 = vsel %vm1746, %v2422, 0.0
        %v2613 = vadd.f32 %v2611, %v2612
        %v2614 = vrot.slane %v2613, 4
        %v2615 = vadd.f32 %v2613, %v2614
        %v2616 = vrot.slane %v2615, 2
        %v2617 = vadd.f32 %v2615, %v2616
        %v2618 = vrot.slane %v2617, 1
        %v2619 = vadd.f32 %v2617, %v2618
        %v2620 = vsel %vm1746, %v2424, 0.0
        %v2621 = vsel %vm1746, %v2426, 0.0
        %v2622 = vadd.f32 %v2620, %v2621
        %v2623 = vrot.slane %v2622, 4
        %v2624 = vadd.f32 %v2622, %v2623
        %v2625 = vrot.slane %v2624, 2
        %v2626 = vadd.f32 %v2624, %v2625
        %v2627 = vrot.slane %v2626, 1
        %v2628 = vadd.f32 %v2626, %v2627
        %v2629 = vsel %vm1746, %v2428, 0.0
        %v2630 = vsel %vm1746, %v2430, 0.0
        %v2631 = vadd.f32 %v2629, %v2630
        %v2632 = vrot.slane %v2631, 4
        %v2633 = vadd.f32 %v2631, %v2632
        %v2634 = vrot.slane %v2633, 2
        %v2635 = vadd.f32 %v2633, %v2634
        %v2636 = vrot.slane %v2635, 1
        %v2637 = vadd.f32 %v2635, %v2636
        %v2638 = vsel %vm1746, %v2432, 0.0
        %v2639 = vsel %vm1746, %v2434, 0.0
        %v2640 = vadd.f32 %v2638, %v2639
        %v2641 = vrot.slane %v2640, 4
        %v2642 = vadd.f32 %v2640, %v2641
        %v2643 = vrot.slane %v2642, 2
        %v2644 = vadd.f32 %v2642, %v2643
        %v2645 = vrot.slane %v2644, 1
        %v2646 = vadd.f32 %v2644, %v2645
        %v2647 = vsel %vm1746, %v2436, 0.0
        %v2648 = vsel %vm1746, %v2438, 0.0
        %v2649 = vadd.f32 %v2647, %v2648
        %v2650 = vrot.slane %v2649, 4
        %v2651 = vadd.f32 %v2649, %v2650
        %v2652 = vrot.slane %v2651, 2
        %v2653 = vadd.f32 %v2651, %v2652
        %v2654 = vrot.slane %v2653, 1
        %v2655 = vadd.f32 %v2653, %v2654
        %v2656 = vsel %vm1746, %v2440, 0.0
        %v2657 = vsel %vm1746, %v2442, 0.0
        %v2658 = vadd.f32 %v2656, %v2657
        %v2659 = vrot.slane %v2658, 4
        %v2660 = vadd.f32 %v2658, %v2659
        %v2661 = vrot.slane %v2660, 2
        %v2662 = vadd.f32 %v2660, %v2661
        %v2663 = vrot.slane %v2662, 1
        %v2664 = vadd.f32 %v2662, %v2663
        %v2665 = vsel %vm1746, %v2444, 0.0
        %v2666 = vsel %vm1746, %v2446, 0.0
        %v2667 = vadd.f32 %v2665, %v2666
        %v2668 = vrot.slane %v2667, 4
        %v2669 = vadd.f32 %v2667, %v2668
        %v2670 = vrot.slane %v2669, 2
        %v2671 = vadd.f32 %v2669, %v2670
        %v2672 = vrot.slane %v2671, 1
        %v2673 = vadd.f32 %v2671, %v2672
        %v2674 = vsel %vm1746, %v2448, 0.0
        %v2675 = vsel %vm1746, %v2450, 0.0
        %v2676 = vadd.f32 %v2674, %v2675
        %v2677 = vrot.slane %v2676, 4
        %v2678 = vadd.f32 %v2676, %v2677
        %v2679 = vrot.slane %v2678, 2
        %v2680 = vadd.f32 %v2678, %v2679
        %v2681 = vrot.slane %v2680, 1
        %v2682 = vadd.f32 %v2680, %v2681
        %v2683 = vsel %vm1746, %v2452, 0.0
        %v2684 = vsel %vm1746, %v2454, 0.0
        %v2685 = vadd.f32 %v2683, %v2684
        %v2686 = vrot.slane %v2685, 4
        %v2687 = vadd.f32 %v2685, %v2686
        %v2688 = vrot.slane %v2687, 2
        %v2689 = vadd.f32 %v2687, %v2688
        %v2690 = vrot.slane %v2689, 1
        %v2691 = vadd.f32 %v2689, %v2690
        %v2692 = vsel %vm1746, %v2456, 0.0
        %v2693 = vsel %vm1746, %v2458, 0.0
        %v2694 = vadd.f32 %v2692, %v2693
        %v2695 = vrot.slane %v2694, 4
        %v2696 = vadd.f32 %v2694, %v2695
        %v2697 = vrot.slane %v2696, 2
        %v2698 = vadd.f32 %v2696, %v2697
        %v2699 = vrot.slane %v2698, 1
        %v2700 = vadd.f32 %v2698, %v2699
        %v2701 = vsel %vm1746, %v2460, 0.0
        %v2702 = vsel %vm1746, %v2462, 0.0
        %v2703 = vadd.f32 %v2701, %v2702
        %v2704 = vrot.slane %v2703, 4
        %v2705 = vadd.f32 %v2703, %v2704
        %v2706 = vrot.slane %v2705, 2
        %v2707 = vadd.f32 %v2705, %v2706
        %v2708 = vrot.slane %v2707, 1
        %v2709 = vadd.f32 %v2707, %v2708
        %v2710 = vsel %vm1746, %v2464, 0.0
        %v2711 = vsel %vm1746, %v2466, 0.0
        %v2712 = vadd.f32 %v2710, %v2711
        %v2713 = vrot.slane %v2712, 4
        %v2714 = vadd.f32 %v2712, %v2713
        %v2715 = vrot.slane %v2714, 2
        %v2716 = vadd.f32 %v2714, %v2715
        %v2717 = vrot.slane %v2716, 1
        %v2718 = vadd.f32 %v2716, %v2717
        %v2719 = vsel %vm1746, %v2468, 0.0
        %v2720 = vsel %vm1746, %v2470, 0.0
        %v2721 = vadd.f32 %v2719, %v2720
        %v2722 = vrot.slane %v2721, 4
        %v2723 = vadd.f32 %v2721, %v2722
        %v2724 = vrot.slane %v2723, 2
        %v2725 = vadd.f32 %v2723, %v2724
        %v2726 = vrot.slane %v2725, 1
        %v2727 = vadd.f32 %v2725, %v2726
        %v2728 = vsel %vm1746, %v2472, 0.0
        %v2729 = vsel %vm1746, %v2474, 0.0
        %v2730 = vadd.f32 %v2728, %v2729
        %v2731 = vrot.slane %v2730, 4
        %v2732 = vadd.f32 %v2730, %v2731
        %v2733 = vrot.slane %v2732, 2
        %v2734 = vadd.f32 %v2732, %v2733
        %v2735 = vrot.slane %v2734, 1
        %v2736 = vadd.f32 %v2734, %v2735
        %v2737 = vsel %vm1746, %v2476, 0.0
        %v2738 = vsel %vm1746, %v2478, 0.0
        %v2739 = vadd.f32 %v2737, %v2738
        %v2740 = vrot.slane %v2739, 4
        %v2741 = vadd.f32 %v2739, %v2740
        %v2742 = vrot.slane %v2741, 2
        %v2743 = vadd.f32 %v2741, %v2742
        %v2744 = vrot.slane %v2743, 1
        %v2745 = vadd.f32 %v2743, %v2744
        %v2746 = vsel %vm1746, %v2480, 0.0
        %v2747 = vsel %vm1746, %v2482, 0.0
        %v2748 = vadd.f32 %v2746, %v2747
        %v2749 = vrot.slane %v2748, 4
        %v2750 = vadd.f32 %v2748, %v2749
        %v2751 = vrot.slane %v2750, 2
        %v2752 = vadd.f32 %v2750, %v2751
        %v2753 = vrot.slane %v2752, 1
        %v2754 = vadd.f32 %v2752, %v2753
        %v2755 = vsel %vm1746, %v2484, 0.0
        %v2756 = vsel %vm1746, %v2486, 0.0
        %v2757 = vadd.f32 %v2755, %v2756
        %v2758 = vrot.slane %v2757, 4
        %v2759 = vadd.f32 %v2757, %v2758
        %v2760 = vrot.slane %v2759, 2
        %v2761 = vadd.f32 %v2759, %v2760
        %v2762 = vrot.slane %v2761, 1
        %v2763 = vadd.f32 %v2761, %v2762
        %v2764 = vsel %vm1746, %v2488, 0.0
        %v2765 = vsel %vm1746, %v2490, 0.0
        %v2766 = vadd.f32 %v2764, %v2765
        %v2767 = vrot.slane %v2766, 4
        %v2768 = vadd.f32 %v2766, %v2767
        %v2769 = vrot.slane %v2768, 2
        %v2770 = vadd.f32 %v2768, %v2769
        %v2771 = vrot.slane %v2770, 1
        %v2772 = vadd.f32 %v2770, %v2771
        %v2773 = vsel %vm1746, %v2492, 0.0
        %v2774 = vsel %vm1746, %v2494, 0.0
        %v2775 = vadd.f32 %v2773, %v2774
        %v2776 = vrot.slane %v2775, 4
        %v2777 = vadd.f32 %v2775, %v2776
        %v2778 = vrot.slane %v2777, 2
        %v2779 = vadd.f32 %v2777, %v2778
        %v2780 = vrot.slane %v2779, 1
        %v2781 = vadd.f32 %v2779, %v2780
        %v2782 = vsel %vm1746, %v2496, 0.0
        %v2783 = vsel %vm1746, %v2498, 0.0
        %v2784 = vadd.f32 %v2782, %v2783
        %v2785 = vrot.slane %v2784, 4
        %v2786 = vadd.f32 %v2784, %v2785
        %v2787 = vrot.slane %v2786, 2
        %v2788 = vadd.f32 %v2786, %v2787
        %v2789 = vrot.slane %v2788, 1
        %v2790 = vadd.f32 %v2788, %v2789
        %v2791 = vsel %vm1746, %v2500, 0.0
        %v2792 = vsel %vm1746, %v2502, 0.0
        %v2793 = vadd.f32 %v2791, %v2792
        %v2794 = vrot.slane %v2793, 4
        %v2795 = vadd.f32 %v2793, %v2794
        %v2796 = vrot.slane %v2795, 2
        %v2797 = vadd.f32 %v2795, %v2796
        %v2798 = vrot.slane %v2797, 1
        %v2799 = vadd.f32 %v2797, %v2798
        %v2800 = vsel %vm1746, %v2504, 0.0
        %v2801 = vsel %vm1746, %v2506, 0.0
        %v2802 = vadd.f32 %v2800, %v2801
        %v2803 = vrot.slane %v2802, 4
        %v2804 = vadd.f32 %v2802, %v2803
        %v2805 = vrot.slane %v2804, 2
        %v2806 = vadd.f32 %v2804, %v2805
        %v2807 = vrot.slane %v2806, 1
        %v2808 = vadd.f32 %v2806, %v2807
        %v2809 = vsel %vm1746, %v2508, 0.0
        %v2810 = vsel %vm1746, %v2510, 0.0
        %v2811 = vadd.f32 %v2809, %v2810
        %v2812 = vrot.slane %v2811, 4
        %v2813 = vadd.f32 %v2811, %v2812
        %v2814 = vrot.slane %v2813, 2
        %v2815 = vadd.f32 %v2813, %v2814
        %v2816 = vrot.slane %v2815, 1
        %v2817 = vadd.f32 %v2815, %v2816
        %v2818 = vsel %vm1746, %v2512, 0.0
        %v2819 = vsel %vm1746, %v2514, 0.0
        %v2820 = vadd.f32 %v2818, %v2819
        %v2821 = vrot.slane %v2820, 4
        %v2822 = vadd.f32 %v2820, %v2821
        %v2823 = vrot.slane %v2822, 2
        %v2824 = vadd.f32 %v2822, %v2823
        %v2825 = vrot.slane %v2824, 1
        %v2826 = vadd.f32 %v2824, %v2825
        %v2827 = vsel %vm1746, %v2516, 0.0
        %v2828 = vsel %vm1746, %v2518, 0.0
        %v2829 = vadd.f32 %v2827, %v2828
        %v2830 = vrot.slane %v2829, 4
        %v2831 = vadd.f32 %v2829, %v2830
        %v2832 = vrot.slane %v2831, 2
        %v2833 = vadd.f32 %v2831, %v2832
        %v2834 = vrot.slane %v2833, 1
        %v2835 = vadd.f32 %v2833, %v2834
        %v2836 = vsel %vm1746, %v2520, 0.0
        %v2837 = vsel %vm1746, %v2522, 0.0
        %v2838 = vadd.f32 %v2836, %v2837
        %v2839 = vrot.slane %v2838, 4
        %v2840 = vadd.f32 %v2838, %v2839
        %v2841 = vrot.slane %v2840, 2
        %v2842 = vadd.f32 %v2840, %v2841
        %v2843 = vrot.slane %v2842, 1
        %v2844 = vadd.f32 %v2842, %v2843
        %v2845 = vsel %vm1746, %v2524, 0.0
        %v2846 = vsel %vm1746, %v2526, 0.0
        %v2847 = vadd.f32 %v2845, %v2846
        %v2848 = vrot.slane %v2847, 4
        %v2849 = vadd.f32 %v2847, %v2848
        %v2850 = vrot.slane %v2849, 2
        %v2851 = vadd.f32 %v2849, %v2850
        %v2852 = vrot.slane %v2851, 1
        %v2853 = vadd.f32 %v2851, %v2852
        %v2854 = vsel %vm1746, %v2528, 0.0
        %v2855 = vsel %vm1746, %v2530, 0.0
        %v2856 = vadd.f32 %v2854, %v2855
        %v2857 = vrot.slane %v2856, 4
        %v2858 = vadd.f32 %v2856, %v2857
        %v2859 = vrot.slane %v2858, 2
        %v2860 = vadd.f32 %v2858, %v2859
        %v2861 = vrot.slane %v2860, 1
        %v2862 = vadd.f32 %v2860, %v2861
        %v2863 = vsel %vm1746, %v2532, 0.0
        %v2864 = vsel %vm1746, %v2534, 0.0
        %v2865 = vadd.f32 %v2863, %v2864
        %v2866 = vrot.slane %v2865, 4
        %v2867 = vadd.f32 %v2865, %v2866
        %v2868 = vrot.slane %v2867, 2
        %v2869 = vadd.f32 %v2867, %v2868
        %v2870 = vrot.slane %v2869, 1
        %v2871 = vadd.f32 %v2869, %v2870
        %v2872 = vsel %vm1746, %v2536, 0.0
        %v2873 = vsel %vm1746, %v2538, 0.0
        %v2874 = vadd.f32 %v2872, %v2873
        %v2875 = vrot.slane %v2874, 4
        %v2876 = vadd.f32 %v2874, %v2875
        %v2877 = vrot.slane %v2876, 2
        %v2878 = vadd.f32 %v2876, %v2877
        %v2879 = vrot.slane %v2878, 1
        %v2880 = vadd.f32 %v2878, %v2879
        %v2881 = vsel %vm1746, %v2540, 0.0
        %v2882 = vsel %vm1746, %v2542, 0.0
        %v2883 = vadd.f32 %v2881, %v2882
        %v2884 = vrot.slane %v2883, 4
        %v2885 = vadd.f32 %v2883, %v2884
        %v2886 = vrot.slane %v2885, 2
        %v2887 = vadd.f32 %v2885, %v2886
        %v2888 = vrot.slane %v2887, 1
        %v2889 = vadd.f32 %v2887, %v2888
        %v2890 = vsel %vm1746, %v2544, 0.0
        %v2891 = vsel %vm1746, %v2546, 0.0
        %v2892 = vadd.f32 %v2890, %v2891
        %v2893 = vrot.slane %v2892, 4
        %v2894 = vadd.f32 %v2892, %v2893
        %v2895 = vrot.slane %v2894, 2
        %v2896 = vadd.f32 %v2894, %v2895
        %v2897 = vrot.slane %v2896, 1
        %v2898 = vadd.f32 %v2896, %v2897
        %v2899 = vadd.f32 %v2579, %v2619
        %v2900 = vadd.f32 %v2580, %v2628
        %v2901 = vadd.f32 %v2581, %v2637
        %v2902 = vadd.f32 %v2582, %v2646
        %v2903 = vadd.f32 %v2583, %v2655
        %v2904 = vadd.f32 %v2584, %v2664
        %v2905 = vadd.f32 %v2585, %v2673
        %v2906 = vadd.f32 %v2586, %v2682
        %v2907 = vadd.f32 %v2587, %v2691
        %v2908 = vadd.f32 %v2588, %v2700
        %v2909 = vadd.f32 %v2589, %v2709
        %v2910 = vadd.f32 %v2590, %v2718
        %v2911 = vadd.f32 %v2591, %v2727
        %v2912 = vadd.f32 %v2592, %v2736
        %v2913 = vadd.f32 %v2593, %v2745
        %v2914 = vadd.f32 %v2594, %v2754
        %v2915 = vadd.f32 %v2595, %v2763
        %v2916 = vadd.f32 %v2596, %v2772
        %v2917 = vadd.f32 %v2597, %v2781
        %v2918 = vadd.f32 %v2598, %v2790
        %v2919 = vadd.f32 %v2599, %v2799
        %v2920 = vadd.f32 %v2600, %v2808
        %v2921 = vadd.f32 %v2601, %v2817
        %v2922 = vadd.f32 %v2602, %v2826
        %v2923 = vadd.f32 %v2603, %v2835
        %v2924 = vadd.f32 %v2604, %v2844
        %v2925 = vadd.f32 %v2605, %v2853
        %v2926 = vadd.f32 %v2606, %v2862
        %v2927 = vadd.f32 %v2607, %v2871
        %v2928 = vadd.f32 %v2608, %v2880
        %v2929 = vadd.f32 %v2609, %v2889
        %v2930 = vadd.f32 %v2610, %v2898
        %vm2931 = vcmask 0
        %2932 = vst.msk [vmem:[#allocation3] sm:$0x1] %vm2931, %v2899
        %2933 = vst.msk [vmem:[#allocation3 + $0x1] sm:$0x1] %vm2931, %v2900
        %2934 = vst.msk [vmem:[#allocation3 + $0x2] sm:$0x1] %vm2931, %v2901
        %2935 = vst.msk [vmem:[#allocation3 + $0x3] sm:$0x1] %vm2931, %v2902
        %2936 = vst.msk [vmem:[#allocation3 + $0x4] sm:$0x1] %vm2931, %v2903
        %2937 = vst.msk [vmem:[#allocation3 + $0x5] sm:$0x1] %vm2931, %v2904
        %2938 = vst.msk [vmem:[#allocation3 + $0x6] sm:$0x1] %vm2931, %v2905
        %2939 = vst.msk [vmem:[#allocation3 + $0x7] sm:$0x1] %vm2931, %v2906
        %2940 = vst.msk [vmem:[#allocation3 + $0x8] sm:$0x1] %vm2931, %v2907
        %2941 = vst.msk [vmem:[#allocation3 + $0x9] sm:$0x1] %vm2931, %v2908
        %2942 = vst.msk [vmem:[#allocation3 + $0xa] sm:$0x1] %vm2931, %v2909
        %2943 = vst.msk [vmem:[#allocation3 + $0xb] sm:$0x1] %vm2931, %v2910
        %2944 = vst.msk [vmem:[#allocation3 + $0xc] sm:$0x1] %vm2931, %v2911
        %2945 = vst.msk [vmem:[#allocation3 + $0xd] sm:$0x1] %vm2931, %v2912
        %2946 = vst.msk [vmem:[#allocation3 + $0xe] sm:$0x1] %vm2931, %v2913
        %2947 = vst.msk [vmem:[#allocation3 + $0xf] sm:$0x1] %vm2931, %v2914
        %2948 = vst.msk [vmem:[#allocation3 + $0x10] sm:$0x1] %vm2931, %v2915
        %2949 = vst.msk [vmem:[#allocation3 + $0x11] sm:$0x1] %vm2931, %v2916
        %2950 = vst.msk [vmem:[#allocation3 + $0x12] sm:$0x1] %vm2931, %v2917
        %2951 = vst.msk [vmem:[#allocation3 + $0x13] sm:$0x1] %vm2931, %v2918
        %2952 = vst.msk [vmem:[#allocation3 + $0x14] sm:$0x1] %vm2931, %v2919
        %2953 = vst.msk [vmem:[#allocation3 + $0x15] sm:$0x1] %vm2931, %v2920
        %2954 = vst.msk [vmem:[#allocation3 + $0x16] sm:$0x1] %vm2931, %v2921
        %2955 = vst.msk [vmem:[#allocation3 + $0x17] sm:$0x1] %vm2931, %v2922
        %2956 = vst.msk [vmem:[#allocation3 + $0x18] sm:$0x1] %vm2931, %v2923
        %2957 = vst.msk [vmem:[#allocation3 + $0x19] sm:$0x1] %vm2931, %v2924
        %2958 = vst.msk [vmem:[#allocation3 + $0x1a] sm:$0x1] %vm2931, %v2925
        %2959 = vst.msk [vmem:[#allocation3 + $0x1b] sm:$0x1] %vm2931, %v2926
        %2960 = vst.msk [vmem:[#allocation3 + $0x1c] sm:$0x1] %vm2931, %v2927
        %2961 = vst.msk [vmem:[#allocation3 + $0x1d] sm:$0x1] %vm2931, %v2928
        %2962 = vst.msk [vmem:[#allocation3 + $0x1e] sm:$0x1] %vm2931, %v2929
        %2963 = vst.msk [vmem:[#allocation3 + $0x1f] sm:$0x1] %vm2931, %v2930
        %v2964 = vld [vmem:[#allocation4] sm:$0xff]
        %v2965 = vld [vmem:[#allocation4 + $0x8] sm:$0xff]
        %v2966 = vld [vmem:[#allocation4 + $0x10] sm:$0xff]
        %v2967 = vld [vmem:[#allocation4 + $0x18] sm:$0xff]
        %2969 = vset.pattern.permute.xlu0 0
        %2970 = vperm.xlu0 %2969, %v2100
        %v2971 = vpop.permute.xlu0 %2970
        %v2973 = vlaneseq
        %v2974 = vshrl.u32 %v2973, 7
        %v2975 = vsub.s32 0, %v2974
        %v2976 = vrot.slane %v2971, %v2975
        %2978 = vset.pattern.permute.xlu0 0
        %2979 = vperm.xlu0 %2978, %v2102
        %v2980 = vpop.permute.xlu0 %2979
        %v2982 = vlaneseq
        %v2983 = vshrl.u32 %v2982, 7
        %v2984 = vsub.s32 0, %v2983
        %v2985 = vrot.slane %v2980, %v2984
        %2987 = vset.pattern.permute.xlu0 0
        %2988 = vperm.xlu0 %2987, %v2104
        %v2989 = vpop.permute.xlu0 %2988
        %v2991 = vlaneseq
        %v2992 = vshrl.u32 %v2991, 7
        %v2993 = vsub.s32 0, %v2992
        %v2994 = vrot.slane %v2989, %v2993
        %2996 = vset.pattern.permute.xlu0 0
        %2997 = vperm.xlu0 %2996, %v2106
        %v2998 = vpop.permute.xlu0 %2997
        %v3000 = vlaneseq
        %v3001 = vshrl.u32 %v3000, 7
        %v3002 = vsub.s32 0, %v3001
        %v3003 = vrot.slane %v2998, %v3002
        %3005 = vset.pattern.permute.xlu0 0
        %3006 = vperm.xlu0 %3005, %v2108
        %v3007 = vpop.permute.xlu0 %3006
        %v3009 = vlaneseq
        %v3010 = vshrl.u32 %v3009, 7
        %v3011 = vsub.s32 0, %v3010
        %v3012 = vrot.slane %v3007, %v3011
        %3014 = vset.pattern.permute.xlu0 0
        %3015 = vperm.xlu0 %3014, %v2110
        %v3016 = vpop.permute.xlu0 %3015
        %v3018 = vlaneseq
        %v3019 = vshrl.u32 %v3018, 7
        %v3020 = vsub.s32 0, %v3019
        %v3021 = vrot.slane %v3016, %v3020
        %3023 = vset.pattern.permute.xlu0 0
        %3024 = vperm.xlu0 %3023, %v2112
        %v3025 = vpop.permute.xlu0 %3024
        %v3027 = vlaneseq
        %v3028 = vshrl.u32 %v3027, 7
        %v3029 = vsub.s32 0, %v3028
        %v3030 = vrot.slane %v3025, %v3029
        %3032 = vset.pattern.permute.xlu0 0
        %3033 = vperm.xlu0 %3032, %v2114
        %v3034 = vpop.permute.xlu0 %3033
        %v3036 = vlaneseq
        %v3037 = vshrl.u32 %v3036, 7
        %v3038 = vsub.s32 0, %v3037
        %v3039 = vrot.slane %v3034, %v3038
        %3041 = vset.pattern.permute.xlu0 0
        %3042 = vperm.xlu0 %3041, %v2116
        %v3043 = vpop.permute.xlu0 %3042
        %v3045 = vlaneseq
        %v3046 = vshrl.u32 %v3045, 7
        %v3047 = vsub.s32 0, %v3046
        %v3048 = vrot.slane %v3043, %v3047
        %3050 = vset.pattern.permute.xlu0 0
        %3051 = vperm.xlu0 %3050, %v2118
        %v3052 = vpop.permute.xlu0 %3051
        %v3054 = vlaneseq
        %v3055 = vshrl.u32 %v3054, 7
        %v3056 = vsub.s32 0, %v3055
        %v3057 = vrot.slane %v3052, %v3056
        %3059 = vset.pattern.permute.xlu0 0
        %3060 = vperm.xlu0 %3059, %v2120
        %v3061 = vpop.permute.xlu0 %3060
        %v3063 = vlaneseq
        %v3064 = vshrl.u32 %v3063, 7
        %v3065 = vsub.s32 0, %v3064
        %v3066 = vrot.slane %v3061, %v3065
        %3068 = vset.pattern.permute.xlu0 0
        %3069 = vperm.xlu0 %3068, %v2122
        %v3070 = vpop.permute.xlu0 %3069
        %v3072 = vlaneseq
        %v3073 = vshrl.u32 %v3072, 7
        %v3074 = vsub.s32 0, %v3073
        %v3075 = vrot.slane %v3070, %v3074
        %3077 = vset.pattern.permute.xlu0 0
        %3078 = vperm.xlu0 %3077, %v2124
        %v3079 = vpop.permute.xlu0 %3078
        %v3081 = vlaneseq
        %v3082 = vshrl.u32 %v3081, 7
        %v3083 = vsub.s32 0, %v3082
        %v3084 = vrot.slane %v3079, %v3083
        %3086 = vset.pattern.permute.xlu0 0
        %3087 = vperm.xlu0 %3086, %v2126
        %v3088 = vpop.permute.xlu0 %3087
        %v3090 = vlaneseq
        %v3091 = vshrl.u32 %v3090, 7
        %v3092 = vsub.s32 0, %v3091
        %v3093 = vrot.slane %v3088, %v3092
        %3095 = vset.pattern.permute.xlu0 0
        %3096 = vperm.xlu0 %3095, %v2128
        %v3097 = vpop.permute.xlu0 %3096
        %v3099 = vlaneseq
        %v3100 = vshrl.u32 %v3099, 7
        %v3101 = vsub.s32 0, %v3100
        %v3102 = vrot.slane %v3097, %v3101
        %3104 = vset.pattern.permute.xlu0 0
        %3105 = vperm.xlu0 %3104, %v2130
        %v3106 = vpop.permute.xlu0 %3105
        %v3108 = vlaneseq
        %v3109 = vshrl.u32 %v3108, 7
        %v3110 = vsub.s32 0, %v3109
        %v3111 = vrot.slane %v3106, %v3110
        %3113 = vset.pattern.permute.xlu0 0
        %3114 = vperm.xlu0 %3113, %v2132
        %v3115 = vpop.permute.xlu0 %3114
        %v3117 = vlaneseq
        %v3118 = vshrl.u32 %v3117, 7
        %v3119 = vsub.s32 0, %v3118
        %v3120 = vrot.slane %v3115, %v3119
        %3122 = vset.pattern.permute.xlu0 0
        %3123 = vperm.xlu0 %3122, %v2134
        %v3124 = vpop.permute.xlu0 %3123
        %v3126 = vlaneseq
        %v3127 = vshrl.u32 %v3126, 7
        %v3128 = vsub.s32 0, %v3127
        %v3129 = vrot.slane %v3124, %v3128
        %3131 = vset.pattern.permute.xlu0 0
        %3132 = vperm.xlu0 %3131, %v2136
        %v3133 = vpop.permute.xlu0 %3132
        %v3135 = vlaneseq
        %v3136 = vshrl.u32 %v3135, 7
        %v3137 = vsub.s32 0, %v3136
        %v3138 = vrot.slane %v3133, %v3137
        %3140 = vset.pattern.permute.xlu0 0
        %3141 = vperm.xlu0 %3140, %v2138
        %v3142 = vpop.permute.xlu0 %3141
        %v3144 = vlaneseq
        %v3145 = vshrl.u32 %v3144, 7
        %v3146 = vsub.s32 0, %v3145
        %v3147 = vrot.slane %v3142, %v3146
        %3149 = vset.pattern.permute.xlu0 0
        %3150 = vperm.xlu0 %3149, %v2140
        %v3151 = vpop.permute.xlu0 %3150
        %v3153 = vlaneseq
        %v3154 = vshrl.u32 %v3153, 7
        %v3155 = vsub.s32 0, %v3154
        %v3156 = vrot.slane %v3151, %v3155
        %3158 = vset.pattern.permute.xlu0 0
        %3159 = vperm.xlu0 %3158, %v2142
        %v3160 = vpop.permute.xlu0 %3159
        %v3162 = vlaneseq
        %v3163 = vshrl.u32 %v3162, 7
        %v3164 = vsub.s32 0, %v3163
        %v3165 = vrot.slane %v3160, %v3164
        %3167 = vset.pattern.permute.xlu0 0
        %3168 = vperm.xlu0 %3167, %v2144
        %v3169 = vpop.permute.xlu0 %3168
        %v3171 = vlaneseq
        %v3172 = vshrl.u32 %v3171, 7
        %v3173 = vsub.s32 0, %v3172
        %v3174 = vrot.slane %v3169, %v3173
        %3176 = vset.pattern.permute.xlu0 0
        %3177 = vperm.xlu0 %3176, %v2146
        %v3178 = vpop.permute.xlu0 %3177
        %v3180 = vlaneseq
        %v3181 = vshrl.u32 %v3180, 7
        %v3182 = vsub.s32 0, %v3181
        %v3183 = vrot.slane %v3178, %v3182
        %3185 = vset.pattern.permute.xlu0 0
        %3186 = vperm.xlu0 %3185, %v2148
        %v3187 = vpop.permute.xlu0 %3186
        %v3189 = vlaneseq
        %v3190 = vshrl.u32 %v3189, 7
        %v3191 = vsub.s32 0, %v3190
        %v3192 = vrot.slane %v3187, %v3191
        %3194 = vset.pattern.permute.xlu0 0
        %3195 = vperm.xlu0 %3194, %v2150
        %v3196 = vpop.permute.xlu0 %3195
        %v3198 = vlaneseq
        %v3199 = vshrl.u32 %v3198, 7
        %v3200 = vsub.s32 0, %v3199
        %v3201 = vrot.slane %v3196, %v3200
        %3203 = vset.pattern.permute.xlu0 0
        %3204 = vperm.xlu0 %3203, %v2152
        %v3205 = vpop.permute.xlu0 %3204
        %v3207 = vlaneseq
        %v3208 = vshrl.u32 %v3207, 7
        %v3209 = vsub.s32 0, %v3208
        %v3210 = vrot.slane %v3205, %v3209
        %3212 = vset.pattern.permute.xlu0 0
        %3213 = vperm.xlu0 %3212, %v2154
        %v3214 = vpop.permute.xlu0 %3213
        %v3216 = vlaneseq
        %v3217 = vshrl.u32 %v3216, 7
        %v3218 = vsub.s32 0, %v3217
        %v3219 = vrot.slane %v3214, %v3218
        %3221 = vset.pattern.permute.xlu0 0
        %3222 = vperm.xlu0 %3221, %v2156
        %v3223 = vpop.permute.xlu0 %3222
        %v3225 = vlaneseq
        %v3226 = vshrl.u32 %v3225, 7
        %v3227 = vsub.s32 0, %v3226
        %v3228 = vrot.slane %v3223, %v3227
        %3230 = vset.pattern.permute.xlu0 0
        %3231 = vperm.xlu0 %3230, %v2158
        %v3232 = vpop.permute.xlu0 %3231
        %v3234 = vlaneseq
        %v3235 = vshrl.u32 %v3234, 7
        %v3236 = vsub.s32 0, %v3235
        %v3237 = vrot.slane %v3232, %v3236
        %3239 = vset.pattern.permute.xlu0 0
        %3240 = vperm.xlu0 %3239, %v2160
        %v3241 = vpop.permute.xlu0 %3240
        %v3243 = vlaneseq
        %v3244 = vshrl.u32 %v3243, 7
        %v3245 = vsub.s32 0, %v3244
        %v3246 = vrot.slane %v3241, %v3245
        %3248 = vset.pattern.permute.xlu0 0
        %3249 = vperm.xlu0 %3248, %v2162
        %v3250 = vpop.permute.xlu0 %3249
        %v3252 = vlaneseq
        %v3253 = vshrl.u32 %v3252, 7
        %v3254 = vsub.s32 0, %v3253
        %v3255 = vrot.slane %v3250, %v3254
        %v3260 = vcombine.high %v2964, %v2964
        %v3262 = vunpack.c.l.s4 1966171168
        %v3263 = vunpack.c.0.s8 %v3262
        %v3264 = vlaneseq
        %v3265 = vshrl.u32 %v3264, 7
        %v3266 = vsub.s32 %v3263, %v3265
        %v3267 = vrot.slane %v2964, %v3266
        %v3269 = vunpack.c.l.s4 1966171168
        %v3270 = vunpack.c.0.s8 %v3269
        %v3271 = vlaneseq
        %v3272 = vshrl.u32 %v3271, 7
        %v3273 = vsub.s32 %v3270, %v3272
        %v3274 = vrot.slane %v3260, %v3273
        %v3275 = vcombine.high %v3267, %v3267
        %v3276 = vcombine.high %v3274, %v3274
        %v3278 = vunpack.c.l.s4 1966171168
        %v3279 = vunpack.c.0.s8 %v3278
        %v3280 = vlaneseq
        %v3281 = vshrl.u32 %v3280, 7
        %v3282 = vsub.s32 %v3279, %v3281
        %v3283 = vrot.slane %v3267, %v3282
        %v3285 = vunpack.c.l.s4 1966171168
        %v3286 = vunpack.c.0.s8 %v3285
        %v3287 = vlaneseq
        %v3288 = vshrl.u32 %v3287, 7
        %v3289 = vsub.s32 %v3286, %v3288
        %v3290 = vrot.slane %v3274, %v3289
        %v3292 = vunpack.c.l.s4 1966171168
        %v3293 = vunpack.c.0.s8 %v3292
        %v3294 = vlaneseq
        %v3295 = vshrl.u32 %v3294, 7
        %v3296 = vsub.s32 %v3293, %v3295
        %v3297 = vrot.slane %v3275, %v3296
        %v3299 = vunpack.c.l.s4 1966171168
        %v3300 = vunpack.c.0.s8 %v3299
        %v3301 = vlaneseq
        %v3302 = vshrl.u32 %v3301, 7
        %v3303 = vsub.s32 %v3300, %v3302
        %v3304 = vrot.slane %v3276, %v3303
        %v3305 = vcombine.high %v3283, %v3283
        %v3306 = vcombine.high %v3290, %v3290
        %v3307 = vcombine.high %v3297, %v3297
        %v3308 = vcombine.high %v3304, %v3304
        %v3309 = vcombine.high %v2965, %v2965
        %v3311 = vunpack.c.l.s4 1966171168
        %v3312 = vunpack.c.0.s8 %v3311
        %v3313 = vlaneseq
        %v3314 = vshrl.u32 %v3313, 7
        %v3315 = vsub.s32 %v3312, %v3314
        %v3316 = vrot.slane %v2965, %v3315
        %v3318 = vunpack.c.l.s4 1966171168
        %v3319 = vunpack.c.0.s8 %v3318
        %v3320 = vlaneseq
        %v3321 = vshrl.u32 %v3320, 7
        %v3322 = vsub.s32 %v3319, %v3321
        %v3323 = vrot.slane %v3309, %v3322
        %v3324 = vcombine.high %v3316, %v3316
        %v3325 = vcombine.high %v3323, %v3323
        %v3327 = vunpack.c.l.s4 1966171168
        %v3328 = vunpack.c.0.s8 %v3327
        %v3329 = vlaneseq
        %v3330 = vshrl.u32 %v3329, 7
        %v3331 = vsub.s32 %v3328, %v3330
        %v3332 = vrot.slane %v3316, %v3331
        %v3334 = vunpack.c.l.s4 1966171168
        %v3335 = vunpack.c.0.s8 %v3334
        %v3336 = vlaneseq
        %v3337 = vshrl.u32 %v3336, 7
        %v3338 = vsub.s32 %v3335, %v3337
        %v3339 = vrot.slane %v3323, %v3338
        %v3341 = vunpack.c.l.s4 1966171168
        %v3342 = vunpack.c.0.s8 %v3341
        %v3343 = vlaneseq
        %v3344 = vshrl.u32 %v3343, 7
        %v3345 = vsub.s32 %v3342, %v3344
        %v3346 = vrot.slane %v3324, %v3345
        %v3348 = vunpack.c.l.s4 1966171168
        %v3349 = vunpack.c.0.s8 %v3348
        %v3350 = vlaneseq
        %v3351 = vshrl.u32 %v3350, 7
        %v3352 = vsub.s32 %v3349, %v3351
        %v3353 = vrot.slane %v3325, %v3352
        %v3354 = vcombine.high %v3332, %v3332
        %v3355 = vcombine.high %v3339, %v3339
        %v3356 = vcombine.high %v3346, %v3346
        %v3357 = vcombine.high %v3353, %v3353
        %v3358 = vcombine.high %v2966, %v2966
        %v3360 = vunpack.c.l.s4 1966171168
        %v3361 = vunpack.c.0.s8 %v3360
        %v3362 = vlaneseq
        %v3363 = vshrl.u32 %v3362, 7
        %v3364 = vsub.s32 %v3361, %v3363
        %v3365 = vrot.slane %v2966, %v3364
        %v3367 = vunpack.c.l.s4 1966171168
        %v3368 = vunpack.c.0.s8 %v3367
        %v3369 = vlaneseq
        %v3370 = vshrl.u32 %v3369, 7
        %v3371 = vsub.s32 %v3368, %v3370
        %v3372 = vrot.slane %v3358, %v3371
        %v3373 = vcombine.high %v3365, %v3365
        %v3374 = vcombine.high %v3372, %v3372
        %v3376 = vunpack.c.l.s4 1966171168
        %v3377 = vunpack.c.0.s8 %v3376
        %v3378 = vlaneseq
        %v3379 = vshrl.u32 %v3378, 7
        %v3380 = vsub.s32 %v3377, %v3379
        %v3381 = vrot.slane %v3365, %v3380
        %v3383 = vunpack.c.l.s4 1966171168
        %v3384 = vunpack.c.0.s8 %v3383
        %v3385 = vlaneseq
        %v3386 = vshrl.u32 %v3385, 7
        %v3387 = vsub.s32 %v3384, %v3386
        %v3388 = vrot.slane %v3372, %v3387
        %v3390 = vunpack.c.l.s4 1966171168
        %v3391 = vunpack.c.0.s8 %v3390
        %v3392 = vlaneseq
        %v3393 = vshrl.u32 %v3392, 7
        %v3394 = vsub.s32 %v3391, %v3393
        %v3395 = vrot.slane %v3373, %v3394
        %v3397 = vunpack.c.l.s4 1966171168
        %v3398 = vunpack.c.0.s8 %v3397
        %v3399 = vlaneseq
        %v3400 = vshrl.u32 %v3399, 7
        %v3401 = vsub.s32 %v3398, %v3400
        %v3402 = vrot.slane %v3374, %v3401
        %v3403 = vcombine.high %v3381, %v3381
        %v3404 = vcombine.high %v3388, %v3388
        %v3405 = vcombine.high %v3395, %v3395
        %v3406 = vcombine.high %v3402, %v3402
        %v3407 = vcombine.high %v2967, %v2967
        %v3409 = vunpack.c.l.s4 1966171168
        %v3410 = vunpack.c.0.s8 %v3409
        %v3411 = vlaneseq
        %v3412 = vshrl.u32 %v3411, 7
        %v3413 = vsub.s32 %v3410, %v3412
        %v3414 = vrot.slane %v2967, %v3413
        %v3416 = vunpack.c.l.s4 1966171168
        %v3417 = vunpack.c.0.s8 %v3416
        %v3418 = vlaneseq
        %v3419 = vshrl.u32 %v3418, 7
        %v3420 = vsub.s32 %v3417, %v3419
        %v3421 = vrot.slane %v3407, %v3420
        %v3422 = vcombine.high %v3414, %v3414
        %v3423 = vcombine.high %v3421, %v3421
        %v3425 = vunpack.c.l.s4 1966171168
        %v3426 = vunpack.c.0.s8 %v3425
        %v3427 = vlaneseq
        %v3428 = vshrl.u32 %v3427, 7
        %v3429 = vsub.s32 %v3426, %v3428
        %v3430 = vrot.slane %v3414, %v3429
        %v3432 = vunpack.c.l.s4 1966171168
        %v3433 = vunpack.c.0.s8 %v3432
        %v3434 = vlaneseq
        %v3435 = vshrl.u32 %v3434, 7
        %v3436 = vsub.s32 %v3433, %v3435
        %v3437 = vrot.slane %v3421, %v3436
        %v3439 = vunpack.c.l.s4 1966171168
        %v3440 = vunpack.c.0.s8 %v3439
        %v3441 = vlaneseq
        %v3442 = vshrl.u32 %v3441, 7
        %v3443 = vsub.s32 %v3440, %v3442
        %v3444 = vrot.slane %v3422, %v3443
        %v3446 = vunpack.c.l.s4 1966171168
        %v3447 = vunpack.c.0.s8 %v3446
        %v3448 = vlaneseq
        %v3449 = vshrl.u32 %v3448, 7
        %v3450 = vsub.s32 %v3447, %v3449
        %v3451 = vrot.slane %v3423, %v3450
        %v3452 = vcombine.high %v3430, %v3430
        %v3453 = vcombine.high %v3437, %v3437
        %v3454 = vcombine.high %v3444, %v3444
        %v3455 = vcombine.high %v3451, %v3451
        %v3488 = vmul.f32 %v2976, %v3283
        %v3489 = vmul.f32 %v2985, %v3297
        %v3490 = vmul.f32 %v2994, %v3305
        %v3491 = vmul.f32 %v3003, %v3307
        %v3492 = vmul.f32 %v3012, %v3290
        %v3493 = vmul.f32 %v3021, %v3304
        %v3494 = vmul.f32 %v3030, %v3306
        %v3495 = vmul.f32 %v3039, %v3308
        %v3496 = vmul.f32 %v3048, %v3332
        %v3497 = vmul.f32 %v3057, %v3346
        %v3498 = vmul.f32 %v3066, %v3354
        %v3499 = vmul.f32 %v3075, %v3356
        %v3500 = vmul.f32 %v3084, %v3339
        %v3501 = vmul.f32 %v3093, %v3353
        %v3502 = vmul.f32 %v3102, %v3355
        %v3503 = vmul.f32 %v3111, %v3357
        %v3504 = vmul.f32 %v3120, %v3381
        %v3505 = vmul.f32 %v3129, %v3395
        %v3506 = vmul.f32 %v3138, %v3403
        %v3507 = vmul.f32 %v3147, %v3405
        %v3508 = vmul.f32 %v3156, %v3388
        %v3509 = vmul.f32 %v3165, %v3402
        %v3510 = vmul.f32 %v3174, %v3404
        %v3511 = vmul.f32 %v3183, %v3406
        %v3512 = vmul.f32 %v3192, %v3430
        %v3513 = vmul.f32 %v3201, %v3444
        %v3514 = vmul.f32 %v3210, %v3452
        %v3515 = vmul.f32 %v3219, %v3454
        %v3516 = vmul.f32 %v3228, %v3437
        %v3517 = vmul.f32 %v3237, %v3451
        %v3518 = vmul.f32 %v3246, %v3453
        %v3519 = vmul.f32 %v3255, %v3455
        %3521 = vset.pattern.permute.xlu0 0
        %3522 = vperm.xlu0 %3521, %v2420
        %v3523 = vpop.permute.xlu0 %3522
        %3526 = vset.pattern.permute.xlu0 0
        %3527 = vperm.xlu0 %3526, %v2422
        %v3528 = vpop.permute.xlu0 %3527
        %3531 = vset.pattern.permute.xlu0 0
        %3532 = vperm.xlu0 %3531, %v2424
        %v3533 = vpop.permute.xlu0 %3532
        %3536 = vset.pattern.permute.xlu0 0
        %3537 = vperm.xlu0 %3536, %v2426
        %v3538 = vpop.permute.xlu0 %3537
        %3541 = vset.pattern.permute.xlu0 0
        %3542 = vperm.xlu0 %3541, %v2428
        %v3543 = vpop.permute.xlu0 %3542
        %3546 = vset.pattern.permute.xlu0 0
        %3547 = vperm.xlu0 %3546, %v2430
        %v3548 = vpop.permute.xlu0 %3547
        %3551 = vset.pattern.permute.xlu0 0
        %3552 = vperm.xlu0 %3551, %v2432
        %v3553 = vpop.permute.xlu0 %3552
        %3556 = vset.pattern.permute.xlu0 0
        %3557 = vperm.xlu0 %3556, %v2434
        %v3558 = vpop.permute.xlu0 %3557
        %3561 = vset.pattern.permute.xlu0 0
        %3562 = vperm.xlu0 %3561, %v2436
        %v3563 = vpop.permute.xlu0 %3562
        %3566 = vset.pattern.permute.xlu0 0
        %3567 = vperm.xlu0 %3566, %v2438
        %v3568 = vpop.permute.xlu0 %3567
        %3571 = vset.pattern.permute.xlu0 0
        %3572 = vperm.xlu0 %3571, %v2440
        %v3573 = vpop.permute.xlu0 %3572
        %3576 = vset.pattern.permute.xlu0 0
        %3577 = vperm.xlu0 %3576, %v2442
        %v3578 = vpop.permute.xlu0 %3577
        %3581 = vset.pattern.permute.xlu0 0
        %3582 = vperm.xlu0 %3581, %v2444
        %v3583 = vpop.permute.xlu0 %3582
        %3586 = vset.pattern.permute.xlu0 0
        %3587 = vperm.xlu0 %3586, %v2446
        %v3588 = vpop.permute.xlu0 %3587
        %3591 = vset.pattern.permute.xlu0 0
        %3592 = vperm.xlu0 %3591, %v2448
        %v3593 = vpop.permute.xlu0 %3592
        %3596 = vset.pattern.permute.xlu0 0
        %3597 = vperm.xlu0 %3596, %v2450
        %v3598 = vpop.permute.xlu0 %3597
        %3601 = vset.pattern.permute.xlu0 0
        %3602 = vperm.xlu0 %3601, %v2452
        %v3603 = vpop.permute.xlu0 %3602
        %3606 = vset.pattern.permute.xlu0 0
        %3607 = vperm.xlu0 %3606, %v2454
        %v3608 = vpop.permute.xlu0 %3607
        %3611 = vset.pattern.permute.xlu0 0
        %3612 = vperm.xlu0 %3611, %v2456
        %v3613 = vpop.permute.xlu0 %3612
        %3616 = vset.pattern.permute.xlu0 0
        %3617 = vperm.xlu0 %3616, %v2458
        %v3618 = vpop.permute.xlu0 %3617
        %3621 = vset.pattern.permute.xlu0 0
        %3622 = vperm.xlu0 %3621, %v2460
        %v3623 = vpop.permute.xlu0 %3622
        %3626 = vset.pattern.permute.xlu0 0
        %3627 = vperm.xlu0 %3626, %v2462
        %v3628 = vpop.permute.xlu0 %3627
        %3631 = vset.pattern.permute.xlu0 0
        %3632 = vperm.xlu0 %3631, %v2464
        %v3633 = vpop.permute.xlu0 %3632
        %3636 = vset.pattern.permute.xlu0 0
        %3637 = vperm.xlu0 %3636, %v2466
        %v3638 = vpop.permute.xlu0 %3637
        %3641 = vset.pattern.permute.xlu0 0
        %3642 = vperm.xlu0 %3641, %v2468
        %v3643 = vpop.permute.xlu0 %3642
        %3646 = vset.pattern.permute.xlu0 0
        %3647 = vperm.xlu0 %3646, %v2470
        %v3648 = vpop.permute.xlu0 %3647
        %3651 = vset.pattern.permute.xlu0 0
        %3652 = vperm.xlu0 %3651, %v2472
        %v3653 = vpop.permute.xlu0 %3652
        %3656 = vset.pattern.permute.xlu0 0
        %3657 = vperm.xlu0 %3656, %v2474
        %v3658 = vpop.permute.xlu0 %3657
        %3661 = vset.pattern.permute.xlu0 0
        %3662 = vperm.xlu0 %3661, %v2476
        %v3663 = vpop.permute.xlu0 %3662
        %3666 = vset.pattern.permute.xlu0 0
        %3667 = vperm.xlu0 %3666, %v2478
        %v3668 = vpop.permute.xlu0 %3667
        %3671 = vset.pattern.permute.xlu0 0
        %3672 = vperm.xlu0 %3671, %v2480
        %v3673 = vpop.permute.xlu0 %3672
        %3676 = vset.pattern.permute.xlu0 0
        %3677 = vperm.xlu0 %3676, %v2482
        %v3678 = vpop.permute.xlu0 %3677
        %3681 = vset.pattern.permute.xlu0 0
        %3682 = vperm.xlu0 %3681, %v2484
        %v3683 = vpop.permute.xlu0 %3682
        %3686 = vset.pattern.permute.xlu0 0
        %3687 = vperm.xlu0 %3686, %v2486
        %v3688 = vpop.permute.xlu0 %3687
        %3691 = vset.pattern.permute.xlu0 0
        %3692 = vperm.xlu0 %3691, %v2488
        %v3693 = vpop.permute.xlu0 %3692
        %3696 = vset.pattern.permute.xlu0 0
        %3697 = vperm.xlu0 %3696, %v2490
        %v3698 = vpop.permute.xlu0 %3697
        %3701 = vset.pattern.permute.xlu0 0
        %3702 = vperm.xlu0 %3701, %v2492
        %v3703 = vpop.permute.xlu0 %3702
        %3706 = vset.pattern.permute.xlu0 0
        %3707 = vperm.xlu0 %3706, %v2494
        %v3708 = vpop.permute.xlu0 %3707
        %3711 = vset.pattern.permute.xlu0 0
        %3712 = vperm.xlu0 %3711, %v2496
        %v3713 = vpop.permute.xlu0 %3712
        %3716 = vset.pattern.permute.xlu0 0
        %3717 = vperm.xlu0 %3716, %v2498
        %v3718 = vpop.permute.xlu0 %3717
        %3721 = vset.pattern.permute.xlu0 0
        %3722 = vperm.xlu0 %3721, %v2500
        %v3723 = vpop.permute.xlu0 %3722
        %3726 = vset.pattern.permute.xlu0 0
        %3727 = vperm.xlu0 %3726, %v2502
        %v3728 = vpop.permute.xlu0 %3727
        %3731 = vset.pattern.permute.xlu0 0
        %3732 = vperm.xlu0 %3731, %v2504
        %v3733 = vpop.permute.xlu0 %3732
        %3736 = vset.pattern.permute.xlu0 0
        %3737 = vperm.xlu0 %3736, %v2506
        %v3738 = vpop.permute.xlu0 %3737
        %3741 = vset.pattern.permute.xlu0 0
        %3742 = vperm.xlu0 %3741, %v2508
        %v3743 = vpop.permute.xlu0 %3742
        %3746 = vset.pattern.permute.xlu0 0
        %3747 = vperm.xlu0 %3746, %v2510
        %v3748 = vpop.permute.xlu0 %3747
        %3751 = vset.pattern.permute.xlu0 0
        %3752 = vperm.xlu0 %3751, %v2512
        %v3753 = vpop.permute.xlu0 %3752
        %3756 = vset.pattern.permute.xlu0 0
        %3757 = vperm.xlu0 %3756, %v2514
        %v3758 = vpop.permute.xlu0 %3757
        %3761 = vset.pattern.permute.xlu0 0
        %3762 = vperm.xlu0 %3761, %v2516
        %v3763 = vpop.permute.xlu0 %3762
        %3766 = vset.pattern.permute.xlu0 0
        %3767 = vperm.xlu0 %3766, %v2518
        %v3768 = vpop.permute.xlu0 %3767
        %3771 = vset.pattern.permute.xlu0 0
        %3772 = vperm.xlu0 %3771, %v2520
        %v3773 = vpop.permute.xlu0 %3772
        %3776 = vset.pattern.permute.xlu0 0
        %3777 = vperm.xlu0 %3776, %v2522
        %v3778 = vpop.permute.xlu0 %3777
        %3781 = vset.pattern.permute.xlu0 0
        %3782 = vperm.xlu0 %3781, %v2524
        %v3783 = vpop.permute.xlu0 %3782
        %3786 = vset.pattern.permute.xlu0 0
        %3787 = vperm.xlu0 %3786, %v2526
        %v3788 = vpop.permute.xlu0 %3787
        %3791 = vset.pattern.permute.xlu0 0
        %3792 = vperm.xlu0 %3791, %v2528
        %v3793 = vpop.permute.xlu0 %3792
        %3796 = vset.pattern.permute.xlu0 0
        %3797 = vperm.xlu0 %3796, %v2530
        %v3798 = vpop.permute.xlu0 %3797
        %3801 = vset.pattern.permute.xlu0 0
        %3802 = vperm.xlu0 %3801, %v2532
        %v3803 = vpop.permute.xlu0 %3802
        %3806 = vset.pattern.permute.xlu0 0
        %3807 = vperm.xlu0 %3806, %v2534
        %v3808 = vpop.permute.xlu0 %3807
        %3811 = vset.pattern.permute.xlu0 0
        %3812 = vperm.xlu0 %3811, %v2536
        %v3813 = vpop.permute.xlu0 %3812
        %3816 = vset.pattern.permute.xlu0 0
        %3817 = vperm.xlu0 %3816, %v2538
        %v3818 = vpop.permute.xlu0 %3817
        %3821 = vset.pattern.permute.xlu0 0
        %3822 = vperm.xlu0 %3821, %v2540
        %v3823 = vpop.permute.xlu0 %3822
        %3826 = vset.pattern.permute.xlu0 0
        %3827 = vperm.xlu0 %3826, %v2542
        %v3828 = vpop.permute.xlu0 %3827
        %3831 = vset.pattern.permute.xlu0 0
        %3832 = vperm.xlu0 %3831, %v2544
        %v3833 = vpop.permute.xlu0 %3832
        %3836 = vset.pattern.permute.xlu0 0
        %3837 = vperm.xlu0 %3836, %v2546
        %v3838 = vpop.permute.xlu0 %3837
        %v3840 = vmul.f32 %v732, %v3523
        %v3841 = vmul.f32 %v735, %v3528
        %v3842 = vmul.f32 %v740, %v3533
        %v3843 = vmul.f32 %v743, %v3538
        %v3844 = vmul.f32 %v748, %v3543
        %v3845 = vmul.f32 %v751, %v3548
        %v3846 = vmul.f32 %v756, %v3553
        %v3847 = vmul.f32 %v759, %v3558
        %v3848 = vmul.f32 %v764, %v3563
        %v3849 = vmul.f32 %v767, %v3568
        %v3850 = vmul.f32 %v772, %v3573
        %v3851 = vmul.f32 %v775, %v3578
        %v3852 = vmul.f32 %v780, %v3583
        %v3853 = vmul.f32 %v783, %v3588
        %v3854 = vmul.f32 %v788, %v3593
        %v3855 = vmul.f32 %v791, %v3598
        %v3856 = vmul.f32 %v796, %v3603
        %v3857 = vmul.f32 %v799, %v3608
        %v3858 = vmul.f32 %v804, %v3613
        %v3859 = vmul.f32 %v807, %v3618
        %v3860 = vmul.f32 %v812, %v3623
        %v3861 = vmul.f32 %v815, %v3628
        %v3862 = vmul.f32 %v820, %v3633
        %v3863 = vmul.f32 %v823, %v3638
        %v3864 = vmul.f32 %v828, %v3643
        %v3865 = vmul.f32 %v831, %v3648
        %v3866 = vmul.f32 %v836, %v3653
        %v3867 = vmul.f32 %v839, %v3658
        %v3868 = vmul.f32 %v844, %v3663
        %v3869 = vmul.f32 %v847, %v3668
        %v3870 = vmul.f32 %v852, %v3673
        %v3871 = vmul.f32 %v855, %v3678
        %v3872 = vmul.f32 %v860, %v3683
        %v3873 = vmul.f32 %v863, %v3688
        %v3874 = vmul.f32 %v868, %v3693
        %v3875 = vmul.f32 %v871, %v3698
        %v3876 = vmul.f32 %v876, %v3703
        %v3877 = vmul.f32 %v879, %v3708
        %v3878 = vmul.f32 %v884, %v3713
        %v3879 = vmul.f32 %v887, %v3718
        %v3880 = vmul.f32 %v892, %v3723
        %v3881 = vmul.f32 %v895, %v3728
        %v3882 = vmul.f32 %v900, %v3733
        %v3883 = vmul.f32 %v903, %v3738
        %v3884 = vmul.f32 %v908, %v3743
        %v3885 = vmul.f32 %v911, %v3748
        %v3886 = vmul.f32 %v916, %v3753
        %v3887 = vmul.f32 %v919, %v3758
        %v3888 = vmul.f32 %v924, %v3763
        %v3889 = vmul.f32 %v927, %v3768
        %v3890 = vmul.f32 %v932, %v3773
        %v3891 = vmul.f32 %v935, %v3778
        %v3892 = vmul.f32 %v940, %v3783
        %v3893 = vmul.f32 %v943, %v3788
        %v3894 = vmul.f32 %v948, %v3793
        %v3895 = vmul.f32 %v951, %v3798
        %v3896 = vmul.f32 %v956, %v3803
        %v3897 = vmul.f32 %v959, %v3808
        %v3898 = vmul.f32 %v964, %v3813
        %v3899 = vmul.f32 %v967, %v3818
        %v3900 = vmul.f32 %v972, %v3823
        %v3901 = vmul.f32 %v975, %v3828
        %v3902 = vmul.f32 %v980, %v3833
        %v3903 = vmul.f32 %v983, %v3838
        %v3904 = vadd.f32 %v3840, %v3841
        %v3905 = vrot.slane %v3904, 4
        %v3906 = vadd.f32 %v3904, %v3905
        %v3907 = vrot.slane %v3906, 2
        %v3908 = vadd.f32 %v3906, %v3907
        %v3909 = vrot.slane %v3908, 1
        %v3910 = vadd.f32 %v3908, %v3909
        %v3911 = vadd.f32 %v3842, %v3843
        %v3912 = vrot.slane %v3911, 4
        %v3913 = vadd.f32 %v3911, %v3912
        %v3914 = vrot.slane %v3913, 2
        %v3915 = vadd.f32 %v3913, %v3914
        %v3916 = vrot.slane %v3915, 1
        %v3917 = vadd.f32 %v3915, %v3916
        %v3918 = vadd.f32 %v3844, %v3845
        %v3919 = vrot.slane %v3918, 4
        %v3920 = vadd.f32 %v3918, %v3919
        %v3921 = vrot.slane %v3920, 2
        %v3922 = vadd.f32 %v3920, %v3921
        %v3923 = vrot.slane %v3922, 1
        %v3924 = vadd.f32 %v3922, %v3923
        %v3925 = vadd.f32 %v3846, %v3847
        %v3926 = vrot.slane %v3925, 4
        %v3927 = vadd.f32 %v3925, %v3926
        %v3928 = vrot.slane %v3927, 2
        %v3929 = vadd.f32 %v3927, %v3928
        %v3930 = vrot.slane %v3929, 1
        %v3931 = vadd.f32 %v3929, %v3930
        %v3932 = vadd.f32 %v3848, %v3849
        %v3933 = vrot.slane %v3932, 4
        %v3934 = vadd.f32 %v3932, %v3933
        %v3935 = vrot.slane %v3934, 2
        %v3936 = vadd.f32 %v3934, %v3935
        %v3937 = vrot.slane %v3936, 1
        %v3938 = vadd.f32 %v3936, %v3937
        %v3939 = vadd.f32 %v3850, %v3851
        %v3940 = vrot.slane %v3939, 4
        %v3941 = vadd.f32 %v3939, %v3940
        %v3942 = vrot.slane %v3941, 2
        %v3943 = vadd.f32 %v3941, %v3942
        %v3944 = vrot.slane %v3943, 1
        %v3945 = vadd.f32 %v3943, %v3944
        %v3946 = vadd.f32 %v3852, %v3853
        %v3947 = vrot.slane %v3946, 4
        %v3948 = vadd.f32 %v3946, %v3947
        %v3949 = vrot.slane %v3948, 2
        %v3950 = vadd.f32 %v3948, %v3949
        %v3951 = vrot.slane %v3950, 1
        %v3952 = vadd.f32 %v3950, %v3951
        %v3953 = vadd.f32 %v3854, %v3855
        %v3954 = vrot.slane %v3953, 4
        %v3955 = vadd.f32 %v3953, %v3954
        %v3956 = vrot.slane %v3955, 2
        %v3957 = vadd.f32 %v3955, %v3956
        %v3958 = vrot.slane %v3957, 1
        %v3959 = vadd.f32 %v3957, %v3958
        %v3960 = vadd.f32 %v3856, %v3857
        %v3961 = vrot.slane %v3960, 4
        %v3962 = vadd.f32 %v3960, %v3961
        %v3963 = vrot.slane %v3962, 2
        %v3964 = vadd.f32 %v3962, %v3963
        %v3965 = vrot.slane %v3964, 1
        %v3966 = vadd.f32 %v3964, %v3965
        %v3967 = vadd.f32 %v3858, %v3859
        %v3968 = vrot.slane %v3967, 4
        %v3969 = vadd.f32 %v3967, %v3968
        %v3970 = vrot.slane %v3969, 2
        %v3971 = vadd.f32 %v3969, %v3970
        %v3972 = vrot.slane %v3971, 1
        %v3973 = vadd.f32 %v3971, %v3972
        %v3974 = vadd.f32 %v3860, %v3861
        %v3975 = vrot.slane %v3974, 4
        %v3976 = vadd.f32 %v3974, %v3975
        %v3977 = vrot.slane %v3976, 2
        %v3978 = vadd.f32 %v3976, %v3977
        %v3979 = vrot.slane %v3978, 1
        %v3980 = vadd.f32 %v3978, %v3979
        %v3981 = vadd.f32 %v3862, %v3863
        %v3982 = vrot.slane %v3981, 4
        %v3983 = vadd.f32 %v3981, %v3982
        %v3984 = vrot.slane %v3983, 2
        %v3985 = vadd.f32 %v3983, %v3984
        %v3986 = vrot.slane %v3985, 1
        %v3987 = vadd.f32 %v3985, %v3986
        %v3988 = vadd.f32 %v3864, %v3865
        %v3989 = vrot.slane %v3988, 4
        %v3990 = vadd.f32 %v3988, %v3989
        %v3991 = vrot.slane %v3990, 2
        %v3992 = vadd.f32 %v3990, %v3991
        %v3993 = vrot.slane %v3992, 1
        %v3994 = vadd.f32 %v3992, %v3993
        %v3995 = vadd.f32 %v3866, %v3867
        %v3996 = vrot.slane %v3995, 4
        %v3997 = vadd.f32 %v3995, %v3996
        %v3998 = vrot.slane %v3997, 2
        %v3999 = vadd.f32 %v3997, %v3998
        %v4000 = vrot.slane %v3999, 1
        %v4001 = vadd.f32 %v3999, %v4000
        %v4002 = vadd.f32 %v3868, %v3869
        %v4003 = vrot.slane %v4002, 4
        %v4004 = vadd.f32 %v4002, %v4003
        %v4005 = vrot.slane %v4004, 2
        %v4006 = vadd.f32 %v4004, %v4005
        %v4007 = vrot.slane %v4006, 1
        %v4008 = vadd.f32 %v4006, %v4007
        %v4009 = vadd.f32 %v3870, %v3871
        %v4010 = vrot.slane %v4009, 4
        %v4011 = vadd.f32 %v4009, %v4010
        %v4012 = vrot.slane %v4011, 2
        %v4013 = vadd.f32 %v4011, %v4012
        %v4014 = vrot.slane %v4013, 1
        %v4015 = vadd.f32 %v4013, %v4014
        %v4016 = vadd.f32 %v3872, %v3873
        %v4017 = vrot.slane %v4016, 4
        %v4018 = vadd.f32 %v4016, %v4017
        %v4019 = vrot.slane %v4018, 2
        %v4020 = vadd.f32 %v4018, %v4019
        %v4021 = vrot.slane %v4020, 1
        %v4022 = vadd.f32 %v4020, %v4021
        %v4023 = vadd.f32 %v3874, %v3875
        %v4024 = vrot.slane %v4023, 4
        %v4025 = vadd.f32 %v4023, %v4024
        %v4026 = vrot.slane %v4025, 2
        %v4027 = vadd.f32 %v4025, %v4026
        %v4028 = vrot.slane %v4027, 1
        %v4029 = vadd.f32 %v4027, %v4028
        %v4030 = vadd.f32 %v3876, %v3877
        %v4031 = vrot.slane %v4030, 4
        %v4032 = vadd.f32 %v4030, %v4031
        %v4033 = vrot.slane %v4032, 2
        %v4034 = vadd.f32 %v4032, %v4033
        %v4035 = vrot.slane %v4034, 1
        %v4036 = vadd.f32 %v4034, %v4035
        %v4037 = vadd.f32 %v3878, %v3879
        %v4038 = vrot.slane %v4037, 4
        %v4039 = vadd.f32 %v4037, %v4038
        %v4040 = vrot.slane %v4039, 2
        %v4041 = vadd.f32 %v4039, %v4040
        %v4042 = vrot.slane %v4041, 1
        %v4043 = vadd.f32 %v4041, %v4042
        %v4044 = vadd.f32 %v3880, %v3881
        %v4045 = vrot.slane %v4044, 4
        %v4046 = vadd.f32 %v4044, %v4045
        %v4047 = vrot.slane %v4046, 2
        %v4048 = vadd.f32 %v4046, %v4047
        %v4049 = vrot.slane %v4048, 1
        %v4050 = vadd.f32 %v4048, %v4049
        %v4051 = vadd.f32 %v3882, %v3883
        %v4052 = vrot.slane %v4051, 4
        %v4053 = vadd.f32 %v4051, %v4052
        %v4054 = vrot.slane %v4053, 2
        %v4055 = vadd.f32 %v4053, %v4054
        %v4056 = vrot.slane %v4055, 1
        %v4057 = vadd.f32 %v4055, %v4056
        %v4058 = vadd.f32 %v3884, %v3885
        %v4059 = vrot.slane %v4058, 4
        %v4060 = vadd.f32 %v4058, %v4059
        %v4061 = vrot.slane %v4060, 2
        %v4062 = vadd.f32 %v4060, %v4061
        %v4063 = vrot.slane %v4062, 1
        %v4064 = vadd.f32 %v4062, %v4063
        %v4065 = vadd.f32 %v3886, %v3887
        %v4066 = vrot.slane %v4065, 4
        %v4067 = vadd.f32 %v4065, %v4066
        %v4068 = vrot.slane %v4067, 2
        %v4069 = vadd.f32 %v4067, %v4068
        %v4070 = vrot.slane %v4069, 1
        %v4071 = vadd.f32 %v4069, %v4070
        %v4072 = vadd.f32 %v3888, %v3889
        %v4073 = vrot.slane %v4072, 4
        %v4074 = vadd.f32 %v4072, %v4073
        %v4075 = vrot.slane %v4074, 2
        %v4076 = vadd.f32 %v4074, %v4075
        %v4077 = vrot.slane %v4076, 1
        %v4078 = vadd.f32 %v4076, %v4077
        %v4079 = vadd.f32 %v3890, %v3891
        %v4080 = vrot.slane %v4079, 4
        %v4081 = vadd.f32 %v4079, %v4080
        %v4082 = vrot.slane %v4081, 2
        %v4083 = vadd.f32 %v4081, %v4082
        %v4084 = vrot.slane %v4083, 1
        %v4085 = vadd.f32 %v4083, %v4084
        %v4086 = vadd.f32 %v3892, %v3893
        %v4087 = vrot.slane %v4086, 4
        %v4088 = vadd.f32 %v4086, %v4087
        %v4089 = vrot.slane %v4088, 2
        %v4090 = vadd.f32 %v4088, %v4089
        %v4091 = vrot.slane %v4090, 1
        %v4092 = vadd.f32 %v4090, %v4091
        %v4093 = vadd.f32 %v3894, %v3895
        %v4094 = vrot.slane %v4093, 4
        %v4095 = vadd.f32 %v4093, %v4094
        %v4096 = vrot.slane %v4095, 2
        %v4097 = vadd.f32 %v4095, %v4096
        %v4098 = vrot.slane %v4097, 1
        %v4099 = vadd.f32 %v4097, %v4098
        %v4100 = vadd.f32 %v3896, %v3897
        %v4101 = vrot.slane %v4100, 4
        %v4102 = vadd.f32 %v4100, %v4101
        %v4103 = vrot.slane %v4102, 2
        %v4104 = vadd.f32 %v4102, %v4103
        %v4105 = vrot.slane %v4104, 1
        %v4106 = vadd.f32 %v4104, %v4105
        %v4107 = vadd.f32 %v3898, %v3899
        %v4108 = vrot.slane %v4107, 4
        %v4109 = vadd.f32 %v4107, %v4108
        %v4110 = vrot.slane %v4109, 2
        %v4111 = vadd.f32 %v4109, %v4110
        %v4112 = vrot.slane %v4111, 1
        %v4113 = vadd.f32 %v4111, %v4112
        %v4114 = vadd.f32 %v3900, %v3901
        %v4115 = vrot.slane %v4114, 4
        %v4116 = vadd.f32 %v4114, %v4115
        %v4117 = vrot.slane %v4116, 2
        %v4118 = vadd.f32 %v4116, %v4117
        %v4119 = vrot.slane %v4118, 1
        %v4120 = vadd.f32 %v4118, %v4119
        %v4121 = vadd.f32 %v3902, %v3903
        %v4122 = vrot.slane %v4121, 4
        %v4123 = vadd.f32 %v4121, %v4122
        %v4124 = vrot.slane %v4123, 2
        %v4125 = vadd.f32 %v4123, %v4124
        %v4126 = vrot.slane %v4125, 1
        %v4127 = vadd.f32 %v4125, %v4126
        %v4161 = vunpack.c.l.s4 1966171168
        %v4162 = vunpack.c.0.s8 %v4161
        %v4163 = vlaneseq
        %v4164 = vshrl.u32 %v4163, 7
        %v4165 = vsub.s32 %v4162, %v4164
        %v4166 = vrot.slane %v3910, %v4165
        %v4168 = vunpack.c.l.s4 1966171168
        %v4169 = vunpack.c.0.s8 %v4168
        %v4170 = vlaneseq
        %v4171 = vshrl.u32 %v4170, 7
        %v4172 = vsub.s32 %v4169, %v4171
        %v4173 = vrot.slane %v4166, %v4172
        %v4175 = vunpack.c.l.s4 1966171168
        %v4176 = vunpack.c.0.s8 %v4175
        %v4177 = vlaneseq
        %v4178 = vshrl.u32 %v4177, 7
        %v4179 = vsub.s32 %v4176, %v4178
        %v4180 = vrot.slane %v3917, %v4179
        %v4182 = vunpack.c.l.s4 1966171168
        %v4183 = vunpack.c.0.s8 %v4182
        %v4184 = vlaneseq
        %v4185 = vshrl.u32 %v4184, 7
        %v4186 = vsub.s32 %v4183, %v4185
        %v4187 = vrot.slane %v4180, %v4186
        %v4189 = vunpack.c.l.s4 1966171168
        %v4190 = vunpack.c.0.s8 %v4189
        %v4191 = vlaneseq
        %v4192 = vshrl.u32 %v4191, 7
        %v4193 = vsub.s32 %v4190, %v4192
        %v4194 = vrot.slane %v3924, %v4193
        %v4196 = vunpack.c.l.s4 1966171168
        %v4197 = vunpack.c.0.s8 %v4196
        %v4198 = vlaneseq
        %v4199 = vshrl.u32 %v4198, 7
        %v4200 = vsub.s32 %v4197, %v4199
        %v4201 = vrot.slane %v4194, %v4200
        %v4203 = vunpack.c.l.s4 1966171168
        %v4204 = vunpack.c.0.s8 %v4203
        %v4205 = vlaneseq
        %v4206 = vshrl.u32 %v4205, 7
        %v4207 = vsub.s32 %v4204, %v4206
        %v4208 = vrot.slane %v3931, %v4207
        %v4210 = vunpack.c.l.s4 1966171168
        %v4211 = vunpack.c.0.s8 %v4210
        %v4212 = vlaneseq
        %v4213 = vshrl.u32 %v4212, 7
        %v4214 = vsub.s32 %v4211, %v4213
        %v4215 = vrot.slane %v4208, %v4214
        %v4217 = vunpack.c.l.s4 1966171168
        %v4218 = vunpack.c.0.s8 %v4217
        %v4219 = vlaneseq
        %v4220 = vshrl.u32 %v4219, 7
        %v4221 = vsub.s32 %v4218, %v4220
        %v4222 = vrot.slane %v3938, %v4221
        %v4224 = vunpack.c.l.s4 1966171168
        %v4225 = vunpack.c.0.s8 %v4224
        %v4226 = vlaneseq
        %v4227 = vshrl.u32 %v4226, 7
        %v4228 = vsub.s32 %v4225, %v4227
        %v4229 = vrot.slane %v4222, %v4228
        %v4231 = vunpack.c.l.s4 1966171168
        %v4232 = vunpack.c.0.s8 %v4231
        %v4233 = vlaneseq
        %v4234 = vshrl.u32 %v4233, 7
        %v4235 = vsub.s32 %v4232, %v4234
        %v4236 = vrot.slane %v3945, %v4235
        %v4238 = vunpack.c.l.s4 1966171168
        %v4239 = vunpack.c.0.s8 %v4238
        %v4240 = vlaneseq
        %v4241 = vshrl.u32 %v4240, 7
        %v4242 = vsub.s32 %v4239, %v4241
        %v4243 = vrot.slane %v4236, %v4242
        %v4245 = vunpack.c.l.s4 1966171168
        %v4246 = vunpack.c.0.s8 %v4245
        %v4247 = vlaneseq
        %v4248 = vshrl.u32 %v4247, 7
        %v4249 = vsub.s32 %v4246, %v4248
        %v4250 = vrot.slane %v3952, %v4249
        %v4252 = vunpack.c.l.s4 1966171168
        %v4253 = vunpack.c.0.s8 %v4252
        %v4254 = vlaneseq
        %v4255 = vshrl.u32 %v4254, 7
        %v4256 = vsub.s32 %v4253, %v4255
        %v4257 = vrot.slane %v4250, %v4256
        %v4259 = vunpack.c.l.s4 1966171168
        %v4260 = vunpack.c.0.s8 %v4259
        %v4261 = vlaneseq
        %v4262 = vshrl.u32 %v4261, 7
        %v4263 = vsub.s32 %v4260, %v4262
        %v4264 = vrot.slane %v3959, %v4263
        %v4266 = vunpack.c.l.s4 1966171168
        %v4267 = vunpack.c.0.s8 %v4266
        %v4268 = vlaneseq
        %v4269 = vshrl.u32 %v4268, 7
        %v4270 = vsub.s32 %v4267, %v4269
        %v4271 = vrot.slane %v4264, %v4270
        %v4273 = vunpack.c.l.s4 1966171168
        %v4274 = vunpack.c.0.s8 %v4273
        %v4275 = vlaneseq
        %v4276 = vshrl.u32 %v4275, 7
        %v4277 = vsub.s32 %v4274, %v4276
        %v4278 = vrot.slane %v3966, %v4277
        %v4280 = vunpack.c.l.s4 1966171168
        %v4281 = vunpack.c.0.s8 %v4280
        %v4282 = vlaneseq
        %v4283 = vshrl.u32 %v4282, 7
        %v4284 = vsub.s32 %v4281, %v4283
        %v4285 = vrot.slane %v4278, %v4284
        %v4287 = vunpack.c.l.s4 1966171168
        %v4288 = vunpack.c.0.s8 %v4287
        %v4289 = vlaneseq
        %v4290 = vshrl.u32 %v4289, 7
        %v4291 = vsub.s32 %v4288, %v4290
        %v4292 = vrot.slane %v3973, %v4291
        %v4294 = vunpack.c.l.s4 1966171168
        %v4295 = vunpack.c.0.s8 %v4294
        %v4296 = vlaneseq
        %v4297 = vshrl.u32 %v4296, 7
        %v4298 = vsub.s32 %v4295, %v4297
        %v4299 = vrot.slane %v4292, %v4298
        %v4301 = vunpack.c.l.s4 1966171168
        %v4302 = vunpack.c.0.s8 %v4301
        %v4303 = vlaneseq
        %v4304 = vshrl.u32 %v4303, 7
        %v4305 = vsub.s32 %v4302, %v4304
        %v4306 = vrot.slane %v3980, %v4305
        %v4308 = vunpack.c.l.s4 1966171168
        %v4309 = vunpack.c.0.s8 %v4308
        %v4310 = vlaneseq
        %v4311 = vshrl.u32 %v4310, 7
        %v4312 = vsub.s32 %v4309, %v4311
        %v4313 = vrot.slane %v4306, %v4312
        %v4315 = vunpack.c.l.s4 1966171168
        %v4316 = vunpack.c.0.s8 %v4315
        %v4317 = vlaneseq
        %v4318 = vshrl.u32 %v4317, 7
        %v4319 = vsub.s32 %v4316, %v4318
        %v4320 = vrot.slane %v3987, %v4319
        %v4322 = vunpack.c.l.s4 1966171168
        %v4323 = vunpack.c.0.s8 %v4322
        %v4324 = vlaneseq
        %v4325 = vshrl.u32 %v4324, 7
        %v4326 = vsub.s32 %v4323, %v4325
        %v4327 = vrot.slane %v4320, %v4326
        %v4329 = vunpack.c.l.s4 1966171168
        %v4330 = vunpack.c.0.s8 %v4329
        %v4331 = vlaneseq
        %v4332 = vshrl.u32 %v4331, 7
        %v4333 = vsub.s32 %v4330, %v4332
        %v4334 = vrot.slane %v3994, %v4333
        %v4336 = vunpack.c.l.s4 1966171168
        %v4337 = vunpack.c.0.s8 %v4336
        %v4338 = vlaneseq
        %v4339 = vshrl.u32 %v4338, 7
        %v4340 = vsub.s32 %v4337, %v4339
        %v4341 = vrot.slane %v4334, %v4340
        %v4343 = vunpack.c.l.s4 1966171168
        %v4344 = vunpack.c.0.s8 %v4343
        %v4345 = vlaneseq
        %v4346 = vshrl.u32 %v4345, 7
        %v4347 = vsub.s32 %v4344, %v4346
        %v4348 = vrot.slane %v4001, %v4347
        %v4350 = vunpack.c.l.s4 1966171168
        %v4351 = vunpack.c.0.s8 %v4350
        %v4352 = vlaneseq
        %v4353 = vshrl.u32 %v4352, 7
        %v4354 = vsub.s32 %v4351, %v4353
        %v4355 = vrot.slane %v4348, %v4354
        %v4357 = vunpack.c.l.s4 1966171168
        %v4358 = vunpack.c.0.s8 %v4357
        %v4359 = vlaneseq
        %v4360 = vshrl.u32 %v4359, 7
        %v4361 = vsub.s32 %v4358, %v4360
        %v4362 = vrot.slane %v4008, %v4361
        %v4364 = vunpack.c.l.s4 1966171168
        %v4365 = vunpack.c.0.s8 %v4364
        %v4366 = vlaneseq
        %v4367 = vshrl.u32 %v4366, 7
        %v4368 = vsub.s32 %v4365, %v4367
        %v4369 = vrot.slane %v4362, %v4368
        %v4371 = vunpack.c.l.s4 1966171168
        %v4372 = vunpack.c.0.s8 %v4371
        %v4373 = vlaneseq
        %v4374 = vshrl.u32 %v4373, 7
        %v4375 = vsub.s32 %v4372, %v4374
        %v4376 = vrot.slane %v4015, %v4375
        %v4378 = vunpack.c.l.s4 1966171168
        %v4379 = vunpack.c.0.s8 %v4378
        %v4380 = vlaneseq
        %v4381 = vshrl.u32 %v4380, 7
        %v4382 = vsub.s32 %v4379, %v4381
        %v4383 = vrot.slane %v4376, %v4382
        %v4385 = vunpack.c.l.s4 1966171168
        %v4386 = vunpack.c.0.s8 %v4385
        %v4387 = vlaneseq
        %v4388 = vshrl.u32 %v4387, 7
        %v4389 = vsub.s32 %v4386, %v4388
        %v4390 = vrot.slane %v4022, %v4389
        %v4392 = vunpack.c.l.s4 1966171168
        %v4393 = vunpack.c.0.s8 %v4392
        %v4394 = vlaneseq
        %v4395 = vshrl.u32 %v4394, 7
        %v4396 = vsub.s32 %v4393, %v4395
        %v4397 = vrot.slane %v4390, %v4396
        %v4399 = vunpack.c.l.s4 1966171168
        %v4400 = vunpack.c.0.s8 %v4399
        %v4401 = vlaneseq
        %v4402 = vshrl.u32 %v4401, 7
        %v4403 = vsub.s32 %v4400, %v4402
        %v4404 = vrot.slane %v4029, %v4403
        %v4406 = vunpack.c.l.s4 1966171168
        %v4407 = vunpack.c.0.s8 %v4406
        %v4408 = vlaneseq
        %v4409 = vshrl.u32 %v4408, 7
        %v4410 = vsub.s32 %v4407, %v4409
        %v4411 = vrot.slane %v4404, %v4410
        %v4413 = vunpack.c.l.s4 1966171168
        %v4414 = vunpack.c.0.s8 %v4413
        %v4415 = vlaneseq
        %v4416 = vshrl.u32 %v4415, 7
        %v4417 = vsub.s32 %v4414, %v4416
        %v4418 = vrot.slane %v4036, %v4417
        %v4420 = vunpack.c.l.s4 1966171168
        %v4421 = vunpack.c.0.s8 %v4420
        %v4422 = vlaneseq
        %v4423 = vshrl.u32 %v4422, 7
        %v4424 = vsub.s32 %v4421, %v4423
        %v4425 = vrot.slane %v4418, %v4424
        %v4427 = vunpack.c.l.s4 1966171168
        %v4428 = vunpack.c.0.s8 %v4427
        %v4429 = vlaneseq
        %v4430 = vshrl.u32 %v4429, 7
        %v4431 = vsub.s32 %v4428, %v4430
        %v4432 = vrot.slane %v4043, %v4431
        %v4434 = vunpack.c.l.s4 1966171168
        %v4435 = vunpack.c.0.s8 %v4434
        %v4436 = vlaneseq
        %v4437 = vshrl.u32 %v4436, 7
        %v4438 = vsub.s32 %v4435, %v4437
        %v4439 = vrot.slane %v4432, %v4438
        %v4441 = vunpack.c.l.s4 1966171168
        %v4442 = vunpack.c.0.s8 %v4441
        %v4443 = vlaneseq
        %v4444 = vshrl.u32 %v4443, 7
        %v4445 = vsub.s32 %v4442, %v4444
        %v4446 = vrot.slane %v4050, %v4445
        %v4448 = vunpack.c.l.s4 1966171168
        %v4449 = vunpack.c.0.s8 %v4448
        %v4450 = vlaneseq
        %v4451 = vshrl.u32 %v4450, 7
        %v4452 = vsub.s32 %v4449, %v4451
        %v4453 = vrot.slane %v4446, %v4452
        %v4455 = vunpack.c.l.s4 1966171168
        %v4456 = vunpack.c.0.s8 %v4455
        %v4457 = vlaneseq
        %v4458 = vshrl.u32 %v4457, 7
        %v4459 = vsub.s32 %v4456, %v4458
        %v4460 = vrot.slane %v4057, %v4459
        %v4462 = vunpack.c.l.s4 1966171168
        %v4463 = vunpack.c.0.s8 %v4462
        %v4464 = vlaneseq
        %v4465 = vshrl.u32 %v4464, 7
        %v4466 = vsub.s32 %v4463, %v4465
        %v4467 = vrot.slane %v4460, %v4466
        %v4469 = vunpack.c.l.s4 1966171168
        %v4470 = vunpack.c.0.s8 %v4469
        %v4471 = vlaneseq
        %v4472 = vshrl.u32 %v4471, 7
        %v4473 = vsub.s32 %v4470, %v4472
        %v4474 = vrot.slane %v4064, %v4473
        %v4476 = vunpack.c.l.s4 1966171168
        %v4477 = vunpack.c.0.s8 %v4476
        %v4478 = vlaneseq
        %v4479 = vshrl.u32 %v4478, 7
        %v4480 = vsub.s32 %v4477, %v4479
        %v4481 = vrot.slane %v4474, %v4480
        %v4483 = vunpack.c.l.s4 1966171168
        %v4484 = vunpack.c.0.s8 %v4483
        %v4485 = vlaneseq
        %v4486 = vshrl.u32 %v4485, 7
        %v4487 = vsub.s32 %v4484, %v4486
        %v4488 = vrot.slane %v4071, %v4487
        %v4490 = vunpack.c.l.s4 1966171168
        %v4491 = vunpack.c.0.s8 %v4490
        %v4492 = vlaneseq
        %v4493 = vshrl.u32 %v4492, 7
        %v4494 = vsub.s32 %v4491, %v4493
        %v4495 = vrot.slane %v4488, %v4494
        %v4497 = vunpack.c.l.s4 1966171168
        %v4498 = vunpack.c.0.s8 %v4497
        %v4499 = vlaneseq
        %v4500 = vshrl.u32 %v4499, 7
        %v4501 = vsub.s32 %v4498, %v4500
        %v4502 = vrot.slane %v4078, %v4501
        %v4504 = vunpack.c.l.s4 1966171168
        %v4505 = vunpack.c.0.s8 %v4504
        %v4506 = vlaneseq
        %v4507 = vshrl.u32 %v4506, 7
        %v4508 = vsub.s32 %v4505, %v4507
        %v4509 = vrot.slane %v4502, %v4508
        %v4511 = vunpack.c.l.s4 1966171168
        %v4512 = vunpack.c.0.s8 %v4511
        %v4513 = vlaneseq
        %v4514 = vshrl.u32 %v4513, 7
        %v4515 = vsub.s32 %v4512, %v4514
        %v4516 = vrot.slane %v4085, %v4515
        %v4518 = vunpack.c.l.s4 1966171168
        %v4519 = vunpack.c.0.s8 %v4518
        %v4520 = vlaneseq
        %v4521 = vshrl.u32 %v4520, 7
        %v4522 = vsub.s32 %v4519, %v4521
        %v4523 = vrot.slane %v4516, %v4522
        %v4525 = vunpack.c.l.s4 1966171168
        %v4526 = vunpack.c.0.s8 %v4525
        %v4527 = vlaneseq
        %v4528 = vshrl.u32 %v4527, 7
        %v4529 = vsub.s32 %v4526, %v4528
        %v4530 = vrot.slane %v4092, %v4529
        %v4532 = vunpack.c.l.s4 1966171168
        %v4533 = vunpack.c.0.s8 %v4532
        %v4534 = vlaneseq
        %v4535 = vshrl.u32 %v4534, 7
        %v4536 = vsub.s32 %v4533, %v4535
        %v4537 = vrot.slane %v4530, %v4536
        %v4539 = vunpack.c.l.s4 1966171168
        %v4540 = vunpack.c.0.s8 %v4539
        %v4541 = vlaneseq
        %v4542 = vshrl.u32 %v4541, 7
        %v4543 = vsub.s32 %v4540, %v4542
        %v4544 = vrot.slane %v4099, %v4543
        %v4546 = vunpack.c.l.s4 1966171168
        %v4547 = vunpack.c.0.s8 %v4546
        %v4548 = vlaneseq
        %v4549 = vshrl.u32 %v4548, 7
        %v4550 = vsub.s32 %v4547, %v4549
        %v4551 = vrot.slane %v4544, %v4550
        %v4553 = vunpack.c.l.s4 1966171168
        %v4554 = vunpack.c.0.s8 %v4553
        %v4555 = vlaneseq
        %v4556 = vshrl.u32 %v4555, 7
        %v4557 = vsub.s32 %v4554, %v4556
        %v4558 = vrot.slane %v4106, %v4557
        %v4560 = vunpack.c.l.s4 1966171168
        %v4561 = vunpack.c.0.s8 %v4560
        %v4562 = vlaneseq
        %v4563 = vshrl.u32 %v4562, 7
        %v4564 = vsub.s32 %v4561, %v4563
        %v4565 = vrot.slane %v4558, %v4564
        %v4567 = vunpack.c.l.s4 1966171168
        %v4568 = vunpack.c.0.s8 %v4567
        %v4569 = vlaneseq
        %v4570 = vshrl.u32 %v4569, 7
        %v4571 = vsub.s32 %v4568, %v4570
        %v4572 = vrot.slane %v4113, %v4571
        %v4574 = vunpack.c.l.s4 1966171168
        %v4575 = vunpack.c.0.s8 %v4574
        %v4576 = vlaneseq
        %v4577 = vshrl.u32 %v4576, 7
        %v4578 = vsub.s32 %v4575, %v4577
        %v4579 = vrot.slane %v4572, %v4578
        %v4581 = vunpack.c.l.s4 1966171168
        %v4582 = vunpack.c.0.s8 %v4581
        %v4583 = vlaneseq
        %v4584 = vshrl.u32 %v4583, 7
        %v4585 = vsub.s32 %v4582, %v4584
        %v4586 = vrot.slane %v4120, %v4585
        %v4588 = vunpack.c.l.s4 1966171168
        %v4589 = vunpack.c.0.s8 %v4588
        %v4590 = vlaneseq
        %v4591 = vshrl.u32 %v4590, 7
        %v4592 = vsub.s32 %v4589, %v4591
        %v4593 = vrot.slane %v4586, %v4592
        %v4595 = vunpack.c.l.s4 1966171168
        %v4596 = vunpack.c.0.s8 %v4595
        %v4597 = vlaneseq
        %v4598 = vshrl.u32 %v4597, 7
        %v4599 = vsub.s32 %v4596, %v4598
        %v4600 = vrot.slane %v4127, %v4599
        %v4602 = vunpack.c.l.s4 1966171168
        %v4603 = vunpack.c.0.s8 %v4602
        %v4604 = vlaneseq
        %v4605 = vshrl.u32 %v4604, 7
        %v4606 = vsub.s32 %v4603, %v4605
        %v4607 = vrot.slane %v4600, %v4606
        %v4640 = vadd.f32 %v3488, %v4173
        %v4641 = vadd.f32 %v3489, %v4187
        %v4642 = vadd.f32 %v3490, %v4201
        %v4643 = vadd.f32 %v3491, %v4215
        %v4644 = vadd.f32 %v3492, %v4229
        %v4645 = vadd.f32 %v3493, %v4243
        %v4646 = vadd.f32 %v3494, %v4257
        %v4647 = vadd.f32 %v3495, %v4271
        %v4648 = vadd.f32 %v3496, %v4285
        %v4649 = vadd.f32 %v3497, %v4299
        %v4650 = vadd.f32 %v3498, %v4313
        %v4651 = vadd.f32 %v3499, %v4327
        %v4652 = vadd.f32 %v3500, %v4341
        %v4653 = vadd.f32 %v3501, %v4355
        %v4654 = vadd.f32 %v3502, %v4369
        %v4655 = vadd.f32 %v3503, %v4383
        %v4656 = vadd.f32 %v3504, %v4397
        %v4657 = vadd.f32 %v3505, %v4411
        %v4658 = vadd.f32 %v3506, %v4425
        %v4659 = vadd.f32 %v3507, %v4439
        %v4660 = vadd.f32 %v3508, %v4453
        %v4661 = vadd.f32 %v3509, %v4467
        %v4662 = vadd.f32 %v3510, %v4481
        %v4663 = vadd.f32 %v3511, %v4495
        %v4664 = vadd.f32 %v3512, %v4509
        %v4665 = vadd.f32 %v3513, %v4523
        %v4666 = vadd.f32 %v3514, %v4537
        %v4667 = vadd.f32 %v3515, %v4551
        %v4668 = vadd.f32 %v3516, %v4565
        %v4669 = vadd.f32 %v3517, %v4579
        %v4670 = vadd.f32 %v3518, %v4593
        %v4671 = vadd.f32 %v3519, %v4607
        %v4704 = vcombine.low %v4640, %v4641
        %v4705 = vcombine.low %v4642, %v4643
        %v4706 = vcombine.low %v4644, %v4645
        %v4707 = vcombine.low %v4646, %v4647
        %v4709 = vunpack.c.l.s4 1966171168
        %v4710 = vunpack.c.0.s8 %v4709
        %v4711 = vlaneseq
        %v4712 = vshrl.u32 %v4711, 7
        %v4713 = vsub.s32 %v4710, %v4712
        %v4714 = vrot.slane %v4704, %v4713
        %v4716 = vunpack.c.l.s4 1966171168
        %v4717 = vunpack.c.0.s8 %v4716
        %v4718 = vlaneseq
        %v4719 = vshrl.u32 %v4718, 7
        %v4720 = vsub.s32 %v4717, %v4719
        %v4721 = vrot.slane %v4705, %v4720
        %v4723 = vunpack.c.l.s4 1966171168
        %v4724 = vunpack.c.0.s8 %v4723
        %v4725 = vlaneseq
        %v4726 = vshrl.u32 %v4725, 7
        %v4727 = vsub.s32 %v4724, %v4726
        %v4728 = vrot.slane %v4706, %v4727
        %v4730 = vunpack.c.l.s4 1966171168
        %v4731 = vunpack.c.0.s8 %v4730
        %v4732 = vlaneseq
        %v4733 = vshrl.u32 %v4732, 7
        %v4734 = vsub.s32 %v4731, %v4733
        %v4735 = vrot.slane %v4707, %v4734
        %v4736 = vcombine.low %v4714, %v4721
        %v4737 = vcombine.low %v4728, %v4735
        %v4739 = vunpack.c.l.s4 1966171168
        %v4740 = vunpack.c.0.s8 %v4739
        %v4741 = vlaneseq
        %v4742 = vshrl.u32 %v4741, 7
        %v4743 = vsub.s32 %v4740, %v4742
        %v4744 = vrot.slane %v4736, %v4743
        %v4746 = vunpack.c.l.s4 1966171168
        %v4747 = vunpack.c.0.s8 %v4746
        %v4748 = vlaneseq
        %v4749 = vshrl.u32 %v4748, 7
        %v4750 = vsub.s32 %v4747, %v4749
        %v4751 = vrot.slane %v4737, %v4750
        %v4752 = vcombine.low %v4744, %v4751
        %v4753 = vcombine.low %v4648, %v4649
        %v4754 = vcombine.low %v4650, %v4651
        %v4755 = vcombine.low %v4652, %v4653
        %v4756 = vcombine.low %v4654, %v4655
        %v4758 = vunpack.c.l.s4 1966171168
        %v4759 = vunpack.c.0.s8 %v4758
        %v4760 = vlaneseq
        %v4761 = vshrl.u32 %v4760, 7
        %v4762 = vsub.s32 %v4759, %v4761
        %v4763 = vrot.slane %v4753, %v4762
        %v4765 = vunpack.c.l.s4 1966171168
        %v4766 = vunpack.c.0.s8 %v4765
        %v4767 = vlaneseq
        %v4768 = vshrl.u32 %v4767, 7
        %v4769 = vsub.s32 %v4766, %v4768
        %v4770 = vrot.slane %v4754, %v4769
        %v4772 = vunpack.c.l.s4 1966171168
        %v4773 = vunpack.c.0.s8 %v4772
        %v4774 = vlaneseq
        %v4775 = vshrl.u32 %v4774, 7
        %v4776 = vsub.s32 %v4773, %v4775
        %v4777 = vrot.slane %v4755, %v4776
        %v4779 = vunpack.c.l.s4 1966171168
        %v4780 = vunpack.c.0.s8 %v4779
        %v4781 = vlaneseq
        %v4782 = vshrl.u32 %v4781, 7
        %v4783 = vsub.s32 %v4780, %v4782
        %v4784 = vrot.slane %v4756, %v4783
        %v4785 = vcombine.low %v4763, %v4770
        %v4786 = vcombine.low %v4777, %v4784
        %v4788 = vunpack.c.l.s4 1966171168
        %v4789 = vunpack.c.0.s8 %v4788
        %v4790 = vlaneseq
        %v4791 = vshrl.u32 %v4790, 7
        %v4792 = vsub.s32 %v4789, %v4791
        %v4793 = vrot.slane %v4785, %v4792
        %v4795 = vunpack.c.l.s4 1966171168
        %v4796 = vunpack.c.0.s8 %v4795
        %v4797 = vlaneseq
        %v4798 = vshrl.u32 %v4797, 7
        %v4799 = vsub.s32 %v4796, %v4798
        %v4800 = vrot.slane %v4786, %v4799
        %v4801 = vcombine.low %v4793, %v4800
        %v4802 = vcombine.low %v4656, %v4657
        %v4803 = vcombine.low %v4658, %v4659
        %v4804 = vcombine.low %v4660, %v4661
        %v4805 = vcombine.low %v4662, %v4663
        %v4807 = vunpack.c.l.s4 1966171168
        %v4808 = vunpack.c.0.s8 %v4807
        %v4809 = vlaneseq
        %v4810 = vshrl.u32 %v4809, 7
        %v4811 = vsub.s32 %v4808, %v4810
        %v4812 = vrot.slane %v4802, %v4811
        %v4814 = vunpack.c.l.s4 1966171168
        %v4815 = vunpack.c.0.s8 %v4814
        %v4816 = vlaneseq
        %v4817 = vshrl.u32 %v4816, 7
        %v4818 = vsub.s32 %v4815, %v4817
        %v4819 = vrot.slane %v4803, %v4818
        %v4821 = vunpack.c.l.s4 1966171168
        %v4822 = vunpack.c.0.s8 %v4821
        %v4823 = vlaneseq
        %v4824 = vshrl.u32 %v4823, 7
        %v4825 = vsub.s32 %v4822, %v4824
        %v4826 = vrot.slane %v4804, %v4825
        %v4828 = vunpack.c.l.s4 1966171168
        %v4829 = vunpack.c.0.s8 %v4828
        %v4830 = vlaneseq
        %v4831 = vshrl.u32 %v4830, 7
        %v4832 = vsub.s32 %v4829, %v4831
        %v4833 = vrot.slane %v4805, %v4832
        %v4834 = vcombine.low %v4812, %v4819
        %v4835 = vcombine.low %v4826, %v4833
        %v4837 = vunpack.c.l.s4 1966171168
        %v4838 = vunpack.c.0.s8 %v4837
        %v4839 = vlaneseq
        %v4840 = vshrl.u32 %v4839, 7
        %v4841 = vsub.s32 %v4838, %v4840
        %v4842 = vrot.slane %v4834, %v4841
        %v4844 = vunpack.c.l.s4 1966171168
        %v4845 = vunpack.c.0.s8 %v4844
        %v4846 = vlaneseq
        %v4847 = vshrl.u32 %v4846, 7
        %v4848 = vsub.s32 %v4845, %v4847
        %v4849 = vrot.slane %v4835, %v4848
        %v4850 = vcombine.low %v4842, %v4849
        %v4851 = vcombine.low %v4664, %v4665
        %v4852 = vcombine.low %v4666, %v4667
        %v4853 = vcombine.low %v4668, %v4669
        %v4854 = vcombine.low %v4670, %v4671
        %v4856 = vunpack.c.l.s4 1966171168
        %v4857 = vunpack.c.0.s8 %v4856
        %v4858 = vlaneseq
        %v4859 = vshrl.u32 %v4858, 7
        %v4860 = vsub.s32 %v4857, %v4859
        %v4861 = vrot.slane %v4851, %v4860
        %v4863 = vunpack.c.l.s4 1966171168
        %v4864 = vunpack.c.0.s8 %v4863
        %v4865 = vlaneseq
        %v4866 = vshrl.u32 %v4865, 7
        %v4867 = vsub.s32 %v4864, %v4866
        %v4868 = vrot.slane %v4852, %v4867
        %v4870 = vunpack.c.l.s4 1966171168
        %v4871 = vunpack.c.0.s8 %v4870
        %v4872 = vlaneseq
        %v4873 = vshrl.u32 %v4872, 7
        %v4874 = vsub.s32 %v4871, %v4873
        %v4875 = vrot.slane %v4853, %v4874
        %v4877 = vunpack.c.l.s4 1966171168
        %v4878 = vunpack.c.0.s8 %v4877
        %v4879 = vlaneseq
        %v4880 = vshrl.u32 %v4879, 7
        %v4881 = vsub.s32 %v4878, %v4880
        %v4882 = vrot.slane %v4854, %v4881
        %v4883 = vcombine.low %v4861, %v4868
        %v4884 = vcombine.low %v4875, %v4882
        %v4886 = vunpack.c.l.s4 1966171168
        %v4887 = vunpack.c.0.s8 %v4886
        %v4888 = vlaneseq
        %v4889 = vshrl.u32 %v4888, 7
        %v4890 = vsub.s32 %v4887, %v4889
        %v4891 = vrot.slane %v4883, %v4890
        %v4893 = vunpack.c.l.s4 1966171168
        %v4894 = vunpack.c.0.s8 %v4893
        %v4895 = vlaneseq
        %v4896 = vshrl.u32 %v4895, 7
        %v4897 = vsub.s32 %v4894, %v4896
        %v4898 = vrot.slane %v4884, %v4897
        %v4899 = vcombine.low %v4891, %v4898
        %4904 = vst [vmem:[#allocation4] sm:$0xff] %v4752
        %4905 = vst [vmem:[#allocation4 + $0x8] sm:$0xff] %v4801
        %4906 = vst [vmem:[#allocation4 + $0x10] sm:$0xff] %v4850
        %4907 = vst [vmem:[#allocation4 + $0x18] sm:$0xff] %v4899
        %4908 = vst.msk [vmem:[#allocation2] sm:$0x1] %vm2931, %v2035
        %4909 = vst.msk [vmem:[#allocation2 + $0x1] sm:$0x1] %vm2931, %v2036
        %4910 = vst.msk [vmem:[#allocation2 + $0x2] sm:$0x1] %vm2931, %v2037
        %4911 = vst.msk [vmem:[#allocation2 + $0x3] sm:$0x1] %vm2931, %v2038
        %4912 = vst.msk [vmem:[#allocation2 + $0x4] sm:$0x1] %vm2931, %v2039
        %4913 = vst.msk [vmem:[#allocation2 + $0x5] sm:$0x1] %vm2931, %v2040
        %4914 = vst.msk [vmem:[#allocation2 + $0x6] sm:$0x1] %vm2931, %v2041
        %4915 = vst.msk [vmem:[#allocation2 + $0x7] sm:$0x1] %vm2931, %v2042
        %4916 = vst.msk [vmem:[#allocation2 + $0x8] sm:$0x1] %vm2931, %v2043
        %4917 = vst.msk [vmem:[#allocation2 + $0x9] sm:$0x1] %vm2931, %v2044
        %4918 = vst.msk [vmem:[#allocation2 + $0xa] sm:$0x1] %vm2931, %v2045
        %4919 = vst.msk [vmem:[#allocation2 + $0xb] sm:$0x1] %vm2931, %v2046
        %4920 = vst.msk [vmem:[#allocation2 + $0xc] sm:$0x1] %vm2931, %v2047
        %4921 = vst.msk [vmem:[#allocation2 + $0xd] sm:$0x1] %vm2931, %v2048
        %4922 = vst.msk [vmem:[#allocation2 + $0xe] sm:$0x1] %vm2931, %v2049
        %4923 = vst.msk [vmem:[#allocation2 + $0xf] sm:$0x1] %vm2931, %v2050
        %4924 = vst.msk [vmem:[#allocation2 + $0x10] sm:$0x1] %vm2931, %v2051
        %4925 = vst.msk [vmem:[#allocation2 + $0x11] sm:$0x1] %vm2931, %v2052
        %4926 = vst.msk [vmem:[#allocation2 + $0x12] sm:$0x1] %vm2931, %v2053
        %4927 = vst.msk [vmem:[#allocation2 + $0x13] sm:$0x1] %vm2931, %v2054
        %4928 = vst.msk [vmem:[#allocation2 + $0x14] sm:$0x1] %vm2931, %v2055
        %4929 = vst.msk [vmem:[#allocation2 + $0x15] sm:$0x1] %vm2931, %v2056
        %4930 = vst.msk [vmem:[#allocation2 + $0x16] sm:$0x1] %vm2931, %v2057
        %4931 = vst.msk [vmem:[#allocation2 + $0x17] sm:$0x1] %vm2931, %v2058
        %4932 = vst.msk [vmem:[#allocation2 + $0x18] sm:$0x1] %vm2931, %v2059
        %4933 = vst.msk [vmem:[#allocation2 + $0x19] sm:$0x1] %vm2931, %v2060
        %4934 = vst.msk [vmem:[#allocation2 + $0x1a] sm:$0x1] %vm2931, %v2061
        %4935 = vst.msk [vmem:[#allocation2 + $0x1b] sm:$0x1] %vm2931, %v2062
        %4936 = vst.msk [vmem:[#allocation2 + $0x1c] sm:$0x1] %vm2931, %v2063
        %4937 = vst.msk [vmem:[#allocation2 + $0x1d] sm:$0x1] %vm2931, %v2064
        %4938 = vst.msk [vmem:[#allocation2 + $0x1e] sm:$0x1] %vm2931, %v2065
        %4939 = vst.msk [vmem:[#allocation2 + $0x1f] sm:$0x1] %vm2931, %v2066
        // Predicated region
        $region49: #{tpu_custom_call.1} parent=39 // pred_check
          %p4940 = pneg %p264
        $region50: #{tpu_custom_call.1} parent=39 // pred_check_branch
          %4942 = sbr.rel (%p4940) target = $region52
        $region51: #{tpu_custom_call.1} parent=39 // pred_region
          %v4943 = vld [vmem:[#allocation3] sm:$0x1]
          %v4944 = vld [vmem:[#allocation3 + $0x1] sm:$0x1]
          %v4945 = vld [vmem:[#allocation3 + $0x2] sm:$0x1]
          %v4946 = vld [vmem:[#allocation3 + $0x3] sm:$0x1]
          %v4947 = vld [vmem:[#allocation3 + $0x4] sm:$0x1]
          %v4948 = vld [vmem:[#allocation3 + $0x5] sm:$0x1]
          %v4949 = vld [vmem:[#allocation3 + $0x6] sm:$0x1]
          %v4950 = vld [vmem:[#allocation3 + $0x7] sm:$0x1]
          %v4951 = vld [vmem:[#allocation3 + $0x8] sm:$0x1]
          %v4952 = vld [vmem:[#allocation3 + $0x9] sm:$0x1]
          %v4953 = vld [vmem:[#allocation3 + $0xa] sm:$0x1]
          %v4954 = vld [vmem:[#allocation3 + $0xb] sm:$0x1]
          %v4955 = vld [vmem:[#allocation3 + $0xc] sm:$0x1]
          %v4956 = vld [vmem:[#allocation3 + $0xd] sm:$0x1]
          %v4957 = vld [vmem:[#allocation3 + $0xe] sm:$0x1]
          %v4958 = vld [vmem:[#allocation3 + $0xf] sm:$0x1]
          %v4959 = vld [vmem:[#allocation3 + $0x10] sm:$0x1]
          %v4960 = vld [vmem:[#allocation3 + $0x11] sm:$0x1]
          %v4961 = vld [vmem:[#allocation3 + $0x12] sm:$0x1]
          %v4962 = vld [vmem:[#allocation3 + $0x13] sm:$0x1]
          %v4963 = vld [vmem:[#allocation3 + $0x14] sm:$0x1]
          %v4964 = vld [vmem:[#allocation3 + $0x15] sm:$0x1]
          %v4965 = vld [vmem:[#allocation3 + $0x16] sm:$0x1]
          %v4966 = vld [vmem:[#allocation3 + $0x17] sm:$0x1]
          %v4967 = vld [vmem:[#allocation3 + $0x18] sm:$0x1]
          %v4968 = vld [vmem:[#allocation3 + $0x19] sm:$0x1]
          %v4969 = vld [vmem:[#allocation3 + $0x1a] sm:$0x1]
          %v4970 = vld [vmem:[#allocation3 + $0x1b] sm:$0x1]
          %v4971 = vld [vmem:[#allocation3 + $0x1c] sm:$0x1]
          %v4972 = vld [vmem:[#allocation3 + $0x1d] sm:$0x1]
          %v4973 = vld [vmem:[#allocation3 + $0x1e] sm:$0x1]
          %v4974 = vld [vmem:[#allocation3 + $0x1f] sm:$0x1]
          %v4975 = vrcp.pop %v4943
          %v4976 = vrcp.pop %v4944
          %v4977 = vrcp.pop %v4945
          %v4978 = vrcp.pop %v4946
          %v4979 = vrcp.pop %v4947
          %v4980 = vrcp.pop %v4948
          %v4981 = vrcp.pop %v4949
          %v4982 = vrcp.pop %v4950
          %v4983 = vrcp.pop %v4951
          %v4984 = vrcp.pop %v4952
          %v4985 = vrcp.pop %v4953
          %v4986 = vrcp.pop %v4954
          %v4987 = vrcp.pop %v4955
          %v4988 = vrcp.pop %v4956
          %v4989 = vrcp.pop %v4957
          %v4990 = vrcp.pop %v4958
          %v4991 = vrcp.pop %v4959
          %v4992 = vrcp.pop %v4960
          %v4993 = vrcp.pop %v4961
          %v4994 = vrcp.pop %v4962
          %v4995 = vrcp.pop %v4963
          %v4996 = vrcp.pop %v4964
          %v4997 = vrcp.pop %v4965
          %v4998 = vrcp.pop %v4966
          %v4999 = vrcp.pop %v4967
          %v5000 = vrcp.pop %v4968
          %v5001 = vrcp.pop %v4969
          %v5002 = vrcp.pop %v4970
          %v5003 = vrcp.pop %v4971
          %v5004 = vrcp.pop %v4972
          %v5005 = vrcp.pop %v4973
          %v5006 = vrcp.pop %v4974
          %v5007 = vld [vmem:[#allocation4] sm:$0xff]
          %v5008 = vld [vmem:[#allocation4 + $0x8] sm:$0xff]
          %v5009 = vld [vmem:[#allocation4 + $0x10] sm:$0xff]
          %v5010 = vld [vmem:[#allocation4 + $0x18] sm:$0xff]
          %5012 = vset.pattern.permute.xlu0 0
          %5013 = vperm.xlu0 %5012, %v4975
          %v5014 = vpop.permute.xlu0 %5013
          %v5016 = vlaneseq
          %v5017 = vshrl.u32 %v5016, 7
          %v5018 = vsub.s32 0, %v5017
          %v5019 = vrot.slane %v5014, %v5018
          %5021 = vset.pattern.permute.xlu0 0
          %5022 = vperm.xlu0 %5021, %v4976
          %v5023 = vpop.permute.xlu0 %5022
          %v5025 = vlaneseq
          %v5026 = vshrl.u32 %v5025, 7
          %v5027 = vsub.s32 0, %v5026
          %v5028 = vrot.slane %v5023, %v5027
          %5030 = vset.pattern.permute.xlu0 0
          %5031 = vperm.xlu0 %5030, %v4977
          %v5032 = vpop.permute.xlu0 %5031
          %v5034 = vlaneseq
          %v5035 = vshrl.u32 %v5034, 7
          %v5036 = vsub.s32 0, %v5035
          %v5037 = vrot.slane %v5032, %v5036
          %5039 = vset.pattern.permute.xlu0 0
          %5040 = vperm.xlu0 %5039, %v4978
          %v5041 = vpop.permute.xlu0 %5040
          %v5043 = vlaneseq
          %v5044 = vshrl.u32 %v5043, 7
          %v5045 = vsub.s32 0, %v5044
          %v5046 = vrot.slane %v5041, %v5045
          %5048 = vset.pattern.permute.xlu0 0
          %5049 = vperm.xlu0 %5048, %v4979
          %v5050 = vpop.permute.xlu0 %5049
          %v5052 = vlaneseq
          %v5053 = vshrl.u32 %v5052, 7
          %v5054 = vsub.s32 0, %v5053
          %v5055 = vrot.slane %v5050, %v5054
          %5057 = vset.pattern.permute.xlu0 0
          %5058 = vperm.xlu0 %5057, %v4980
          %v5059 = vpop.permute.xlu0 %5058
          %v5061 = vlaneseq
          %v5062 = vshrl.u32 %v5061, 7
          %v5063 = vsub.s32 0, %v5062
          %v5064 = vrot.slane %v5059, %v5063
          %5066 = vset.pattern.permute.xlu0 0
          %5067 = vperm.xlu0 %5066, %v4981
          %v5068 = vpop.permute.xlu0 %5067
          %v5070 = vlaneseq
          %v5071 = vshrl.u32 %v5070, 7
          %v5072 = vsub.s32 0, %v5071
          %v5073 = vrot.slane %v5068, %v5072
          %5075 = vset.pattern.permute.xlu0 0
          %5076 = vperm.xlu0 %5075, %v4982
          %v5077 = vpop.permute.xlu0 %5076
          %v5079 = vlaneseq
          %v5080 = vshrl.u32 %v5079, 7
          %v5081 = vsub.s32 0, %v5080
          %v5082 = vrot.slane %v5077, %v5081
          %5084 = vset.pattern.permute.xlu0 0
          %5085 = vperm.xlu0 %5084, %v4983
          %v5086 = vpop.permute.xlu0 %5085
          %v5088 = vlaneseq
          %v5089 = vshrl.u32 %v5088, 7
          %v5090 = vsub.s32 0, %v5089
          %v5091 = vrot.slane %v5086, %v5090
          %5093 = vset.pattern.permute.xlu0 0
          %5094 = vperm.xlu0 %5093, %v4984
          %v5095 = vpop.permute.xlu0 %5094
          %v5097 = vlaneseq
          %v5098 = vshrl.u32 %v5097, 7
          %v5099 = vsub.s32 0, %v5098
          %v5100 = vrot.slane %v5095, %v5099
          %5102 = vset.pattern.permute.xlu0 0
          %5103 = vperm.xlu0 %5102, %v4985
          %v5104 = vpop.permute.xlu0 %5103
          %v5106 = vlaneseq
          %v5107 = vshrl.u32 %v5106, 7
          %v5108 = vsub.s32 0, %v5107
          %v5109 = vrot.slane %v5104, %v5108
          %5111 = vset.pattern.permute.xlu0 0
          %5112 = vperm.xlu0 %5111, %v4986
          %v5113 = vpop.permute.xlu0 %5112
          %v5115 = vlaneseq
          %v5116 = vshrl.u32 %v5115, 7
          %v5117 = vsub.s32 0, %v5116
          %v5118 = vrot.slane %v5113, %v5117
          %5120 = vset.pattern.permute.xlu0 0
          %5121 = vperm.xlu0 %5120, %v4987
          %v5122 = vpop.permute.xlu0 %5121
          %v5124 = vlaneseq
          %v5125 = vshrl.u32 %v5124, 7
          %v5126 = vsub.s32 0, %v5125
          %v5127 = vrot.slane %v5122, %v5126
          %5129 = vset.pattern.permute.xlu0 0
          %5130 = vperm.xlu0 %5129, %v4988
          %v5131 = vpop.permute.xlu0 %5130
          %v5133 = vlaneseq
          %v5134 = vshrl.u32 %v5133, 7
          %v5135 = vsub.s32 0, %v5134
          %v5136 = vrot.slane %v5131, %v5135
          %5138 = vset.pattern.permute.xlu0 0
          %5139 = vperm.xlu0 %5138, %v4989
          %v5140 = vpop.permute.xlu0 %5139
          %v5142 = vlaneseq
          %v5143 = vshrl.u32 %v5142, 7
          %v5144 = vsub.s32 0, %v5143
          %v5145 = vrot.slane %v5140, %v5144
          %5147 = vset.pattern.permute.xlu0 0
          %5148 = vperm.xlu0 %5147, %v4990
          %v5149 = vpop.permute.xlu0 %5148
          %v5151 = vlaneseq
          %v5152 = vshrl.u32 %v5151, 7
          %v5153 = vsub.s32 0, %v5152
          %v5154 = vrot.slane %v5149, %v5153
          %5156 = vset.pattern.permute.xlu0 0
          %5157 = vperm.xlu0 %5156, %v4991
          %v5158 = vpop.permute.xlu0 %5157
          %v5160 = vlaneseq
          %v5161 = vshrl.u32 %v5160, 7
          %v5162 = vsub.s32 0, %v5161
          %v5163 = vrot.slane %v5158, %v5162
          %5165 = vset.pattern.permute.xlu0 0
          %5166 = vperm.xlu0 %5165, %v4992
          %v5167 = vpop.permute.xlu0 %5166
          %v5169 = vlaneseq
          %v5170 = vshrl.u32 %v5169, 7
          %v5171 = vsub.s32 0, %v5170
          %v5172 = vrot.slane %v5167, %v5171
          %5174 = vset.pattern.permute.xlu0 0
          %5175 = vperm.xlu0 %5174, %v4993
          %v5176 = vpop.permute.xlu0 %5175
          %v5178 = vlaneseq
          %v5179 = vshrl.u32 %v5178, 7
          %v5180 = vsub.s32 0, %v5179
          %v5181 = vrot.slane %v5176, %v5180
          %5183 = vset.pattern.permute.xlu0 0
          %5184 = vperm.xlu0 %5183, %v4994
          %v5185 = vpop.permute.xlu0 %5184
          %v5187 = vlaneseq
          %v5188 = vshrl.u32 %v5187, 7
          %v5189 = vsub.s32 0, %v5188
          %v5190 = vrot.slane %v5185, %v5189
          %5192 = vset.pattern.permute.xlu0 0
          %5193 = vperm.xlu0 %5192, %v4995
          %v5194 = vpop.permute.xlu0 %5193
          %v5196 = vlaneseq
          %v5197 = vshrl.u32 %v5196, 7
          %v5198 = vsub.s32 0, %v5197
          %v5199 = vrot.slane %v5194, %v5198
          %5201 = vset.pattern.permute.xlu0 0
          %5202 = vperm.xlu0 %5201, %v4996
          %v5203 = vpop.permute.xlu0 %5202
          %v5205 = vlaneseq
          %v5206 = vshrl.u32 %v5205, 7
          %v5207 = vsub.s32 0, %v5206
          %v5208 = vrot.slane %v5203, %v5207
          %5210 = vset.pattern.permute.xlu0 0
          %5211 = vperm.xlu0 %5210, %v4997
          %v5212 = vpop.permute.xlu0 %5211
          %v5214 = vlaneseq
          %v5215 = vshrl.u32 %v5214, 7
          %v5216 = vsub.s32 0, %v5215
          %v5217 = vrot.slane %v5212, %v5216
          %5219 = vset.pattern.permute.xlu0 0
          %5220 = vperm.xlu0 %5219, %v4998
          %v5221 = vpop.permute.xlu0 %5220
          %v5223 = vlaneseq
          %v5224 = vshrl.u32 %v5223, 7
          %v5225 = vsub.s32 0, %v5224
          %v5226 = vrot.slane %v5221, %v5225
          %5228 = vset.pattern.permute.xlu0 0
          %5229 = vperm.xlu0 %5228, %v4999
          %v5230 = vpop.permute.xlu0 %5229
          %v5232 = vlaneseq
          %v5233 = vshrl.u32 %v5232, 7
          %v5234 = vsub.s32 0, %v5233
          %v5235 = vrot.slane %v5230, %v5234
          %5237 = vset.pattern.permute.xlu0 0
          %5238 = vperm.xlu0 %5237, %v5000
          %v5239 = vpop.permute.xlu0 %5238
          %v5241 = vlaneseq
          %v5242 = vshrl.u32 %v5241, 7
          %v5243 = vsub.s32 0, %v5242
          %v5244 = vrot.slane %v5239, %v5243
          %5246 = vset.pattern.permute.xlu0 0
          %5247 = vperm.xlu0 %5246, %v5001
          %v5248 = vpop.permute.xlu0 %5247
          %v5250 = vlaneseq
          %v5251 = vshrl.u32 %v5250, 7
          %v5252 = vsub.s32 0, %v5251
          %v5253 = vrot.slane %v5248, %v5252
          %5255 = vset.pattern.permute.xlu0 0
          %5256 = vperm.xlu0 %5255, %v5002
          %v5257 = vpop.permute.xlu0 %5256
          %v5259 = vlaneseq
          %v5260 = vshrl.u32 %v5259, 7
          %v5261 = vsub.s32 0, %v5260
          %v5262 = vrot.slane %v5257, %v5261
          %5264 = vset.pattern.permute.xlu0 0
          %5265 = vperm.xlu0 %5264, %v5003
          %v5266 = vpop.permute.xlu0 %5265
          %v5268 = vlaneseq
          %v5269 = vshrl.u32 %v5268, 7
          %v5270 = vsub.s32 0, %v5269
          %v5271 = vrot.slane %v5266, %v5270
          %5273 = vset.pattern.permute.xlu0 0
          %5274 = vperm.xlu0 %5273, %v5004
          %v5275 = vpop.permute.xlu0 %5274
          %v5277 = vlaneseq
          %v5278 = vshrl.u32 %v5277, 7
          %v5279 = vsub.s32 0, %v5278
          %v5280 = vrot.slane %v5275, %v5279
          %5282 = vset.pattern.permute.xlu0 0
          %5283 = vperm.xlu0 %5282, %v5005
          %v5284 = vpop.permute.xlu0 %5283
          %v5286 = vlaneseq
          %v5287 = vshrl.u32 %v5286, 7
          %v5288 = vsub.s32 0, %v5287
          %v5289 = vrot.slane %v5284, %v5288
          %5291 = vset.pattern.permute.xlu0 0
          %5292 = vperm.xlu0 %5291, %v5006
          %v5293 = vpop.permute.xlu0 %5292
          %v5295 = vlaneseq
          %v5296 = vshrl.u32 %v5295, 7
          %v5297 = vsub.s32 0, %v5296
          %v5298 = vrot.slane %v5293, %v5297
          %v5331 = vcombine.low %v5019, %v5028
          %v5332 = vcombine.low %v5037, %v5046
          %v5333 = vcombine.low %v5055, %v5064
          %v5334 = vcombine.low %v5073, %v5082
          %v5336 = vunpack.c.l.s4 1966171168
          %v5337 = vunpack.c.0.s8 %v5336
          %v5338 = vlaneseq
          %v5339 = vshrl.u32 %v5338, 7
          %v5340 = vsub.s32 %v5337, %v5339
          %v5341 = vrot.slane %v5331, %v5340
          %v5343 = vunpack.c.l.s4 1966171168
          %v5344 = vunpack.c.0.s8 %v5343
          %v5345 = vlaneseq
          %v5346 = vshrl.u32 %v5345, 7
          %v5347 = vsub.s32 %v5344, %v5346
          %v5348 = vrot.slane %v5332, %v5347
          %v5350 = vunpack.c.l.s4 1966171168
          %v5351 = vunpack.c.0.s8 %v5350
          %v5352 = vlaneseq
          %v5353 = vshrl.u32 %v5352, 7
          %v5354 = vsub.s32 %v5351, %v5353
          %v5355 = vrot.slane %v5333, %v5354
          %v5357 = vunpack.c.l.s4 1966171168
          %v5358 = vunpack.c.0.s8 %v5357
          %v5359 = vlaneseq
          %v5360 = vshrl.u32 %v5359, 7
          %v5361 = vsub.s32 %v5358, %v5360
          %v5362 = vrot.slane %v5334, %v5361
          %v5363 = vcombine.low %v5341, %v5348
          %v5364 = vcombine.low %v5355, %v5362
          %v5366 = vunpack.c.l.s4 1966171168
          %v5367 = vunpack.c.0.s8 %v5366
          %v5368 = vlaneseq
          %v5369 = vshrl.u32 %v5368, 7
          %v5370 = vsub.s32 %v5367, %v5369
          %v5371 = vrot.slane %v5363, %v5370
          %v5373 = vunpack.c.l.s4 1966171168
          %v5374 = vunpack.c.0.s8 %v5373
          %v5375 = vlaneseq
          %v5376 = vshrl.u32 %v5375, 7
          %v5377 = vsub.s32 %v5374, %v5376
          %v5378 = vrot.slane %v5364, %v5377
          %v5379 = vcombine.low %v5371, %v5378
          %v5380 = vcombine.low %v5091, %v5100
          %v5381 = vcombine.low %v5109, %v5118
          %v5382 = vcombine.low %v5127, %v5136
          %v5383 = vcombine.low %v5145, %v5154
          %v5385 = vunpack.c.l.s4 1966171168
          %v5386 = vunpack.c.0.s8 %v5385
          %v5387 = vlaneseq
          %v5388 = vshrl.u32 %v5387, 7
          %v5389 = vsub.s32 %v5386, %v5388
          %v5390 = vrot.slane %v5380, %v5389
          %v5392 = vunpack.c.l.s4 1966171168
          %v5393 = vunpack.c.0.s8 %v5392
          %v5394 = vlaneseq
          %v5395 = vshrl.u32 %v5394, 7
          %v5396 = vsub.s32 %v5393, %v5395
          %v5397 = vrot.slane %v5381, %v5396
          %v5399 = vunpack.c.l.s4 1966171168
          %v5400 = vunpack.c.0.s8 %v5399
          %v5401 = vlaneseq
          %v5402 = vshrl.u32 %v5401, 7
          %v5403 = vsub.s32 %v5400, %v5402
          %v5404 = vrot.slane %v5382, %v5403
          %v5406 = vunpack.c.l.s4 1966171168
          %v5407 = vunpack.c.0.s8 %v5406
          %v5408 = vlaneseq
          %v5409 = vshrl.u32 %v5408, 7
          %v5410 = vsub.s32 %v5407, %v5409
          %v5411 = vrot.slane %v5383, %v5410
          %v5412 = vcombine.low %v5390, %v5397
          %v5413 = vcombine.low %v5404, %v5411
          %v5415 = vunpack.c.l.s4 1966171168
          %v5416 = vunpack.c.0.s8 %v5415
          %v5417 = vlaneseq
          %v5418 = vshrl.u32 %v5417, 7
          %v5419 = vsub.s32 %v5416, %v5418
          %v5420 = vrot.slane %v5412, %v5419
          %v5422 = vunpack.c.l.s4 1966171168
          %v5423 = vunpack.c.0.s8 %v5422
          %v5424 = vlaneseq
          %v5425 = vshrl.u32 %v5424, 7
          %v5426 = vsub.s32 %v5423, %v5425
          %v5427 = vrot.slane %v5413, %v5426
          %v5428 = vcombine.low %v5420, %v5427
          %v5429 = vcombine.low %v5163, %v5172
          %v5430 = vcombine.low %v5181, %v5190
          %v5431 = vcombine.low %v5199, %v5208
          %v5432 = vcombine.low %v5217, %v5226
          %v5434 = vunpack.c.l.s4 1966171168
          %v5435 = vunpack.c.0.s8 %v5434
          %v5436 = vlaneseq
          %v5437 = vshrl.u32 %v5436, 7
          %v5438 = vsub.s32 %v5435, %v5437
          %v5439 = vrot.slane %v5429, %v5438
          %v5441 = vunpack.c.l.s4 1966171168
          %v5442 = vunpack.c.0.s8 %v5441
          %v5443 = vlaneseq
          %v5444 = vshrl.u32 %v5443, 7
          %v5445 = vsub.s32 %v5442, %v5444
          %v5446 = vrot.slane %v5430, %v5445
          %v5448 = vunpack.c.l.s4 1966171168
          %v5449 = vunpack.c.0.s8 %v5448
          %v5450 = vlaneseq
          %v5451 = vshrl.u32 %v5450, 7
          %v5452 = vsub.s32 %v5449, %v5451
          %v5453 = vrot.slane %v5431, %v5452
          %v5455 = vunpack.c.l.s4 1966171168
          %v5456 = vunpack.c.0.s8 %v5455
          %v5457 = vlaneseq
          %v5458 = vshrl.u32 %v5457, 7
          %v5459 = vsub.s32 %v5456, %v5458
          %v5460 = vrot.slane %v5432, %v5459
          %v5461 = vcombine.low %v5439, %v5446
          %v5462 = vcombine.low %v5453, %v5460
          %v5464 = vunpack.c.l.s4 1966171168
          %v5465 = vunpack.c.0.s8 %v5464
          %v5466 = vlaneseq
          %v5467 = vshrl.u32 %v5466, 7
          %v5468 = vsub.s32 %v5465, %v5467
          %v5469 = vrot.slane %v5461, %v5468
          %v5471 = vunpack.c.l.s4 1966171168
          %v5472 = vunpack.c.0.s8 %v5471
          %v5473 = vlaneseq
          %v5474 = vshrl.u32 %v5473, 7
          %v5475 = vsub.s32 %v5472, %v5474
          %v5476 = vrot.slane %v5462, %v5475
          %v5477 = vcombine.low %v5469, %v5476
          %v5478 = vcombine.low %v5235, %v5244
          %v5479 = vcombine.low %v5253, %v5262
          %v5480 = vcombine.low %v5271, %v5280
          %v5481 = vcombine.low %v5289, %v5298
          %v5483 = vunpack.c.l.s4 1966171168
          %v5484 = vunpack.c.0.s8 %v5483
          %v5485 = vlaneseq
          %v5486 = vshrl.u32 %v5485, 7
          %v5487 = vsub.s32 %v5484, %v5486
          %v5488 = vrot.slane %v5478, %v5487
          %v5490 = vunpack.c.l.s4 1966171168
          %v5491 = vunpack.c.0.s8 %v5490
          %v5492 = vlaneseq
          %v5493 = vshrl.u32 %v5492, 7
          %v5494 = vsub.s32 %v5491, %v5493
          %v5495 = vrot.slane %v5479, %v5494
          %v5497 = vunpack.c.l.s4 1966171168
          %v5498 = vunpack.c.0.s8 %v5497
          %v5499 = vlaneseq
          %v5500 = vshrl.u32 %v5499, 7
          %v5501 = vsub.s32 %v5498, %v5500
          %v5502 = vrot.slane %v5480, %v5501
          %v5504 = vunpack.c.l.s4 1966171168
          %v5505 = vunpack.c.0.s8 %v5504
          %v5506 = vlaneseq
          %v5507 = vshrl.u32 %v5506, 7
          %v5508 = vsub.s32 %v5505, %v5507
          %v5509 = vrot.slane %v5481, %v5508
          %v5510 = vcombine.low %v5488, %v5495
          %v5511 = vcombine.low %v5502, %v5509
          %v5513 = vunpack.c.l.s4 1966171168
          %v5514 = vunpack.c.0.s8 %v5513
          %v5515 = vlaneseq
          %v5516 = vshrl.u32 %v5515, 7
          %v5517 = vsub.s32 %v5514, %v5516
          %v5518 = vrot.slane %v5510, %v5517
          %v5520 = vunpack.c.l.s4 1966171168
          %v5521 = vunpack.c.0.s8 %v5520
          %v5522 = vlaneseq
          %v5523 = vshrl.u32 %v5522, 7
          %v5524 = vsub.s32 %v5521, %v5523
          %v5525 = vrot.slane %v5511, %v5524
          %v5526 = vcombine.low %v5518, %v5525
          %v5531 = vmul.f32 %v5007, %v5379
          %v5532 = vmul.f32 %v5008, %v5428
          %v5533 = vmul.f32 %v5009, %v5477
          %v5534 = vmul.f32 %v5010, %v5526
          %5535 = vst [vmem:[%s259] sm:$0xff] %v5531
          %5536 = vst [vmem:[%s259 + $0x8] sm:$0xff] %v5532
          %5537 = vst [vmem:[%s259 + $0x10] sm:$0xff] %v5533
          %5538 = vst [vmem:[%s259 + $0x18] sm:$0xff] %v5534
        $region52: #{tpu_custom_call.1} parent=39 // pred_fallthru
          _
        %s5539 = sand.u32 %s154, 1
        %s5540 = scalar_lea.sflag [#allocation7], %s5539
        %s5541 = sand.u32 %s154, 1
        %s5542 = smul.addr %s5541, 32
        %s5543 = scalar_lea.vmem [#allocation8], %s5542
        // Predicated region
        $region53: #{tpu_custom_call.1} parent=39 // pred_check
          %p5544 = pneg %p164
        $region54: #{tpu_custom_call.1} parent=39 // pred_check_branch
          %5546 = sbr.rel (%p5544) target = $region56
        $region55: #{tpu_custom_call.1} parent=39 // pred_region
          %s5547 = smul.u32 4, %s26
          %s5549 = ssub.s32 512, 512
          %5550 = vsyncadd %s5540, %s5549
          %s5551 = smul.addr %s5547, 128
          %s5552 = scalar_lea.hbm %s5, %s5551
          %s5553 = sshll.u32 %s5543, 4
          %s5554 = int_to_ptr.vmem [resolvable:$true] %s5553
          %5559 = dma.vmem_to_hbm [thread:$0]  %s5554, 512, %s5552, %s5540, 128, 128, 8
        $region56: #{tpu_custom_call.1} parent=39 // pred_fallthru
          _
      $region40: #{tpu_custom_call.1} parent=5 // pred_fallthru
        _
      %p5560 = scmp.le.s32.totalorder 2, %s17
      // Predicated region
      $region57: #{tpu_custom_call.1} parent=5 // pred_check
        %p5561 = pneg %p5560
      $region58: #{tpu_custom_call.1} parent=5 // pred_check_branch
        %5563 = sbr.rel (%p5561) target = $region60
      $region59: #{tpu_custom_call.1} parent=5 // pred_region
        %s5564 = ssub.s32 %s17, 2
        // Predicated region
        $region61: #{tpu_custom_call.1} parent=59 // pred_check
          %p5565 = pneg %p170
        $region62: #{tpu_custom_call.1} parent=59 // pred_check_branch
          %5567 = sbr.rel (%p5565) target = $region64
        $region63: #{tpu_custom_call.1} parent=59 // pred_region
          %s5568 = sand.u32 %s155, 1
          %s5569 = scalar_lea.sflag [#allocation7], %s5568
          %s5570 = sand.u32 %s155, 1
          %s5571 = smul.addr %s5570, 32
          %s5572 = scalar_lea.vmem [#allocation8], %s5571
          %5573 = dma.done %s5569, 512
        $region64: #{tpu_custom_call.1} parent=59 // pred_fallthru
          _
      $region60: #{tpu_custom_call.1} parent=5 // pred_fallthru
        _
    $region6: #{tpu_custom_call.1} parent=1 // loop_footer
      %s21 = sadd.s32 1, %s17
    $region7: #{tpu_custom_call.1} parent=1 // loop_footer_branch
      %16 = sbr.rel target = $region3
    $region8: #{tpu_custom_call.1} parent=1 // loop_exit
      _
    %5574 = vsyncpa [#allocation6], 1
    %s5575 = scalar_lea.sflag [#allocation6], 1
    %5576 = vsyncpa %s5575, 1
    %5577 = vsyncpa [#allocation7], 1
    %s5578 = scalar_lea.sflag [#allocation7], 1
    %5579 = vsyncpa %s5578, 1

</llo_original>
